<compile_context>
chip_gen: v7x
topology: tpu7x:2x2x1
jax: 0.10.0
libtpu: 0.0.40
codegen_flags: <defaults>
</compile_context>

<pallas_src>
import functools
import numbers
import string
import zlib
from collections import defaultdict

import numpy as np
import jax
import jax.numpy as jnp
from jax.experimental import pallas as pl
from jax.experimental.pallas import tpu as pltpu

ALL_CHARACTERS = string.printable
N_CHARACTERS = len(ALL_CHARACTERS)      # 100
NC_PAD = 128                            # char axis padded to one lane tile

MEM_DIM = 32                            # small mem_dim for the demo
MAX_STR_LEN = 16                        # strings padded to this length (T)
STR_GROUP = 8                           # strings per grid step (G), sublane-dense


def _round_up(n, m):
    return ((n + m - 1) // m) * m


# ------------------------------------------------------------------ kernels --

def _lstm_group_kernel(pid_ref,                       # scalar prefetch (SMEM)
                       table_ref, whh_ref, idx_ref, len_ref,   # VMEM blocks
                       h_out_ref,                     # VMEM output block (G, D)
                       g_scr):                        # VMEM scratch (T*G, 4D)
    """One grid step == one group of G same-path strings.

    table_ref: (NC_PAD, 4D)  precomputed  emb @ W_ih + b   for this path
    whh_ref:   (D, 4D)       recurrent weights for this path
    idx_ref:   (T*G, 1)      char indices, time-major: row t*G + r = (step t, string r)
    len_ref:   (G, 1)        actual string lengths (0 for pad rows -> h stays 0)
    h_out_ref: (G, D)        final hidden states
    """
    G, D = h_out_ref.shape
    TG = idx_ref.shape[0]
    T = TG // G
    NC = table_ref.shape[0]

    # 1) One-hot gather + input projection in a single MXU pass:
    #    (T*G, NC_PAD) @ (NC_PAD, 4D)  ->  gate pre-activations for every step.
    ids = idx_ref[...]                                           # (T*G, 1) int32
    iota = jax.lax.broadcasted_iota(jnp.int32, (TG, NC), 1)
    onehot = (iota == ids).astype(jnp.float32)                   # (T*G, NC_PAD)
    g_scr[...] = jnp.dot(onehot, table_ref[...],
                         preferred_element_type=jnp.float32)

    # 2) Recurrence: all G strings advance together; h, c live in vregs.
    whh = whh_ref[...]                                           # (D, 4D), loaded once
    lens = len_ref[...]                                          # (G, 1) int32

    def step(t, carry):
        h, c = carry
        row = pl.multiple_of(t * G, G)
        gates = g_scr[pl.ds(row, G), :] + jnp.dot(
            h, whh, preferred_element_type=jnp.float32)          # (G, 4D)
        sg = jax.nn.sigmoid(gates)                               # one EUP pass (i,f,o used)
        i_g = sg[:, 0 * D:1 * D]
        f_g = sg[:, 1 * D:2 * D]
        o_g = sg[:, 3 * D:4 * D]
        g_g = jnp.tanh(gates[:, 2 * D:3 * D])                    # tanh only on g slice
        c_new = f_g * c + i_g * g_g
        h_new = o_g * jnp.tanh(c_new)
        m = (t < lens).astype(jnp.float32)                       # (G, 1) length mask
        h = h + m * (h_new - h)
        c = c + m * (c_new - c)
        return h, c

    h0 = jnp.zeros((G, D), jnp.float32)
    c0 = jnp.zeros((G, D), jnp.float32)
    h, _ = jax.lax.fori_loop(0, T, step, (h0, c0), unroll=True)
    h_out_ref[...] = h


@functools.lru_cache(maxsize=None)
def _build_lstm_call(num_blocks):
    D = MEM_DIM
    G = STR_GROUP
    T = MAX_STR_LEN
    grid_spec = pltpu.PrefetchScalarGridSpec(
        num_scalar_prefetch=1,                                   # path-id per block
        grid=(num_blocks,),
        in_specs=[
            # per-path precomputed char->gate table, selected by prefetched pid
            pl.BlockSpec((None, NC_PAD, 4 * D), lambda g, pid: (pid[g], 0, 0)),
            # per-path recurrent weights
            pl.BlockSpec((None, D, 4 * D), lambda g, pid: (pid[g], 0, 0)),
            # per-block char indices (time-major) and lengths
            pl.BlockSpec((None, T * G, 1), lambda g, pid: (g, 0, 0)),
            pl.BlockSpec((None, G, 1), lambda g, pid: (g, 0, 0)),
        ],
        out_specs=pl.BlockSpec((None, G, D), lambda g, pid: (g, 0, 0)),
        scratch_shapes=[pltpu.VMEM((T * G, 4 * D), jnp.float32)],
    )
    return jax.jit(pl.pallas_call(
        _lstm_group_kernel,
        out_shape=jax.ShapeDtypeStruct((num_blocks, G, D), jnp.float32),
        grid_spec=grid_spec,
        compiler_params=pltpu.CompilerParams(
            dimension_semantics=("parallel",)),                  # no cross-step state
    ))


def _number_batch_kernel(x_ref, pid_ref, valid_ref, w_ref, b_ref, o_ref):
    """Batched nn.Linear(1, D), vectorized + reduced in one shot.

    x_ref/valid_ref: (B, 1) f32; pid_ref: (B, 1) int32 (all VMEM)
    w_ref/b_ref:     (P_pad, D) f32 VMEM stacks
    o_ref:           (1, D)  == sum_r valid[r] * (x[r] * W[pid[r]] + b[pid[r]])
    """
    B = x_ref.shape[0]
    P = w_ref.shape[0]
    iota = jax.lax.broadcasted_iota(jnp.int32, (B, P), 1)
    onehot = (iota == pid_ref[...]).astype(jnp.float32)          # (B, P)
    w_rows = jnp.dot(onehot, w_ref[...], preferred_element_type=jnp.float32)
    b_rows = jnp.dot(onehot, b_ref[...], preferred_element_type=jnp.float32)
    rows = valid_ref[...] * (x_ref[...] * w_rows + b_rows)       # (B, D)
    o_ref[...] = jnp.sum(rows, axis=0, keepdims=True)


@functools.lru_cache(maxsize=None)
def _build_number_call():
    return jax.jit(pl.pallas_call(
        _number_batch_kernel,
        out_shape=jax.ShapeDtypeStruct((1, MEM_DIM), jnp.float32),
        in_specs=[pl.BlockSpec(memory_space=pltpu.MemorySpace.VMEM)] * 5,
        out_specs=pl.BlockSpec(memory_space=pltpu.MemorySpace.VMEM),
    ))


# -------------------------------------------------------------------- model --

def _seed_from_key(base_key, name):
    return jax.random.fold_in(base_key, zlib.crc32(repr(name).encode()) & 0x7FFFFFFF)


class FlatJSONNNPallas:
    """JAX/Pallas re-implementation of FlatJSONNN's forward pass (batched)."""

    def __init__(self, mem_dim=MEM_DIM, seed=0):
        assert mem_dim == MEM_DIM
        self.mem_dim = mem_dim
        self.path_length = 1
        self._base_key = jax.random.PRNGKey(seed)
        # shared nn.Embedding(N_CHARACTERS, mem_dim) ~ N(0, 1)
        self.string_encoder = jax.random.normal(
            jax.random.fold_in(self._base_key, 1),
            (N_CHARACTERS, mem_dim), jnp.float32)
        # per-path LSTM params (lists indexed by path-id)   -- KeyDefaultDict analog
        self._string_pid = {}
        self._lstm_wih, self._lstm_whh, self._lstm_b = [], [], []
        self._lstm_stack = None
        # per-path Linear(1, D) params
        self._number_pid = {}
        self._num_w, self._num_b = [], []
        self._num_stack = None
        self.number_stats = defaultdict(list)

    # ---------------- lazy parameter factories -------------------------------
    def _string_path_id(self, ckey):
        pid = self._string_pid.get(ckey)
        if pid is None:
            k = _seed_from_key(self._base_key, ('lstm',) + ckey)
            k1, k2, k3, k4 = jax.random.split(k, 4)
            D = self.mem_dim
            bound = 1.0 / np.sqrt(D)
            self._lstm_wih.append(
                jax.random.uniform(k1, (D, 4 * D), jnp.float32, -bound, bound))
            self._lstm_whh.append(
                jax.random.uniform(k2, (D, 4 * D), jnp.float32, -bound, bound))
            b_ih = jax.random.uniform(k3, (1, 4 * D), jnp.float32, -bound, bound)
            b_hh = jax.random.uniform(k4, (1, 4 * D), jnp.float32, -bound, bound)
            self._lstm_b.append(b_ih + b_hh)
            pid = self._string_pid[ckey] = len(self._lstm_wih) - 1
        return pid

    def _number_path_id(self, ckey):
        pid = self._number_pid.get(ckey)
        if pid is None:
            k = _seed_from_key(self._base_key, ('linear',) + ckey)
            k1, k2 = jax.random.split(k)
            # nn.Linear(1, D): bound = 1/sqrt(in_features) = 1
            self._num_w.append(
                jax.random.uniform(k1, (self.mem_dim,), jnp.float32, -1.0, 1.0))
            self._num_b.append(
                jax.random.uniform(k2, (self.mem_dim,), jnp.float32, -1.0, 1.0))
            pid = self._number_pid[ckey] = len(self._num_w) - 1
        return pid

    def _lstm_stacks(self):
        """(P, NC_PAD, 4D) precomputed char->gate tables and (P, D, 4D) W_hh."""
        n = len(self._lstm_wih)
        if self._lstm_stack is None or self._lstm_stack[0] != n:
            wih = jnp.stack(self._lstm_wih)                       # (P, D, 4D)
            whh = jnp.stack(self._lstm_whh)                       # (P, D, 4D)
            bias = jnp.stack(self._lstm_b)                        # (P, 1, 4D)
            emb_pad = jnp.zeros((NC_PAD, self.mem_dim), jnp.float32)
            emb_pad = emb_pad.at[:N_CHARACTERS].set(self.string_encoder)
            # fuse embedding lookup + input projection + bias into one table
            table = jnp.einsum('cd,pdf->pcf', emb_pad, wih) + bias  # (P, NC_PAD, 4D)
            self._lstm_stack = (n, table, whh)
        return self._lstm_stack[1], self._lstm_stack[2]

    def _number_stacks(self):
        n = len(self._num_w)
        if self._num_stack is None or self._num_stack[0] != n:
            p_pad = _round_up(max(n, 1), 8)
            w = np.zeros((p_pad, self.mem_dim), np.float32)
            b = np.zeros((p_pad, self.mem_dim), np.float32)
            if n:
                w[:n] = np.stack([np.asarray(x) for x in self._num_w])
                b[:n] = np.stack([np.asarray(x) for x in self._num_b])
            self._num_stack = (n, jnp.asarray(w), jnp.asarray(b))
        return self._num_stack[1], self._num_stack[2]

    # ---------------- JSON tree recursion (host-side glue) -------------------
    def _canonical(self, path):
        return tuple(p if not isinstance(p, numbers.Number) else '___list___'
                     for p in path[-self.path_length:])

    def forward(self, node_as_json_value):
        leaves = {'str_idx': [], 'str_len': [], 'str_pid': [],
                  'num_val': [], 'num_pid': [], 'has_empty_string': False}
        produced = self._collect(node_as_json_value, ('___root___',), leaves)
        if not produced:
            return None                       # matches original None propagation
        return self._embed_leaves(leaves)

    def _collect(self, node, path, leaves):
        """Walk the tree, registering leaves + per-path params.  Returns True iff
        this subtree produces an embedding (mirrors embed_node's None logic)."""
        path = self._canonical(path)
        if isinstance(node, dict):
            produced = False
            for name, child in node.items():
                produced = self._collect(child, path + (name,), leaves) or produced
            return produced
        if isinstance(node, list):
            produced = False
            for i, child in enumerate(node):
                produced = self._collect(child, path + (i,), leaves) or produced
            return produced
        if isinstance(node, str):
            if node == '':
                leaves['has_empty_string'] = True       # zeros -> contributes 0
                return True
            assert len(node) <= MAX_STR_LEN, "demo strings must fit MAX_STR_LEN"
            idx = np.zeros((MAX_STR_LEN,), np.int32)    # zeros, like the torch code
            for c in range(len(node)):
                try:
                    idx[c] = ALL_CHARACTERS.index(node[c])
                except ValueError:
                    continue
            leaves['str_idx'].append(idx)
            leaves['str_len'].append(len(node))
            leaves['str_pid'].append(self._string_path_id(path))
            return True
        if isinstance(node, numbers.Number):
            stats = self.number_stats[path]
            if len(stats) < 100:
                stats.append(node)
            num = node - np.mean(stats)
            if len(stats) > 3:
                std = np.std(stats)
                if not np.allclose(std, 0.0):
                    num = num / std
            leaves['num_val'].append(np.float32(num))
            leaves['num_pid'].append(self._number_path_id(path))
            return True
        return False

    # ---------------- batched device execution --------------------------------
    def _embed_leaves(self, leaves):
        D = self.mem_dim
        G = STR_GROUP
        T = MAX_STR_LEN
        total = None

        n_str = len(leaves['str_idx'])
        if n_str:
            # Group same-path strings and pad each group to a multiple of G so
            # every grid block uses exactly one set of LSTM weights (pid-sorted
            # order => consecutive blocks reuse resident weight blocks).
            groups = defaultdict(list)
            for i, p in enumerate(leaves['str_pid']):
                groups[p].append(i)
            idx_blocks, len_blocks, pid_blocks = [], [], []
            for p in sorted(groups):
                members = groups[p]
                for s in range(0, len(members), G):
                    chunk = members[s:s + G]
                    idx_blk = np.zeros((G, T), np.int32)
                    len_blk = np.zeros((G, 1), np.int32)
                    for r, li in enumerate(chunk):
                        idx_blk[r] = leaves['str_idx'][li]
                        len_blk[r, 0] = leaves['str_len'][li]
                    # time-major flatten: row t*G + r = (step t, string r)
                    idx_blocks.append(idx_blk.T.reshape(T * G, 1).copy())
                    len_blocks.append(len_blk)
                    pid_blocks.append(p)
            nb = len(pid_blocks)
            idx_arr = jnp.asarray(np.stack(idx_blocks))           # (NB, T*G, 1)
            len_arr = jnp.asarray(np.stack(len_blocks))           # (NB, G, 1)
            pid_arr = jnp.asarray(np.asarray(pid_blocks, np.int32))
            table, whh = self._lstm_stacks()
            h = _build_lstm_call(nb)(pid_arr, table, whh, idx_arr, len_arr)
            # Padded rows have length 0 -> h == 0, so a flat sum is exact.
            total = jnp.sum(h.reshape(-1, D), axis=0, keepdims=True)

        n_num = len(leaves['num_val'])
        if n_num:
            b_pad = _round_up(n_num, 8)
            xv = np.zeros((b_pad, 1), np.float32)
            xv[:n_num, 0] = leaves['num_val']
            pids = np.zeros((b_pad, 1), np.int32)
            pids[:n_num, 0] = leaves['num_pid']
            valid = np.zeros((b_pad, 1), np.float32)
            valid[:n_num, 0] = 1.0
            w, b = self._number_stacks()
            num_sum = _build_number_call()(
                jnp.asarray(xv), jnp.asarray(pids), jnp.asarray(valid), w, b)
            total = num_sum if total is None else total + num_sum

        if total is None:                                # only empty strings
            return jnp.zeros((1, D), jnp.float32)
        # Nested object/array sums == one flat sum over all leaf embeddings.
        return total


# ----------------------------------------------------- pure-numpy reference --

def _sigmoid(x):
    return 1.0 / (1.0 + np.exp(-x))


def _reference_forward(model, node, path, stats):
    """Mirror of the PyTorch forward (nested sums), reusing the model's params."""
    path = model._canonical(path)
    if isinstance(node, dict):
        cs = [s for k, v in node.items()
              if (s := _reference_forward(model, v, path + (k,), stats)) is not None]
        return None if not cs else np.sum(np.concatenate(cs, 0), axis=0, keepdims=True)
    if isinstance(node, list):
        cs = [s for i, v in enumerate(node)
              if (s := _reference_forward(model, v, path + (i,), stats)) is not None]
        return None if not cs else np.sum(np.concatenate(cs, 0), axis=0, keepdims=True)
    if isinstance(node, str):
        D = model.mem_dim
        if node == '':
            return np.zeros((1, D), np.float32)
        pid = model._string_pid[path]
        wih = np.asarray(model._lstm_wih[pid])
        whh = np.asarray(model._lstm_whh[pid])
        bias = np.asarray(model._lstm_b[pid])
        emb = np.asarray(model.string_encoder)
        h = np.zeros((1, D), np.float32)
        c = np.zeros((1, D), np.float32)
        for ch in node:
            try:
                ci = ALL_CHARACTERS.index(ch)
            except ValueError:
                ci = 0
            x = emb[ci:ci + 1, :]
            g = x @ wih + h @ whh + bias
            i = _sigmoid(g[:, :D]); f = _sigmoid(g[:, D:2 * D])
            gg = np.tanh(g[:, 2 * D:3 * D]); o = _sigmoid(g[:, 3 * D:])
            c = f * c + i * gg
            h = o * np.tanh(c)
        return h.astype(np.float32)
    if isinstance(node, numbers.Number):
        st = stats[path]
        if len(st) < 100:
            st.append(node)
        num = node - np.mean(st)
        if len(st) > 3:
            sd = np.std(st)
            if not np.allclose(sd, 0.0):
                num = num / sd
        pid = model._number_pid[path]
        w = np.asarray(model._num_w[pid]); b = np.asarray(model._num_b[pid])
        return (np.float32(num) * w + b)[None, :].astype(np.float32)
    return None


# --------------------------------------------------------------------- main --

if __name__ == "__main__":
    # deterministic parameters derived from jax.random.PRNGKey(0) inside the model
    model = FlatJSONNNPallas(mem_dim=MEM_DIM, seed=0)

    # small deterministic JSON value (FlatJSONNN.forward takes the parsed value)
    example = {
        "name": "hello world",
        "score": 3.5,
        "tags": ["tpu", "pallas", "jax"],
        "meta": {"count": 7, "id": "abc123"},
        "values": [1, 2, 3.0, 4.5],
    }

    out = model.forward(example)
    out = jax.block_until_ready(out)
    assert out.shape == (1, MEM_DIM) and out.dtype == jnp.float32
    assert bool(jnp.all(jnp.isfinite(out)))

    # numerical check against a pure-numpy reference that reuses the same
    # parameters and replays the running number statistics from scratch.
    ref = _reference_forward(model, example, ('___root___',), defaultdict(list))
    ref = np.asarray(ref, np.float32)
    np.testing.assert_allclose(np.asarray(out), ref, rtol=5e-2, atol=5e-2)

    print("KERNEL_OK")
</pallas_src>

<mosaic_0001>
module attributes {stable_mosaic.version = 11 : i64} {
  func.func @_lstm_group_kernel(%arg0: i32, %arg1: memref<3xi32, #tpu.memory_space<smem>>, %arg2: memref<1x128x128xf32, #tpu.memory_space<vmem>>, %arg3: memref<1x32x128xf32, #tpu.memory_space<vmem>>, %arg4: memref<1x128x1xi32, #tpu.memory_space<vmem>>, %arg5: memref<1x8x1xi32, #tpu.memory_space<vmem>>, %arg6: memref<1x8x32xf32, #tpu.memory_space<vmem>>, %arg7: memref<128x128xf32, #tpu.memory_space<vmem>>) attributes {dimension_semantics = [#tpu.dimension_semantics<parallel>], iteration_bounds = array<i64: 3>, scalar_prefetch = 1 : i64, scratch_operands = 1 : i64, tpu.core_type = #tpu.core_type<tc>, window_params = [{transform_indices = @transform_0, window_bounds = array<i64: 1, 128, 128>}, {transform_indices = @transform_1, window_bounds = array<i64: 1, 32, 128>}, {transform_indices = @transform_2, window_bounds = array<i64: 1, 128, 1>}, {transform_indices = @transform_3, window_bounds = array<i64: 1, 8, 1>}, {transform_indices = @transform_4, window_bounds = array<i64: 1, 8, 32>}]} {
    %c0 = arith.constant 0 : index
    %c0_0 = arith.constant 0 : index
    %c0_1 = arith.constant 0 : index
    %0 = vector.load %arg4[%c0, %c0_0, %c0_1] : memref<1x128x1xi32, #tpu.memory_space<vmem>>, vector<1x128x1xi32>
    %1 = vector.shape_cast %0 : vector<1x128x1xi32> to vector<128x1xi32>
    %2 = tpu.iota {dimensions = array<i32: 1>} : vector<128x128xi32>
    %3 = vector.broadcast %1 : vector<128x1xi32> to vector<128x128xi32>
    %4 = arith.cmpi eq, %2, %3 : vector<128x128xi32>
    %5 = arith.extui %4 : vector<128x128xi1> to vector<128x128xi32>
    %6 = arith.sitofp %5 : vector<128x128xi32> to vector<128x128xf32>
    %c0_2 = arith.constant 0 : index
    %c0_3 = arith.constant 0 : index
    %c0_4 = arith.constant 0 : index
    %7 = vector.load %arg2[%c0_2, %c0_3, %c0_4] : memref<1x128x128xf32, #tpu.memory_space<vmem>>, vector<1x128x128xf32>
    %8 = vector.shape_cast %7 : vector<1x128x128xf32> to vector<128x128xf32>
    %cst = arith.constant dense<0.000000e+00> : vector<128x128xf32>
    %9 = tpu.matmul %6, %8, %cst {dimension_numbers = #tpu.dot_dimension_numbers<[1], [0], [0], [1], [0, 0, 1, 1], [], []>} : vector<128x128xf32>, vector<128x128xf32>, vector<128x128xf32> -> vector<128x128xf32>
    %c0_5 = arith.constant 0 : index
    %c0_6 = arith.constant 0 : index
    %10 = vector.load %arg7[%c0_5, %c0_6] : memref<128x128xf32, #tpu.memory_space<vmem>>, vector<128x128xf32>
    tpu.vector_store %arg7[%c0_5, %c0_6], %9 {strides = array<i32>} : memref<128x128xf32, #tpu.memory_space<vmem>>, vector<128x128xf32>,
    %c0_7 = arith.constant 0 : index
    %c0_8 = arith.constant 0 : index
    %c0_9 = arith.constant 0 : index
    %11 = vector.load %arg3[%c0_7, %c0_8, %c0_9] : memref<1x32x128xf32, #tpu.memory_space<vmem>>, vector<1x32x128xf32>
    %12 = vector.shape_cast %11 : vector<1x32x128xf32> to vector<32x128xf32>
    %c0_10 = arith.constant 0 : index
    %c0_11 = arith.constant 0 : index
    %c0_12 = arith.constant 0 : index
    %13 = vector.load %arg5[%c0_10, %c0_11, %c0_12] : memref<1x8x1xi32, #tpu.memory_space<vmem>>, vector<1x8x1xi32>
    %14 = vector.shape_cast %13 : vector<1x8x1xi32> to vector<8x1xi32>
    %cst_13 = arith.constant 0.000000e+00 : f32
    %15 = vector.broadcast %cst_13 : f32 to vector<8x32xf32>
    %cst_14 = arith.constant 0.000000e+00 : f32
    %16 = vector.broadcast %cst_14 : f32 to vector<8x32xf32>
    %c0_i32 = arith.constant 0 : i32
    %c8_i32 = arith.constant 8 : i32
    %17 = arith.muli %c0_i32, %c8_i32 : i32
    %18 = tpu.assume_multiple %17, 8 : i32
    %19 = arith.index_cast %18 : i32 to index
    %c0_15 = arith.constant 0 : index
    %20 = vector.load %arg7[%19, %c0_15] : memref<128x128xf32, #tpu.memory_space<vmem>>, vector<8x128xf32>
    %cst_16 = arith.constant dense<0.000000e+00> : vector<8x128xf32>
    %21 = tpu.matmul %15, %12, %cst_16 {dimension_numbers = #tpu.dot_dimension_numbers<[1], [0], [0], [1], [0, 0, 1, 1], [], []>} : vector<8x32xf32>, vector<32x128xf32>, vector<8x128xf32> -> vector<8x128xf32>
    %22 = arith.addf %20, %21 : vector<8x128xf32>
    %23 = arith.negf %22 : vector<8x128xf32>
    %24 = math.exp %23 : vector<8x128xf32>
    %cst_17 = arith.constant 1.000000e+00 : f32
    %25 = vector.broadcast %cst_17 : f32 to vector<8x128xf32>
    %26 = arith.addf %25, %24 : vector<8x128xf32>
    %27 = arith.divf %25, %26 : vector<8x128xf32>
    %28 = vector.extract_strided_slice %27 {offsets = [0, 0], sizes = [8, 32], strides = [1, 1]} : vector<8x128xf32> to vector<8x32xf32>
    %29 = vector.extract_strided_slice %27 {offsets = [0, 32], sizes = [8, 32], strides = [1, 1]} : vector<8x128xf32> to vector<8x32xf32>
    %30 = vector.extract_strided_slice %27 {offsets = [0, 96], sizes = [8, 32], strides = [1, 1]} : vector<8x128xf32> to vector<8x32xf32>
    %31 = vector.extract_strided_slice %22 {offsets = [0, 64], sizes = [8, 32], strides = [1, 1]} : vector<8x128xf32> to vector<8x32xf32>
    %32 = math.tanh %31 : vector<8x32xf32>
    %33 = arith.mulf %29, %16 : vector<8x32xf32>
    %34 = arith.mulf %28, %32 : vector<8x32xf32>
    %35 = arith.addf %33, %34 : vector<8x32xf32>
    %36 = math.tanh %35 : vector<8x32xf32>
    %37 = arith.mulf %30, %36 : vector<8x32xf32>
    %38 = vector.broadcast %c0_i32 : i32 to vector<8x1xi32>
    %39 = arith.cmpi slt, %38, %14 : vector<8x1xi32>
    %40 = arith.extui %39 : vector<8x1xi1> to vector<8x1xi32>
    %41 = arith.sitofp %40 : vector<8x1xi32> to vector<8x1xf32>
    %42 = arith.subf %37, %15 : vector<8x32xf32>
    %43 = vector.broadcast %41 : vector<8x1xf32> to vector<8x32xf32>
    %44 = arith.mulf %43, %42 : vector<8x32xf32>
    %45 = arith.addf %15, %44 : vector<8x32xf32>
    %46 = arith.subf %35, %16 : vector<8x32xf32>
    %47 = vector.broadcast %41 : vector<8x1xf32> to vector<8x32xf32>
    %48 = arith.mulf %47, %46 : vector<8x32xf32>
    %49 = arith.addf %16, %48 : vector<8x32xf32>
    %c1_i32 = arith.constant 1 : i32
    %c8_i32_18 = arith.constant 8 : i32
    %50 = arith.muli %c1_i32, %c8_i32_18 : i32
    %51 = tpu.assume_multiple %50, 8 : i32
    %52 = arith.index_cast %51 : i32 to index
    %c0_19 = arith.constant 0 : index
    %53 = vector.load %arg7[%52, %c0_19] : memref<128x128xf32, #tpu.memory_space<vmem>>, vector<8x128xf32>
    %cst_20 = arith.constant dense<0.000000e+00> : vector<8x128xf32>
    %54 = tpu.matmul %45, %12, %cst_20 {dimension_numbers = #tpu.dot_dimension_numbers<[1], [0], [0], [1], [0, 0, 1, 1], [], []>} : vector<8x32xf32>, vector<32x128xf32>, vector<8x128xf32> -> vector<8x128xf32>
    %55 = arith.addf %53, %54 : vector<8x128xf32>
    %56 = arith.negf %55 : vector<8x128xf32>
    %57 = math.exp %56 : vector<8x128xf32>
    %cst_21 = arith.constant 1.000000e+00 : f32
    %58 = vector.broadcast %cst_21 : f32 to vector<8x128xf32>
    %59 = arith.addf %58, %57 : vector<8x128xf32>
    %60 = arith.divf %58, %59 : vector<8x128xf32>
    %61 = vector.extract_strided_slice %60 {offsets = [0, 0], sizes = [8, 32], strides = [1, 1]} : vector<8x128xf32> to vector<8x32xf32>
    %62 = vector.extract_strided_slice %60 {offsets = [0, 32], sizes = [8, 32], strides = [1, 1]} : vector<8x128xf32> to vector<8x32xf32>
    %63 = vector.extract_strided_slice %60 {offsets = [0, 96], sizes = [8, 32], strides = [1, 1]} : vector<8x128xf32> to vector<8x32xf32>
    %64 = vector.extract_strided_slice %55 {offsets = [0, 64], sizes = [8, 32], strides = [1, 1]} : vector<8x128xf32> to vector<8x32xf32>
    %65 = math.tanh %64 : vector<8x32xf32>
    %66 = arith.mulf %62, %49 : vector<8x32xf32>
    %67 = arith.mulf %61, %65 : vector<8x32xf32>
    %68 = arith.addf %66, %67 : vector<8x32xf32>
    %69 = math.tanh %68 : vector<8x32xf32>
    %70 = arith.mulf %63, %69 : vector<8x32xf32>
    %71 = vector.broadcast %c1_i32 : i32 to vector<8x1xi32>
    %72 = arith.cmpi slt, %71, %14 : vector<8x1xi32>
    %73 = arith.extui %72 : vector<8x1xi1> to vector<8x1xi32>
    %74 = arith.sitofp %73 : vector<8x1xi32> to vector<8x1xf32>
    %75 = arith.subf %70, %45 : vector<8x32xf32>
    %76 = vector.broadcast %74 : vector<8x1xf32> to vector<8x32xf32>
    %77 = arith.mulf %76, %75 : vector<8x32xf32>
    %78 = arith.addf %45, %77 : vector<8x32xf32>
    %79 = arith.subf %68, %49 : vector<8x32xf32>
    %80 = vector.broadcast %74 : vector<8x1xf32> to vector<8x32xf32>
    %81 = arith.mulf %80, %79 : vector<8x32xf32>
    %82 = arith.addf %49, %81 : vector<8x32xf32>
    %c2_i32 = arith.constant 2 : i32
    %c8_i32_22 = arith.constant 8 : i32
    %83 = arith.muli %c2_i32, %c8_i32_22 : i32
    %84 = tpu.assume_multiple %83, 8 : i32
    %85 = arith.index_cast %84 : i32 to index
    %c0_23 = arith.constant 0 : index
    %86 = vector.load %arg7[%85, %c0_23] : memref<128x128xf32, #tpu.memory_space<vmem>>, vector<8x128xf32>
    %cst_24 = arith.constant dense<0.000000e+00> : vector<8x128xf32>
    %87 = tpu.matmul %78, %12, %cst_24 {dimension_numbers = #tpu.dot_dimension_numbers<[1], [0], [0], [1], [0, 0, 1, 1], [], []>} : vector<8x32xf32>, vector<32x128xf32>, vector<8x128xf32> -> vector<8x128xf32>
    %88 = arith.addf %86, %87 : vector<8x128xf32>
    %89 = arith.negf %88 : vector<8x128xf32>
    %90 = math.exp %89 : vector<8x128xf32>
    %cst_25 = arith.constant 1.000000e+00 : f32
    %91 = vector.broadcast %cst_25 : f32 to vector<8x128xf32>
    %92 = arith.addf %91, %90 : vector<8x128xf32>
    %93 = arith.divf %91, %92 : vector<8x128xf32>
    %94 = vector.extract_strided_slice %93 {offsets = [0, 0], sizes = [8, 32], strides = [1, 1]} : vector<8x128xf32> to vector<8x32xf32>
    %95 = vector.extract_strided_slice %93 {offsets = [0, 32], sizes = [8, 32], strides = [1, 1]} : vector<8x128xf32> to vector<8x32xf32>
    %96 = vector.extract_strided_slice %93 {offsets = [0, 96], sizes = [8, 32], strides = [1, 1]} : vector<8x128xf32> to vector<8x32xf32>
    %97 = vector.extract_strided_slice %88 {offsets = [0, 64], sizes = [8, 32], strides = [1, 1]} : vector<8x128xf32> to vector<8x32xf32>
    %98 = math.tanh %97 : vector<8x32xf32>
    %99 = arith.mulf %95, %82 : vector<8x32xf32>
    %100 = arith.mulf %94, %98 : vector<8x32xf32>
    %101 = arith.addf %99, %100 : vector<8x32xf32>
    %102 = math.tanh %101 : vector<8x32xf32>
    %103 = arith.mulf %96, %102 : vector<8x32xf32>
    %104 = vector.broadcast %c2_i32 : i32 to vector<8x1xi32>
    %105 = arith.cmpi slt, %104, %14 : vector<8x1xi32>
    %106 = arith.extui %105 : vector<8x1xi1> to vector<8x1xi32>
    %107 = arith.sitofp %106 : vector<8x1xi32> to vector<8x1xf32>
    %108 = arith.subf %103, %78 : vector<8x32xf32>
    %109 = vector.broadcast %107 : vector<8x1xf32> to vector<8x32xf32>
    %110 = arith.mulf %109, %108 : vector<8x32xf32>
    %111 = arith.addf %78, %110 : vector<8x32xf32>
    %112 = arith.subf %101, %82 : vector<8x32xf32>
    %113 = vector.broadcast %107 : vector<8x1xf32> to vector<8x32xf32>
    %114 = arith.mulf %113, %112 : vector<8x32xf32>
    %115 = arith.addf %82, %114 : vector<8x32xf32>
    %c3_i32 = arith.constant 3 : i32
    %c8_i32_26 = arith.constant 8 : i32
    %116 = arith.muli %c3_i32, %c8_i32_26 : i32
    %117 = tpu.assume_multiple %116, 8 : i32
    %118 = arith.index_cast %117 : i32 to index
    %c0_27 = arith.constant 0 : index
    %119 = vector.load %arg7[%118, %c0_27] : memref<128x128xf32, #tpu.memory_space<vmem>>, vector<8x128xf32>
    %cst_28 = arith.constant dense<0.000000e+00> : vector<8x128xf32>
    %120 = tpu.matmul %111, %12, %cst_28 {dimension_numbers = #tpu.dot_dimension_numbers<[1], [0], [0], [1], [0, 0, 1, 1], [], []>} : vector<8x32xf32>, vector<32x128xf32>, vector<8x128xf32> -> vector<8x128xf32>
    %121 = arith.addf %119, %120 : vector<8x128xf32>
    %122 = arith.negf %121 : vector<8x128xf32>
    %123 = math.exp %122 : vector<8x128xf32>
    %cst_29 = arith.constant 1.000000e+00 : f32
    %124 = vector.broadcast %cst_29 : f32 to vector<8x128xf32>
    %125 = arith.addf %124, %123 : vector<8x128xf32>
    %126 = arith.divf %124, %125 : vector<8x128xf32>
    %127 = vector.extract_strided_slice %126 {offsets = [0, 0], sizes = [8, 32], strides = [1, 1]} : vector<8x128xf32> to vector<8x32xf32>
    %128 = vector.extract_strided_slice %126 {offsets = [0, 32], sizes = [8, 32], strides = [1, 1]} : vector<8x128xf32> to vector<8x32xf32>
    %129 = vector.extract_strided_slice %126 {offsets = [0, 96], sizes = [8, 32], strides = [1, 1]} : vector<8x128xf32> to vector<8x32xf32>
    %130 = vector.extract_strided_slice %121 {offsets = [0, 64], sizes = [8, 32], strides = [1, 1]} : vector<8x128xf32> to vector<8x32xf32>
    %131 = math.tanh %130 : vector<8x32xf32>
    %132 = arith.mulf %128, %115 : vector<8x32xf32>
    %133 = arith.mulf %127, %131 : vector<8x32xf32>
    %134 = arith.addf %132, %133 : vector<8x32xf32>
    %135 = math.tanh %134 : vector<8x32xf32>
    %136 = arith.mulf %129, %135 : vector<8x32xf32>
    %137 = vector.broadcast %c3_i32 : i32 to vector<8x1xi32>
    %138 = arith.cmpi slt, %137, %14 : vector<8x1xi32>
    %139 = arith.extui %138 : vector<8x1xi1> to vector<8x1xi32>
    %140 = arith.sitofp %139 : vector<8x1xi32> to vector<8x1xf32>
    %141 = arith.subf %136, %111 : vector<8x32xf32>
    %142 = vector.broadcast %140 : vector<8x1xf32> to vector<8x32xf32>
    %143 = arith.mulf %142, %141 : vector<8x32xf32>
    %144 = arith.addf %111, %143 : vector<8x32xf32>
    %145 = arith.subf %134, %115 : vector<8x32xf32>
    %146 = vector.broadcast %140 : vector<8x1xf32> to vector<8x32xf32>
    %147 = arith.mulf %146, %145 : vector<8x32xf32>
    %148 = arith.addf %115, %147 : vector<8x32xf32>
    %c4_i32 = arith.constant 4 : i32
    %c8_i32_30 = arith.constant 8 : i32
    %149 = arith.muli %c4_i32, %c8_i32_30 : i32
    %150 = tpu.assume_multiple %149, 8 : i32
    %151 = arith.index_cast %150 : i32 to index
    %c0_31 = arith.constant 0 : index
    %152 = vector.load %arg7[%151, %c0_31] : memref<128x128xf32, #tpu.memory_space<vmem>>, vector<8x128xf32>
    %cst_32 = arith.constant dense<0.000000e+00> : vector<8x128xf32>
    %153 = tpu.matmul %144, %12, %cst_32 {dimension_numbers = #tpu.dot_dimension_numbers<[1], [0], [0], [1], [0, 0, 1, 1], [], []>} : vector<8x32xf32>, vector<32x128xf32>, vector<8x128xf32> -> vector<8x128xf32>
    %154 = arith.addf %152, %153 : vector<8x128xf32>
    %155 = arith.negf %154 : vector<8x128xf32>
    %156 = math.exp %155 : vector<8x128xf32>
    %cst_33 = arith.constant 1.000000e+00 : f32
    %157 = vector.broadcast %cst_33 : f32 to vector<8x128xf32>
    %158 = arith.addf %157, %156 : vector<8x128xf32>
    %159 = arith.divf %157, %158 : vector<8x128xf32>
    %160 = vector.extract_strided_slice %159 {offsets = [0, 0], sizes = [8, 32], strides = [1, 1]} : vector<8x128xf32> to vector<8x32xf32>
    %161 = vector.extract_strided_slice %159 {offsets = [0, 32], sizes = [8, 32], strides = [1, 1]} : vector<8x128xf32> to vector<8x32xf32>
    %162 = vector.extract_strided_slice %159 {offsets = [0, 96], sizes = [8, 32], strides = [1, 1]} : vector<8x128xf32> to vector<8x32xf32>
    %163 = vector.extract_strided_slice %154 {offsets = [0, 64], sizes = [8, 32], strides = [1, 1]} : vector<8x128xf32> to vector<8x32xf32>
    %164 = math.tanh %163 : vector<8x32xf32>
    %165 = arith.mulf %161, %148 : vector<8x32xf32>
    %166 = arith.mulf %160, %164 : vector<8x32xf32>
    %167 = arith.addf %165, %166 : vector<8x32xf32>
    %168 = math.tanh %167 : vector<8x32xf32>
    %169 = arith.mulf %162, %168 : vector<8x32xf32>
    %170 = vector.broadcast %c4_i32 : i32 to vector<8x1xi32>
    %171 = arith.cmpi slt, %170, %14 : vector<8x1xi32>
    %172 = arith.extui %171 : vector<8x1xi1> to vector<8x1xi32>
    %173 = arith.sitofp %172 : vector<8x1xi32> to vector<8x1xf32>
    %174 = arith.subf %169, %144 : vector<8x32xf32>
    %175 = vector.broadcast %173 : vector<8x1xf32> to vector<8x32xf32>
    %176 = arith.mulf %175, %174 : vector<8x32xf32>
    %177 = arith.addf %144, %176 : vector<8x32xf32>
    %178 = arith.subf %167, %148 : vector<8x32xf32>
    %179 = vector.broadcast %173 : vector<8x1xf32> to vector<8x32xf32>
    %180 = arith.mulf %179, %178 : vector<8x32xf32>
    %181 = arith.addf %148, %180 : vector<8x32xf32>
    %c5_i32 = arith.constant 5 : i32
    %c8_i32_34 = arith.constant 8 : i32
    %182 = arith.muli %c5_i32, %c8_i32_34 : i32
    %183 = tpu.assume_multiple %182, 8 : i32
    %184 = arith.index_cast %183 : i32 to index
    %c0_35 = arith.constant 0 : index
    %185 = vector.load %arg7[%184, %c0_35] : memref<128x128xf32, #tpu.memory_space<vmem>>, vector<8x128xf32>
    %cst_36 = arith.constant dense<0.000000e+00> : vector<8x128xf32>
    %186 = tpu.matmul %177, %12, %cst_36 {dimension_numbers = #tpu.dot_dimension_numbers<[1], [0], [0], [1], [0, 0, 1, 1], [], []>} : vector<8x32xf32>, vector<32x128xf32>, vector<8x128xf32> -> vector<8x128xf32>
    %187 = arith.addf %185, %186 : vector<8x128xf32>
    %188 = arith.negf %187 : vector<8x128xf32>
    %189 = math.exp %188 : vector<8x128xf32>
    %cst_37 = arith.constant 1.000000e+00 : f32
    %190 = vector.broadcast %cst_37 : f32 to vector<8x128xf32>
    %191 = arith.addf %190, %189 : vector<8x128xf32>
    %192 = arith.divf %190, %191 : vector<8x128xf32>
    %193 = vector.extract_strided_slice %192 {offsets = [0, 0], sizes = [8, 32], strides = [1, 1]} : vector<8x128xf32> to vector<8x32xf32>
    %194 = vector.extract_strided_slice %192 {offsets = [0, 32], sizes = [8, 32], strides = [1, 1]} : vector<8x128xf32> to vector<8x32xf32>
    %195 = vector.extract_strided_slice %192 {offsets = [0, 96], sizes = [8, 32], strides = [1, 1]} : vector<8x128xf32> to vector<8x32xf32>
    %196 = vector.extract_strided_slice %187 {offsets = [0, 64], sizes = [8, 32], strides = [1, 1]} : vector<8x128xf32> to vector<8x32xf32>
    %197 = math.tanh %196 : vector<8x32xf32>
    %198 = arith.mulf %194, %181 : vector<8x32xf32>
    %199 = arith.mulf %193, %197 : vector<8x32xf32>
    %200 = arith.addf %198, %199 : vector<8x32xf32>
    %201 = math.tanh %200 : vector<8x32xf32>
    %202 = arith.mulf %195, %201 : vector<8x32xf32>
    %203 = vector.broadcast %c5_i32 : i32 to vector<8x1xi32>
    %204 = arith.cmpi slt, %203, %14 : vector<8x1xi32>
    %205 = arith.extui %204 : vector<8x1xi1> to vector<8x1xi32>
    %206 = arith.sitofp %205 : vector<8x1xi32> to vector<8x1xf32>
    %207 = arith.subf %202, %177 : vector<8x32xf32>
    %208 = vector.broadcast %206 : vector<8x1xf32> to vector<8x32xf32>
    %209 = arith.mulf %208, %207 : vector<8x32xf32>
    %210 = arith.addf %177, %209 : vector<8x32xf32>
    %211 = arith.subf %200, %181 : vector<8x32xf32>
    %212 = vector.broadcast %206 : vector<8x1xf32> to vector<8x32xf32>
    %213 = arith.mulf %212, %211 : vector<8x32xf32>
    %214 = arith.addf %181, %213 : vector<8x32xf32>
    %c6_i32 = arith.constant 6 : i32
    %c8_i32_38 = arith.constant 8 : i32
    %215 = arith.muli %c6_i32, %c8_i32_38 : i32
    %216 = tpu.assume_multiple %215, 8 : i32
    %217 = arith.index_cast %216 : i32 to index
    %c0_39 = arith.constant 0 : index
    %218 = vector.load %arg7[%217, %c0_39] : memref<128x128xf32, #tpu.memory_space<vmem>>, vector<8x128xf32>
    %cst_40 = arith.constant dense<0.000000e+00> : vector<8x128xf32>
    %219 = tpu.matmul %210, %12, %cst_40 {dimension_numbers = #tpu.dot_dimension_numbers<[1], [0], [0], [1], [0, 0, 1, 1], [], []>} : vector<8x32xf32>, vector<32x128xf32>, vector<8x128xf32> -> vector<8x128xf32>
    %220 = arith.addf %218, %219 : vector<8x128xf32>
    %221 = arith.negf %220 : vector<8x128xf32>
    %222 = math.exp %221 : vector<8x128xf32>
    %cst_41 = arith.constant 1.000000e+00 : f32
    %223 = vector.broadcast %cst_41 : f32 to vector<8x128xf32>
    %224 = arith.addf %223, %222 : vector<8x128xf32>
    %225 = arith.divf %223, %224 : vector<8x128xf32>
    %226 = vector.extract_strided_slice %225 {offsets = [0, 0], sizes = [8, 32], strides = [1, 1]} : vector<8x128xf32> to vector<8x32xf32>
    %227 = vector.extract_strided_slice %225 {offsets = [0, 32], sizes = [8, 32], strides = [1, 1]} : vector<8x128xf32> to vector<8x32xf32>
    %228 = vector.extract_strided_slice %225 {offsets = [0, 96], sizes = [8, 32], strides = [1, 1]} : vector<8x128xf32> to vector<8x32xf32>
    %229 = vector.extract_strided_slice %220 {offsets = [0, 64], sizes = [8, 32], strides = [1, 1]} : vector<8x128xf32> to vector<8x32xf32>
    %230 = math.tanh %229 : vector<8x32xf32>
    %231 = arith.mulf %227, %214 : vector<8x32xf32>
    %232 = arith.mulf %226, %230 : vector<8x32xf32>
    %233 = arith.addf %231, %232 : vector<8x32xf32>
    %234 = math.tanh %233 : vector<8x32xf32>
    %235 = arith.mulf %228, %234 : vector<8x32xf32>
    %236 = vector.broadcast %c6_i32 : i32 to vector<8x1xi32>
    %237 = arith.cmpi slt, %236, %14 : vector<8x1xi32>
    %238 = arith.extui %237 : vector<8x1xi1> to vector<8x1xi32>
    %239 = arith.sitofp %238 : vector<8x1xi32> to vector<8x1xf32>
    %240 = arith.subf %235, %210 : vector<8x32xf32>
    %241 = vector.broadcast %239 : vector<8x1xf32> to vector<8x32xf32>
    %242 = arith.mulf %241, %240 : vector<8x32xf32>
    %243 = arith.addf %210, %242 : vector<8x32xf32>
    %244 = arith.subf %233, %214 : vector<8x32xf32>
    %245 = vector.broadcast %239 : vector<8x1xf32> to vector<8x32xf32>
    %246 = arith.mulf %245, %244 : vector<8x32xf32>
    %247 = arith.addf %214, %246 : vector<8x32xf32>
    %c7_i32 = arith.constant 7 : i32
    %c8_i32_42 = arith.constant 8 : i32
    %248 = arith.muli %c7_i32, %c8_i32_42 : i32
    %249 = tpu.assume_multiple %248, 8 : i32
    %250 = arith.index_cast %249 : i32 to index
    %c0_43 = arith.constant 0 : index
    %251 = vector.load %arg7[%250, %c0_43] : memref<128x128xf32, #tpu.memory_space<vmem>>, vector<8x128xf32>
    %cst_44 = arith.constant dense<0.000000e+00> : vector<8x128xf32>
    %252 = tpu.matmul %243, %12, %cst_44 {dimension_numbers = #tpu.dot_dimension_numbers<[1], [0], [0], [1], [0, 0, 1, 1], [], []>} : vector<8x32xf32>, vector<32x128xf32>, vector<8x128xf32> -> vector<8x128xf32>
    %253 = arith.addf %251, %252 : vector<8x128xf32>
    %254 = arith.negf %253 : vector<8x128xf32>
    %255 = math.exp %254 : vector<8x128xf32>
    %cst_45 = arith.constant 1.000000e+00 : f32
    %256 = vector.broadcast %cst_45 : f32 to vector<8x128xf32>
    %257 = arith.addf %256, %255 : vector<8x128xf32>
    %258 = arith.divf %256, %257 : vector<8x128xf32>
    %259 = vector.extract_strided_slice %258 {offsets = [0, 0], sizes = [8, 32], strides = [1, 1]} : vector<8x128xf32> to vector<8x32xf32>
    %260 = vector.extract_strided_slice %258 {offsets = [0, 32], sizes = [8, 32], strides = [1, 1]} : vector<8x128xf32> to vector<8x32xf32>
    %261 = vector.extract_strided_slice %258 {offsets = [0, 96], sizes = [8, 32], strides = [1, 1]} : vector<8x128xf32> to vector<8x32xf32>
    %262 = vector.extract_strided_slice %253 {offsets = [0, 64], sizes = [8, 32], strides = [1, 1]} : vector<8x128xf32> to vector<8x32xf32>
    %263 = math.tanh %262 : vector<8x32xf32>
    %264 = arith.mulf %260, %247 : vector<8x32xf32>
    %265 = arith.mulf %259, %263 : vector<8x32xf32>
    %266 = arith.addf %264, %265 : vector<8x32xf32>
    %267 = math.tanh %266 : vector<8x32xf32>
    %268 = arith.mulf %261, %267 : vector<8x32xf32>
    %269 = vector.broadcast %c7_i32 : i32 to vector<8x1xi32>
    %270 = arith.cmpi slt, %269, %14 : vector<8x1xi32>
    %271 = arith.extui %270 : vector<8x1xi1> to vector<8x1xi32>
    %272 = arith.sitofp %271 : vector<8x1xi32> to vector<8x1xf32>
    %273 = arith.subf %268, %243 : vector<8x32xf32>
    %274 = vector.broadcast %272 : vector<8x1xf32> to vector<8x32xf32>
    %275 = arith.mulf %274, %273 : vector<8x32xf32>
    %276 = arith.addf %243, %275 : vector<8x32xf32>
    %277 = arith.subf %266, %247 : vector<8x32xf32>
    %278 = vector.broadcast %272 : vector<8x1xf32> to vector<8x32xf32>
    %279 = arith.mulf %278, %277 : vector<8x32xf32>
    %280 = arith.addf %247, %279 : vector<8x32xf32>
    %c8_i32_46 = arith.constant 8 : i32
    %c8_i32_47 = arith.constant 8 : i32
    %281 = arith.muli %c8_i32_46, %c8_i32_47 : i32
    %282 = tpu.assume_multiple %281, 8 : i32
    %283 = arith.index_cast %282 : i32 to index
    %c0_48 = arith.constant 0 : index
    %284 = vector.load %arg7[%283, %c0_48] : memref<128x128xf32, #tpu.memory_space<vmem>>, vector<8x128xf32>
    %cst_49 = arith.constant dense<0.000000e+00> : vector<8x128xf32>
    %285 = tpu.matmul %276, %12, %cst_49 {dimension_numbers = #tpu.dot_dimension_numbers<[1], [0], [0], [1], [0, 0, 1, 1], [], []>} : vector<8x32xf32>, vector<32x128xf32>, vector<8x128xf32> -> vector<8x128xf32>
    %286 = arith.addf %284, %285 : vector<8x128xf32>
    %287 = arith.negf %286 : vector<8x128xf32>
    %288 = math.exp %287 : vector<8x128xf32>
    %cst_50 = arith.constant 1.000000e+00 : f32
    %289 = vector.broadcast %cst_50 : f32 to vector<8x128xf32>
    %290 = arith.addf %289, %288 : vector<8x128xf32>
    %291 = arith.divf %289, %290 : vector<8x128xf32>
    %292 = vector.extract_strided_slice %291 {offsets = [0, 0], sizes = [8, 32], strides = [1, 1]} : vector<8x128xf32> to vector<8x32xf32>
    %293 = vector.extract_strided_slice %291 {offsets = [0, 32], sizes = [8, 32], strides = [1, 1]} : vector<8x128xf32> to vector<8x32xf32>
    %294 = vector.extract_strided_slice %291 {offsets = [0, 96], sizes = [8, 32], strides = [1, 1]} : vector<8x128xf32> to vector<8x32xf32>
    %295 = vector.extract_strided_slice %286 {offsets = [0, 64], sizes = [8, 32], strides = [1, 1]} : vector<8x128xf32> to vector<8x32xf32>
    %296 = math.tanh %295 : vector<8x32xf32>
    %297 = arith.mulf %293, %280 : vector<8x32xf32>
    %298 = arith.mulf %292, %296 : vector<8x32xf32>
    %299 = arith.addf %297, %298 : vector<8x32xf32>
    %300 = math.tanh %299 : vector<8x32xf32>
    %301 = arith.mulf %294, %300 : vector<8x32xf32>
    %302 = vector.broadcast %c8_i32_46 : i32 to vector<8x1xi32>
    %303 = arith.cmpi slt, %302, %14 : vector<8x1xi32>
    %304 = arith.extui %303 : vector<8x1xi1> to vector<8x1xi32>
    %305 = arith.sitofp %304 : vector<8x1xi32> to vector<8x1xf32>
    %306 = arith.subf %301, %276 : vector<8x32xf32>
    %307 = vector.broadcast %305 : vector<8x1xf32> to vector<8x32xf32>
    %308 = arith.mulf %307, %306 : vector<8x32xf32>
    %309 = arith.addf %276, %308 : vector<8x32xf32>
    %310 = arith.subf %299, %280 : vector<8x32xf32>
    %311 = vector.broadcast %305 : vector<8x1xf32> to vector<8x32xf32>
    %312 = arith.mulf %311, %310 : vector<8x32xf32>
    %313 = arith.addf %280, %312 : vector<8x32xf32>
    %c9_i32 = arith.constant 9 : i32
    %c8_i32_51 = arith.constant 8 : i32
    %314 = arith.muli %c9_i32, %c8_i32_51 : i32
    %315 = tpu.assume_multiple %314, 8 : i32
    %316 = arith.index_cast %315 : i32 to index
    %c0_52 = arith.constant 0 : index
    %317 = vector.load %arg7[%316, %c0_52] : memref<128x128xf32, #tpu.memory_space<vmem>>, vector<8x128xf32>
    %cst_53 = arith.constant dense<0.000000e+00> : vector<8x128xf32>
    %318 = tpu.matmul %309, %12, %cst_53 {dimension_numbers = #tpu.dot_dimension_numbers<[1], [0], [0], [1], [0, 0, 1, 1], [], []>} : vector<8x32xf32>, vector<32x128xf32>, vector<8x128xf32> -> vector<8x128xf32>
    %319 = arith.addf %317, %318 : vector<8x128xf32>
    %320 = arith.negf %319 : vector<8x128xf32>
    %321 = math.exp %320 : vector<8x128xf32>
    %cst_54 = arith.constant 1.000000e+00 : f32
    %322 = vector.broadcast %cst_54 : f32 to vector<8x128xf32>
    %323 = arith.addf %322, %321 : vector<8x128xf32>
    %324 = arith.divf %322, %323 : vector<8x128xf32>
    %325 = vector.extract_strided_slice %324 {offsets = [0, 0], sizes = [8, 32], strides = [1, 1]} : vector<8x128xf32> to vector<8x32xf32>
    %326 = vector.extract_strided_slice %324 {offsets = [0, 32], sizes = [8, 32], strides = [1, 1]} : vector<8x128xf32> to vector<8x32xf32>
    %327 = vector.extract_strided_slice %324 {offsets = [0, 96], sizes = [8, 32], strides = [1, 1]} : vector<8x128xf32> to vector<8x32xf32>
    %328 = vector.extract_strided_slice %319 {offsets = [0, 64], sizes = [8, 32], strides = [1, 1]} : vector<8x128xf32> to vector<8x32xf32>
    %329 = math.tanh %328 : vector<8x32xf32>
    %330 = arith.mulf %326, %313 : vector<8x32xf32>
    %331 = arith.mulf %325, %329 : vector<8x32xf32>
    %332 = arith.addf %330, %331 : vector<8x32xf32>
    %333 = math.tanh %332 : vector<8x32xf32>
    %334 = arith.mulf %327, %333 : vector<8x32xf32>
    %335 = vector.broadcast %c9_i32 : i32 to vector<8x1xi32>
    %336 = arith.cmpi slt, %335, %14 : vector<8x1xi32>
    %337 = arith.extui %336 : vector<8x1xi1> to vector<8x1xi32>
    %338 = arith.sitofp %337 : vector<8x1xi32> to vector<8x1xf32>
    %339 = arith.subf %334, %309 : vector<8x32xf32>
    %340 = vector.broadcast %338 : vector<8x1xf32> to vector<8x32xf32>
    %341 = arith.mulf %340, %339 : vector<8x32xf32>
    %342 = arith.addf %309, %341 : vector<8x32xf32>
    %343 = arith.subf %332, %313 : vector<8x32xf32>
    %344 = vector.broadcast %338 : vector<8x1xf32> to vector<8x32xf32>
    %345 = arith.mulf %344, %343 : vector<8x32xf32>
    %346 = arith.addf %313, %345 : vector<8x32xf32>
    %c10_i32 = arith.constant 10 : i32
    %c8_i32_55 = arith.constant 8 : i32
    %347 = arith.muli %c10_i32, %c8_i32_55 : i32
    %348 = tpu.assume_multiple %347, 8 : i32
    %349 = arith.index_cast %348 : i32 to index
    %c0_56 = arith.constant 0 : index
    %350 = vector.load %arg7[%349, %c0_56] : memref<128x128xf32, #tpu.memory_space<vmem>>, vector<8x128xf32>
    %cst_57 = arith.constant dense<0.000000e+00> : vector<8x128xf32>
    %351 = tpu.matmul %342, %12, %cst_57 {dimension_numbers = #tpu.dot_dimension_numbers<[1], [0], [0], [1], [0, 0, 1, 1], [], []>} : vector<8x32xf32>, vector<32x128xf32>, vector<8x128xf32> -> vector<8x128xf32>
    %352 = arith.addf %350, %351 : vector<8x128xf32>
    %353 = arith.negf %352 : vector<8x128xf32>
    %354 = math.exp %353 : vector<8x128xf32>
    %cst_58 = arith.constant 1.000000e+00 : f32
    %355 = vector.broadcast %cst_58 : f32 to vector<8x128xf32>
    %356 = arith.addf %355, %354 : vector<8x128xf32>
    %357 = arith.divf %355, %356 : vector<8x128xf32>
    %358 = vector.extract_strided_slice %357 {offsets = [0, 0], sizes = [8, 32], strides = [1, 1]} : vector<8x128xf32> to vector<8x32xf32>
    %359 = vector.extract_strided_slice %357 {offsets = [0, 32], sizes = [8, 32], strides = [1, 1]} : vector<8x128xf32> to vector<8x32xf32>
    %360 = vector.extract_strided_slice %357 {offsets = [0, 96], sizes = [8, 32], strides = [1, 1]} : vector<8x128xf32> to vector<8x32xf32>
    %361 = vector.extract_strided_slice %352 {offsets = [0, 64], sizes = [8, 32], strides = [1, 1]} : vector<8x128xf32> to vector<8x32xf32>
    %362 = math.tanh %361 : vector<8x32xf32>
    %363 = arith.mulf %359, %346 : vector<8x32xf32>
    %364 = arith.mulf %358, %362 : vector<8x32xf32>
    %365 = arith.addf %363, %364 : vector<8x32xf32>
    %366 = math.tanh %365 : vector<8x32xf32>
    %367 = arith.mulf %360, %366 : vector<8x32xf32>
    %368 = vector.broadcast %c10_i32 : i32 to vector<8x1xi32>
    %369 = arith.cmpi slt, %368, %14 : vector<8x1xi32>
    %370 = arith.extui %369 : vector<8x1xi1> to vector<8x1xi32>
    %371 = arith.sitofp %370 : vector<8x1xi32> to vector<8x1xf32>
    %372 = arith.subf %367, %342 : vector<8x32xf32>
    %373 = vector.broadcast %371 : vector<8x1xf32> to vector<8x32xf32>
    %374 = arith.mulf %373, %372 : vector<8x32xf32>
    %375 = arith.addf %342, %374 : vector<8x32xf32>
    %376 = arith.subf %365, %346 : vector<8x32xf32>
    %377 = vector.broadcast %371 : vector<8x1xf32> to vector<8x32xf32>
    %378 = arith.mulf %377, %376 : vector<8x32xf32>
    %379 = arith.addf %346, %378 : vector<8x32xf32>
    %c11_i32 = arith.constant 11 : i32
    %c8_i32_59 = arith.constant 8 : i32
    %380 = arith.muli %c11_i32, %c8_i32_59 : i32
    %381 = tpu.assume_multiple %380, 8 : i32
    %382 = arith.index_cast %381 : i32 to index
    %c0_60 = arith.constant 0 : index
    %383 = vector.load %arg7[%382, %c0_60] : memref<128x128xf32, #tpu.memory_space<vmem>>, vector<8x128xf32>
    %cst_61 = arith.constant dense<0.000000e+00> : vector<8x128xf32>
    %384 = tpu.matmul %375, %12, %cst_61 {dimension_numbers = #tpu.dot_dimension_numbers<[1], [0], [0], [1], [0, 0, 1, 1], [], []>} : vector<8x32xf32>, vector<32x128xf32>, vector<8x128xf32> -> vector<8x128xf32>
    %385 = arith.addf %383, %384 : vector<8x128xf32>
    %386 = arith.negf %385 : vector<8x128xf32>
    %387 = math.exp %386 : vector<8x128xf32>
    %cst_62 = arith.constant 1.000000e+00 : f32
    %388 = vector.broadcast %cst_62 : f32 to vector<8x128xf32>
    %389 = arith.addf %388, %387 : vector<8x128xf32>
    %390 = arith.divf %388, %389 : vector<8x128xf32>
    %391 = vector.extract_strided_slice %390 {offsets = [0, 0], sizes = [8, 32], strides = [1, 1]} : vector<8x128xf32> to vector<8x32xf32>
    %392 = vector.extract_strided_slice %390 {offsets = [0, 32], sizes = [8, 32], strides = [1, 1]} : vector<8x128xf32> to vector<8x32xf32>
    %393 = vector.extract_strided_slice %390 {offsets = [0, 96], sizes = [8, 32], strides = [1, 1]} : vector<8x128xf32> to vector<8x32xf32>
    %394 = vector.extract_strided_slice %385 {offsets = [0, 64], sizes = [8, 32], strides = [1, 1]} : vector<8x128xf32> to vector<8x32xf32>
    %395 = math.tanh %394 : vector<8x32xf32>
    %396 = arith.mulf %392, %379 : vector<8x32xf32>
    %397 = arith.mulf %391, %395 : vector<8x32xf32>
    %398 = arith.addf %396, %397 : vector<8x32xf32>
    %399 = math.tanh %398 : vector<8x32xf32>
    %400 = arith.mulf %393, %399 : vector<8x32xf32>
    %401 = vector.broadcast %c11_i32 : i32 to vector<8x1xi32>
    %402 = arith.cmpi slt, %401, %14 : vector<8x1xi32>
    %403 = arith.extui %402 : vector<8x1xi1> to vector<8x1xi32>
    %404 = arith.sitofp %403 : vector<8x1xi32> to vector<8x1xf32>
    %405 = arith.subf %400, %375 : vector<8x32xf32>
    %406 = vector.broadcast %404 : vector<8x1xf32> to vector<8x32xf32>
    %407 = arith.mulf %406, %405 : vector<8x32xf32>
    %408 = arith.addf %375, %407 : vector<8x32xf32>
    %409 = arith.subf %398, %379 : vector<8x32xf32>
    %410 = vector.broadcast %404 : vector<8x1xf32> to vector<8x32xf32>
    %411 = arith.mulf %410, %409 : vector<8x32xf32>
    %412 = arith.addf %379, %411 : vector<8x32xf32>
    %c12_i32 = arith.constant 12 : i32
    %c8_i32_63 = arith.constant 8 : i32
    %413 = arith.muli %c12_i32, %c8_i32_63 : i32
    %414 = tpu.assume_multiple %413, 8 : i32
    %415 = arith.index_cast %414 : i32 to index
    %c0_64 = arith.constant 0 : index
    %416 = vector.load %arg7[%415, %c0_64] : memref<128x128xf32, #tpu.memory_space<vmem>>, vector<8x128xf32>
    %cst_65 = arith.constant dense<0.000000e+00> : vector<8x128xf32>
    %417 = tpu.matmul %408, %12, %cst_65 {dimension_numbers = #tpu.dot_dimension_numbers<[1], [0], [0], [1], [0, 0, 1, 1], [], []>} : vector<8x32xf32>, vector<32x128xf32>, vector<8x128xf32> -> vector<8x128xf32>
    %418 = arith.addf %416, %417 : vector<8x128xf32>
    %419 = arith.negf %418 : vector<8x128xf32>
    %420 = math.exp %419 : vector<8x128xf32>
    %cst_66 = arith.constant 1.000000e+00 : f32
    %421 = vector.broadcast %cst_66 : f32 to vector<8x128xf32>
    %422 = arith.addf %421, %420 : vector<8x128xf32>
    %423 = arith.divf %421, %422 : vector<8x128xf32>
    %424 = vector.extract_strided_slice %423 {offsets = [0, 0], sizes = [8, 32], strides = [1, 1]} : vector<8x128xf32> to vector<8x32xf32>
    %425 = vector.extract_strided_slice %423 {offsets = [0, 32], sizes = [8, 32], strides = [1, 1]} : vector<8x128xf32> to vector<8x32xf32>
    %426 = vector.extract_strided_slice %423 {offsets = [0, 96], sizes = [8, 32], strides = [1, 1]} : vector<8x128xf32> to vector<8x32xf32>
    %427 = vector.extract_strided_slice %418 {offsets = [0, 64], sizes = [8, 32], strides = [1, 1]} : vector<8x128xf32> to vector<8x32xf32>
    %428 = math.tanh %427 : vector<8x32xf32>
    %429 = arith.mulf %425, %412 : vector<8x32xf32>
    %430 = arith.mulf %424, %428 : vector<8x32xf32>
    %431 = arith.addf %429, %430 : vector<8x32xf32>
    %432 = math.tanh %431 : vector<8x32xf32>
    %433 = arith.mulf %426, %432 : vector<8x32xf32>
    %434 = vector.broadcast %c12_i32 : i32 to vector<8x1xi32>
    %435 = arith.cmpi slt, %434, %14 : vector<8x1xi32>
    %436 = arith.extui %435 : vector<8x1xi1> to vector<8x1xi32>
    %437 = arith.sitofp %436 : vector<8x1xi32> to vector<8x1xf32>
    %438 = arith.subf %433, %408 : vector<8x32xf32>
    %439 = vector.broadcast %437 : vector<8x1xf32> to vector<8x32xf32>
    %440 = arith.mulf %439, %438 : vector<8x32xf32>
    %441 = arith.addf %408, %440 : vector<8x32xf32>
    %442 = arith.subf %431, %412 : vector<8x32xf32>
    %443 = vector.broadcast %437 : vector<8x1xf32> to vector<8x32xf32>
    %444 = arith.mulf %443, %442 : vector<8x32xf32>
    %445 = arith.addf %412, %444 : vector<8x32xf32>
    %c13_i32 = arith.constant 13 : i32
    %c8_i32_67 = arith.constant 8 : i32
    %446 = arith.muli %c13_i32, %c8_i32_67 : i32
    %447 = tpu.assume_multiple %446, 8 : i32
    %448 = arith.index_cast %447 : i32 to index
    %c0_68 = arith.constant 0 : index
    %449 = vector.load %arg7[%448, %c0_68] : memref<128x128xf32, #tpu.memory_space<vmem>>, vector<8x128xf32>
    %cst_69 = arith.constant dense<0.000000e+00> : vector<8x128xf32>
    %450 = tpu.matmul %441, %12, %cst_69 {dimension_numbers = #tpu.dot_dimension_numbers<[1], [0], [0], [1], [0, 0, 1, 1], [], []>} : vector<8x32xf32>, vector<32x128xf32>, vector<8x128xf32> -> vector<8x128xf32>
    %451 = arith.addf %449, %450 : vector<8x128xf32>
    %452 = arith.negf %451 : vector<8x128xf32>
    %453 = math.exp %452 : vector<8x128xf32>
    %cst_70 = arith.constant 1.000000e+00 : f32
    %454 = vector.broadcast %cst_70 : f32 to vector<8x128xf32>
    %455 = arith.addf %454, %453 : vector<8x128xf32>
    %456 = arith.divf %454, %455 : vector<8x128xf32>
    %457 = vector.extract_strided_slice %456 {offsets = [0, 0], sizes = [8, 32], strides = [1, 1]} : vector<8x128xf32> to vector<8x32xf32>
    %458 = vector.extract_strided_slice %456 {offsets = [0, 32], sizes = [8, 32], strides = [1, 1]} : vector<8x128xf32> to vector<8x32xf32>
    %459 = vector.extract_strided_slice %456 {offsets = [0, 96], sizes = [8, 32], strides = [1, 1]} : vector<8x128xf32> to vector<8x32xf32>
    %460 = vector.extract_strided_slice %451 {offsets = [0, 64], sizes = [8, 32], strides = [1, 1]} : vector<8x128xf32> to vector<8x32xf32>
    %461 = math.tanh %460 : vector<8x32xf32>
    %462 = arith.mulf %458, %445 : vector<8x32xf32>
    %463 = arith.mulf %457, %461 : vector<8x32xf32>
    %464 = arith.addf %462, %463 : vector<8x32xf32>
    %465 = math.tanh %464 : vector<8x32xf32>
    %466 = arith.mulf %459, %465 : vector<8x32xf32>
    %467 = vector.broadcast %c13_i32 : i32 to vector<8x1xi32>
    %468 = arith.cmpi slt, %467, %14 : vector<8x1xi32>
    %469 = arith.extui %468 : vector<8x1xi1> to vector<8x1xi32>
    %470 = arith.sitofp %469 : vector<8x1xi32> to vector<8x1xf32>
    %471 = arith.subf %466, %441 : vector<8x32xf32>
    %472 = vector.broadcast %470 : vector<8x1xf32> to vector<8x32xf32>
    %473 = arith.mulf %472, %471 : vector<8x32xf32>
    %474 = arith.addf %441, %473 : vector<8x32xf32>
    %475 = arith.subf %464, %445 : vector<8x32xf32>
    %476 = vector.broadcast %470 : vector<8x1xf32> to vector<8x32xf32>
    %477 = arith.mulf %476, %475 : vector<8x32xf32>
    %478 = arith.addf %445, %477 : vector<8x32xf32>
    %c14_i32 = arith.constant 14 : i32
    %c8_i32_71 = arith.constant 8 : i32
    %479 = arith.muli %c14_i32, %c8_i32_71 : i32
    %480 = tpu.assume_multiple %479, 8 : i32
    %481 = arith.index_cast %480 : i32 to index
    %c0_72 = arith.constant 0 : index
    %482 = vector.load %arg7[%481, %c0_72] : memref<128x128xf32, #tpu.memory_space<vmem>>, vector<8x128xf32>
    %cst_73 = arith.constant dense<0.000000e+00> : vector<8x128xf32>
    %483 = tpu.matmul %474, %12, %cst_73 {dimension_numbers = #tpu.dot_dimension_numbers<[1], [0], [0], [1], [0, 0, 1, 1], [], []>} : vector<8x32xf32>, vector<32x128xf32>, vector<8x128xf32> -> vector<8x128xf32>
    %484 = arith.addf %482, %483 : vector<8x128xf32>
    %485 = arith.negf %484 : vector<8x128xf32>
    %486 = math.exp %485 : vector<8x128xf32>
    %cst_74 = arith.constant 1.000000e+00 : f32
    %487 = vector.broadcast %cst_74 : f32 to vector<8x128xf32>
    %488 = arith.addf %487, %486 : vector<8x128xf32>
    %489 = arith.divf %487, %488 : vector<8x128xf32>
    %490 = vector.extract_strided_slice %489 {offsets = [0, 0], sizes = [8, 32], strides = [1, 1]} : vector<8x128xf32> to vector<8x32xf32>
    %491 = vector.extract_strided_slice %489 {offsets = [0, 32], sizes = [8, 32], strides = [1, 1]} : vector<8x128xf32> to vector<8x32xf32>
    %492 = vector.extract_strided_slice %489 {offsets = [0, 96], sizes = [8, 32], strides = [1, 1]} : vector<8x128xf32> to vector<8x32xf32>
    %493 = vector.extract_strided_slice %484 {offsets = [0, 64], sizes = [8, 32], strides = [1, 1]} : vector<8x128xf32> to vector<8x32xf32>
    %494 = math.tanh %493 : vector<8x32xf32>
    %495 = arith.mulf %491, %478 : vector<8x32xf32>
    %496 = arith.mulf %490, %494 : vector<8x32xf32>
    %497 = arith.addf %495, %496 : vector<8x32xf32>
    %498 = math.tanh %497 : vector<8x32xf32>
    %499 = arith.mulf %492, %498 : vector<8x32xf32>
    %500 = vector.broadcast %c14_i32 : i32 to vector<8x1xi32>
    %501 = arith.cmpi slt, %500, %14 : vector<8x1xi32>
    %502 = arith.extui %501 : vector<8x1xi1> to vector<8x1xi32>
    %503 = arith.sitofp %502 : vector<8x1xi32> to vector<8x1xf32>
    %504 = arith.subf %499, %474 : vector<8x32xf32>
    %505 = vector.broadcast %503 : vector<8x1xf32> to vector<8x32xf32>
    %506 = arith.mulf %505, %504 : vector<8x32xf32>
    %507 = arith.addf %474, %506 : vector<8x32xf32>
    %508 = arith.subf %497, %478 : vector<8x32xf32>
    %509 = vector.broadcast %503 : vector<8x1xf32> to vector<8x32xf32>
    %510 = arith.mulf %509, %508 : vector<8x32xf32>
    %511 = arith.addf %478, %510 : vector<8x32xf32>
    %c15_i32 = arith.constant 15 : i32
    %c8_i32_75 = arith.constant 8 : i32
    %512 = arith.muli %c15_i32, %c8_i32_75 : i32
    %513 = tpu.assume_multiple %512, 8 : i32
    %514 = arith.index_cast %513 : i32 to index
    %c0_76 = arith.constant 0 : index
    %515 = vector.load %arg7[%514, %c0_76] : memref<128x128xf32, #tpu.memory_space<vmem>>, vector<8x128xf32>
    %cst_77 = arith.constant dense<0.000000e+00> : vector<8x128xf32>
    %516 = tpu.matmul %507, %12, %cst_77 {dimension_numbers = #tpu.dot_dimension_numbers<[1], [0], [0], [1], [0, 0, 1, 1], [], []>} : vector<8x32xf32>, vector<32x128xf32>, vector<8x128xf32> -> vector<8x128xf32>
    %517 = arith.addf %515, %516 : vector<8x128xf32>
    %518 = arith.negf %517 : vector<8x128xf32>
    %519 = math.exp %518 : vector<8x128xf32>
    %cst_78 = arith.constant 1.000000e+00 : f32
    %520 = vector.broadcast %cst_78 : f32 to vector<8x128xf32>
    %521 = arith.addf %520, %519 : vector<8x128xf32>
    %522 = arith.divf %520, %521 : vector<8x128xf32>
    %523 = vector.extract_strided_slice %522 {offsets = [0, 0], sizes = [8, 32], strides = [1, 1]} : vector<8x128xf32> to vector<8x32xf32>
    %524 = vector.extract_strided_slice %522 {offsets = [0, 32], sizes = [8, 32], strides = [1, 1]} : vector<8x128xf32> to vector<8x32xf32>
    %525 = vector.extract_strided_slice %522 {offsets = [0, 96], sizes = [8, 32], strides = [1, 1]} : vector<8x128xf32> to vector<8x32xf32>
    %526 = vector.extract_strided_slice %517 {offsets = [0, 64], sizes = [8, 32], strides = [1, 1]} : vector<8x128xf32> to vector<8x32xf32>
    %527 = math.tanh %526 : vector<8x32xf32>
    %528 = arith.mulf %524, %511 : vector<8x32xf32>
    %529 = arith.mulf %523, %527 : vector<8x32xf32>
    %530 = arith.addf %528, %529 : vector<8x32xf32>
    %531 = math.tanh %530 : vector<8x32xf32>
    %532 = arith.mulf %525, %531 : vector<8x32xf32>
    %533 = vector.broadcast %c15_i32 : i32 to vector<8x1xi32>
    %534 = arith.cmpi slt, %533, %14 : vector<8x1xi32>
    %535 = arith.extui %534 : vector<8x1xi1> to vector<8x1xi32>
    %536 = arith.sitofp %535 : vector<8x1xi32> to vector<8x1xf32>
    %537 = arith.subf %532, %507 : vector<8x32xf32>
    %538 = vector.broadcast %536 : vector<8x1xf32> to vector<8x32xf32>
    %539 = arith.mulf %538, %537 : vector<8x32xf32>
    %540 = arith.addf %507, %539 : vector<8x32xf32>
    %541 = arith.subf %530, %511 : vector<8x32xf32>
    %542 = vector.broadcast %536 : vector<8x1xf32> to vector<8x32xf32>
    %543 = arith.mulf %542, %541 : vector<8x32xf32>
    %544 = arith.addf %511, %543 : vector<8x32xf32>
    %c16_i32 = arith.constant 16 : i32
    %c0_79 = arith.constant 0 : index
    %c0_80 = arith.constant 0 : index
    %c0_81 = arith.constant 0 : index
    %545 = vector.load %arg6[%c0_79, %c0_80, %c0_81] : memref<1x8x32xf32, #tpu.memory_space<vmem>>, vector<1x8x32xf32>
    %546 = vector.shape_cast %545 : vector<1x8x32xf32> to vector<8x32xf32>
    %547 = vector.shape_cast %540 : vector<8x32xf32> to vector<1x8x32xf32>
    tpu.vector_store %arg6[%c0_79, %c0_80, %c0_81], %547 {strides = array<i32>} : memref<1x8x32xf32, #tpu.memory_space<vmem>>, vector<1x8x32xf32>,
    return
  }
  func.func @transform_0(%arg0: i32, %arg1: memref<3xi32, #tpu.memory_space<smem>>) -> (i32, i32, i32) {
    %0 = arith.index_cast %arg0 : i32 to index
    %1 = memref.load %arg1[%0] : memref<3xi32, #tpu.memory_space<smem>>
    %c0_i32 = arith.constant 0 : i32
    %c0_i32_0 = arith.constant 0 : i32
    %c0_i32_1 = arith.constant 0 : i32
    return %1, %c0_i32, %c0_i32_0 : i32, i32, i32
  }
  func.func @transform_1(%arg0: i32, %arg1: memref<3xi32, #tpu.memory_space<smem>>) -> (i32, i32, i32) {
    %0 = arith.index_cast %arg0 : i32 to index
    %1 = memref.load %arg1[%0] : memref<3xi32, #tpu.memory_space<smem>>
    %c0_i32 = arith.constant 0 : i32
    %c0_i32_0 = arith.constant 0 : i32
    %c0_i32_1 = arith.constant 0 : i32
    return %1, %c0_i32, %c0_i32_0 : i32, i32, i32
  }
  func.func @transform_2(%arg0: i32, %arg1: memref<3xi32, #tpu.memory_space<smem>>) -> (i32, i32, i32) {
    %c0_i32 = arith.constant 0 : i32
    %c0_i32_0 = arith.constant 0 : i32
    %c0_i32_1 = arith.constant 0 : i32
    return %arg0, %c0_i32, %c0_i32_0 : i32, i32, i32
  }
  func.func @transform_3(%arg0: i32, %arg1: memref<3xi32, #tpu.memory_space<smem>>) -> (i32, i32, i32) {
    %c0_i32 = arith.constant 0 : i32
    %c0_i32_0 = arith.constant 0 : i32
    %c0_i32_1 = arith.constant 0 : i32
    return %arg0, %c0_i32, %c0_i32_0 : i32, i32, i32
  }
  func.func @transform_4(%arg0: i32, %arg1: memref<3xi32, #tpu.memory_space<smem>>) -> (i32, i32, i32) {
    %c0_i32 = arith.constant 0 : i32
    %c0_i32_0 = arith.constant 0 : i32
    %c0_i32_1 = arith.constant 0 : i32
    return %arg0, %c0_i32, %c0_i32_0 : i32, i32, i32
  }
}

</mosaic_0001>

<llo_original>
// kernel: tpu_custom_call.1
$region0: #{tpu_custom_call.1}
  #allocation0 [shape = 'u32[]', space=smem, size = 0x4, offset = 0x4, fixed_abs, tag = 'smem constant byte address 0x4 - core index']
  #allocation1 [shape = 'u32[144,128]{1,0:T(1,128)}', space=vmem, size = 0x12000, scoped, tag = 'internal scratch']
  #allocation2 [shape = 'f32[128,128]{1,0:T(8,128)}', space=vmem, size = 0x10000, scoped, tag = 'scratch operand']
  #allocation3 [shape = 's32[1]{0}', space=sflag, size = 0x4, scoped, tag = 'scoped memory for tpu_custom_call.1']
  #allocation4 [shape = 'u8[512]{0}', space=smem, size = 0x200, scoped, tag = 'prefetched SMEM operand 0']
  %s0 = inlined_call_operand.vmem [shape: s32[3], index: 0, kind: input, shape index: {}]
  %s1 = inlined_call_operand.vmem [shape: f32[3,128,128], index: 1, kind: input, shape index: {}]
  %s2 = inlined_call_operand.hbm [shape: f32[3,32,128], index: 2, kind: input, shape index: {}]
  %s3 = inlined_call_operand.vmem [shape: s32[3,128,1], index: 3, kind: input, shape index: {}]
  %s4 = inlined_call_operand.vmem [shape: s32[3,8,1], index: 4, kind: input, shape index: {}]
  %s5 = inlined_call_operand.hbm [shape: f32[3,8,32], index: 5, kind: output, shape index: {}]
  %s6 = sld [smem:[#allocation0]]
  $region53: #{tpu_custom_call.1} parent=0
    _
  %s8 = ssub.s32 1, %s6
  %s9 = scalar_select 0, %s8, %s6
  %s10 = sshll.u32 %s0, 4
  %s11 = int_to_ptr.vmem [resolvable:$true] %s10
  %13 = dma.vmem_to_smem %s11, 16, [#allocation4], [#allocation3]
  %14 = dma.done [#allocation3], 16
  %15 = sfence
  $region1: #{tpu_custom_call.1} parent=0
    #allocation5 [shape = 'u8[32768]{0}', space=vmem, size = 0x8000, scoped, tag = 'input window, operand 2']
    #allocation6 [shape = 's32[2]{0}', space=sflag, size = 0x8, scoped, tag = 'scoped memory for tpu_custom_call.1']
    #allocation7 [shape = 's32[2]{0}', space=sflag, size = 0x8, scoped, tag = 'scoped memory for tpu_custom_call.1']
    #allocation8 [shape = 'u8[8192]{0}', space=vmem, size = 0x2000, scoped, tag = 'output window, operand 0']
    %16 = vsyncpa [#allocation6], 0
    %s17 = scalar_lea.sflag [#allocation6], 1
    %18 = vsyncpa %s17, 0
    %19 = vsyncpa [#allocation7], 0
    %s20 = scalar_lea.sflag [#allocation7], 1
    %21 = vsyncpa %s20, 0
    loop: start=0, step=1, limit=5
    $region2: #{tpu_custom_call.1} parent=1 // loop_pre_header
      _
    $region3: #{tpu_custom_call.1} parent=1 // loop_header
      %s23 = sphi 0, %s27
      %p24 = scmp.ge.s32.totalorder %s23, 5
      %s35 = sphi 0, %s37
      %s38 = sphi 0, %s35
      %s39 = sphi 0, %s38
      %s55 = sphi 0, %s39
      %s63 = sphi 0, %s65
      %s66 = sphi 0, %s63
      %s67 = sphi 0, %s66
      %s83 = sphi 0, %s67
      %s89 = sphi 0, %s91
      %s92 = sphi 0, %s89
      %s93 = sphi 0, %s92
      %s109 = sphi 0, %s93
      %s115 = sphi 0, %s117
      %s118 = sphi 0, %s115
      %s119 = sphi 0, %s118
      %s135 = sphi 0, %s119
      %s141 = sphi 0, %s143
      %s144 = sphi 0, %s141
      %s145 = sphi 0, %s144
      %s161 = sphi 0, %s145
    $region4: #{tpu_custom_call.1} parent=1 // loop_header_branch
      %26 = sbr.rel (%p24) target = $region8
    $region5: #{tpu_custom_call.1} parent=1 // loop_body
      %s28 = ssub.s32 %s23, 1
      %s29 = ssub.s32 %s23, 2
      %s30 = sadd.s32 %s23, 1
      %s31 = sld [smem:[#allocation4 + %s23]]
      %s32 = sld [smem:[#allocation4 + %s30]]
      %s33 = ssub.s32 %s31, %s32
      %p34 = scmp.eq.s32.totalorder %s33, 0
      %s36 = sadd.s32 %s35, 1
      %s37 = scalar_select %p34, %s35, %s36
      %p40 = pneg %p34
      %p41 = scmp.eq.s32.totalorder %s23, 2
      %p42 = por %p40, %p41
      %p43 = scmp.ne.s32.totalorder %s35, %s38
      %p44 = scmp.eq.s32.totalorder %s23, 0
      %p45 = por %p43, %p44
      %p46 = scmp.ne.s32.totalorder %s35, %s38
      %p47 = scmp.eq.s32.totalorder %s28, 2
      %p48 = por %p46, %p47
      %p49 = scmp.ne.s32.totalorder %s38, %s39
      %p50 = scmp.eq.s32.totalorder %s28, 0
      %p51 = por %p49, %p50
      %p52 = scmp.ne.s32.totalorder %s38, %s39
      %p53 = scmp.eq.s32.totalorder %s29, 2
      %p54 = por %p52, %p53
      %p56 = scmp.ne.s32.totalorder %s39, %s55
      %p57 = scmp.eq.s32.totalorder %s29, 0
      %p58 = por %p56, %p57
      %s59 = sld [smem:[#allocation4 + %s23]]
      %s60 = sld [smem:[#allocation4 + %s30]]
      %s61 = ssub.s32 %s59, %s60
      %p62 = scmp.eq.s32.totalorder %s61, 0
      %s64 = sadd.s32 %s63, 1
      %s65 = scalar_select %p62, %s63, %s64
      %p68 = pneg %p62
      %p69 = scmp.eq.s32.totalorder %s23, 2
      %p70 = por %p68, %p69
      %p71 = scmp.ne.s32.totalorder %s63, %s66
      %p72 = scmp.eq.s32.totalorder %s23, 0
      %p73 = por %p71, %p72
      %p74 = scmp.ne.s32.totalorder %s63, %s66
      %p75 = scmp.eq.s32.totalorder %s28, 2
      %p76 = por %p74, %p75
      %p77 = scmp.ne.s32.totalorder %s66, %s67
      %p78 = scmp.eq.s32.totalorder %s28, 0
      %p79 = por %p77, %p78
      %p80 = scmp.ne.s32.totalorder %s66, %s67
      %p81 = scmp.eq.s32.totalorder %s29, 2
      %p82 = por %p80, %p81
      %p84 = scmp.ne.s32.totalorder %s67, %s83
      %p85 = scmp.eq.s32.totalorder %s29, 0
      %p86 = por %p84, %p85
      %s87 = ssub.s32 %s23, %s30
      %p88 = scmp.eq.s32.totalorder %s87, 0
      %s90 = sadd.s32 %s89, 1
      %s91 = scalar_select %p88, %s89, %s90
      %p94 = pneg %p88
      %p95 = scmp.eq.s32.totalorder %s23, 2
      %p96 = por %p94, %p95
      %p97 = scmp.ne.s32.totalorder %s89, %s92
      %p98 = scmp.eq.s32.totalorder %s23, 0
      %p99 = por %p97, %p98
      %p100 = scmp.ne.s32.totalorder %s89, %s92
      %p101 = scmp.eq.s32.totalorder %s28, 2
      %p102 = por %p100, %p101
      %p103 = scmp.ne.s32.totalorder %s92, %s93
      %p104 = scmp.eq.s32.totalorder %s28, 0
      %p105 = por %p103, %p104
      %p106 = scmp.ne.s32.totalorder %s92, %s93
      %p107 = scmp.eq.s32.totalorder %s29, 2
      %p108 = por %p106, %p107
      %p110 = scmp.ne.s32.totalorder %s93, %s109
      %p111 = scmp.eq.s32.totalorder %s29, 0
      %p112 = por %p110, %p111
      %s113 = ssub.s32 %s23, %s30
      %p114 = scmp.eq.s32.totalorder %s113, 0
      %s116 = sadd.s32 %s115, 1
      %s117 = scalar_select %p114, %s115, %s116
      %p120 = pneg %p114
      %p121 = scmp.eq.s32.totalorder %s23, 2
      %p122 = por %p120, %p121
      %p123 = scmp.ne.s32.totalorder %s115, %s118
      %p124 = scmp.eq.s32.totalorder %s23, 0
      %p125 = por %p123, %p124
      %p126 = scmp.ne.s32.totalorder %s115, %s118
      %p127 = scmp.eq.s32.totalorder %s28, 2
      %p128 = por %p126, %p127
      %p129 = scmp.ne.s32.totalorder %s118, %s119
      %p130 = scmp.eq.s32.totalorder %s28, 0
      %p131 = por %p129, %p130
      %p132 = scmp.ne.s32.totalorder %s118, %s119
      %p133 = scmp.eq.s32.totalorder %s29, 2
      %p134 = por %p132, %p133
      %p136 = scmp.ne.s32.totalorder %s119, %s135
      %p137 = scmp.eq.s32.totalorder %s29, 0
      %p138 = por %p136, %p137
      %s139 = ssub.s32 %s23, %s30
      %p140 = scmp.eq.s32.totalorder %s139, 0
      %s142 = sadd.s32 %s141, 1
      %s143 = scalar_select %p140, %s141, %s142
      %p146 = pneg %p140
      %p147 = scmp.eq.s32.totalorder %s23, 2
      %p148 = por %p146, %p147
      %p149 = scmp.ne.s32.totalorder %s141, %s144
      %p150 = scmp.eq.s32.totalorder %s23, 0
      %p151 = por %p149, %p150
      %p152 = scmp.ne.s32.totalorder %s141, %s144
      %p153 = scmp.eq.s32.totalorder %s28, 2
      %p154 = por %p152, %p153
      %p155 = scmp.ne.s32.totalorder %s144, %s145
      %p156 = scmp.eq.s32.totalorder %s28, 0
      %p157 = por %p155, %p156
      %p158 = scmp.ne.s32.totalorder %s144, %s145
      %p159 = scmp.eq.s32.totalorder %s29, 2
      %p160 = por %p158, %p159
      %p162 = scmp.ne.s32.totalorder %s145, %s161
      %p163 = scmp.eq.s32.totalorder %s29, 0
      %p164 = por %p162, %p163
      %p165 = scmp.le.s32.totalorder 1, %s23
      %p166 = scmp.lt.s32.totalorder %s23, 4
      %p167 = pnand %p165, %p166
      %p168 = pneg %p167
      // Predicated region
      $region9: #{tpu_custom_call.1} parent=5 // pred_check
        _
      $region10: #{tpu_custom_call.1} parent=5 // pred_check_branch
        %170 = sbr.rel (%p167) target = $region12
      $region11: #{tpu_custom_call.1} parent=5 // pred_region
        %s171 = ssub.s32 %s23, 1
      $region12: #{tpu_custom_call.1} parent=5 // pred_fallthru
        _
      %p172 = scmp.lt.s32.totalorder %s23, 3
      // Predicated region
      $region13: #{tpu_custom_call.1} parent=5 // pred_check
        %p173 = pneg %p172
      $region14: #{tpu_custom_call.1} parent=5 // pred_check_branch
        %175 = sbr.rel (%p173) target = $region16
      $region15: #{tpu_custom_call.1} parent=5 // pred_region
        // Predicated region
        $region17: #{tpu_custom_call.1} parent=15 // pred_check
          %p176 = pneg %p45
        $region18: #{tpu_custom_call.1} parent=15 // pred_check_branch
          %178 = sbr.rel (%p176) target = $region20
        $region19: #{tpu_custom_call.1} parent=15 // pred_region
          %s179 = sld [smem:[#allocation4 + %s23]]
          %p180 = scmp.lt.s32.totalorder %s179, 2
          %s181 = scalar_select %p180, %s179, 2
          %s182 = smul.addr %s181, 16
          %s183 = smul.addr %s182, 8
          %s184 = scalar_lea.vmem %s1, %s183
          %s185 = sld [smem:[#allocation4 + %s23]]
        $region20: #{tpu_custom_call.1} parent=15 // pred_fallthru
          _
        // Predicated region
        $region21: #{tpu_custom_call.1} parent=15 // pred_check
          %p186 = pneg %p73
        $region22: #{tpu_custom_call.1} parent=15 // pred_check_branch
          %188 = sbr.rel (%p186) target = $region24
        $region23: #{tpu_custom_call.1} parent=15 // pred_region
          %s189 = sand.u32 %s63, 1
          %s190 = scalar_lea.sflag [#allocation6], %s189
          %s191 = sand.u32 %s63, 1
          %s192 = smul.addr %s191, 32
          %s193 = scalar_lea.vmem [#allocation5], %s192
          %s194 = sld [smem:[#allocation4 + %s23]]
          %s196 = ssub.s32 512, 512
          %197 = vsyncadd %s190, %s196
          %s198 = smul.addr %s194, 4
          %s199 = smul.addr %s198, 128
          %s200 = scalar_lea.hbm %s2, %s199
          %s201 = sshll.u32 %s193, 4
          %s202 = int_to_ptr.vmem [resolvable:$true] %s201
          %207 = dma.hbm_to_vmem [thread:$0]  %s200, 512, %s202, %s190, 128, 128, 8
        $region24: #{tpu_custom_call.1} parent=15 // pred_fallthru
          _
        // Predicated region
        $region25: #{tpu_custom_call.1} parent=15 // pred_check
          %p208 = pneg %p99
        $region26: #{tpu_custom_call.1} parent=15 // pred_check_branch
          %210 = sbr.rel (%p208) target = $region28
        $region27: #{tpu_custom_call.1} parent=15 // pred_region
          %p211 = scmp.lt.s32.totalorder %s23, 2
          %s212 = scalar_select %p211, %s23, 2
          %s213 = smul.addr %s212, 16
          %s214 = smul.addr %s213, 8
          %s215 = scalar_lea.vmem %s3, %s214
        $region28: #{tpu_custom_call.1} parent=15 // pred_fallthru
          _
        // Predicated region
        $region29: #{tpu_custom_call.1} parent=15 // pred_check
          %p216 = pneg %p125
        $region30: #{tpu_custom_call.1} parent=15 // pred_check_branch
          %218 = sbr.rel (%p216) target = $region32
        $region31: #{tpu_custom_call.1} parent=15 // pred_region
          %p219 = scmp.lt.s32.totalorder %s23, 2
          %s220 = scalar_select %p219, %s23, 2
          %s221 = smul.addr %s220, 8
          %s222 = scalar_lea.vmem %s4, %s221
        $region32: #{tpu_custom_call.1} parent=15 // pred_fallthru
          _
      $region16: #{tpu_custom_call.1} parent=5 // pred_fallthru
        _
      %p223 = scmp.le.s32.totalorder 1, %s23
      %p224 = scmp.lt.s32.totalorder %s23, 4
      %p225 = pnand %p223, %p224
      %p226 = pneg %p225
      // Predicated region
      $region33: #{tpu_custom_call.1} parent=5 // pred_check
        _
      $region34: #{tpu_custom_call.1} parent=5 // pred_check_branch
        %228 = sbr.rel (%p225) target = $region36
      $region35: #{tpu_custom_call.1} parent=5 // pred_region
        %s229 = ssub.s32 %s23, 1
        %s230 = sand.u32 %s66, 1
        %s231 = scalar_lea.sflag [#allocation6], %s230
        %s232 = sand.u32 %s66, 1
        %s233 = smul.addr %s232, 32
        %s234 = scalar_lea.vmem [#allocation5], %s233
        // Predicated region
        $region37: #{tpu_custom_call.1} parent=35 // pred_check
          %p235 = pneg %p79
        $region38: #{tpu_custom_call.1} parent=35 // pred_check_branch
          %237 = sbr.rel (%p235) target = $region40
        $region39: #{tpu_custom_call.1} parent=35 // pred_region
          %238 = dma.done %s231, 512
        $region40: #{tpu_custom_call.1} parent=35 // pred_fallthru
          _
        %s239 = sld [smem:[#allocation4 + %s28]]
        %p240 = scmp.lt.s32.totalorder %s239, 2
        %s241 = scalar_select %p240, %s239, 2
        %s242 = smul.addr %s241, 16
        %s243 = smul.addr %s242, 8
        %s244 = scalar_lea.vmem %s1, %s243
        %p245 = pneg %p51
        %p246 = pneg %p48
        %s247 = sand.u32 %s66, 1
        %s248 = scalar_lea.sflag [#allocation6], %s247
        %s249 = sand.u32 %s66, 1
        %s250 = smul.addr %s249, 32
        %s251 = scalar_lea.vmem [#allocation5], %s250
        %p252 = pneg %p79
        %p253 = pneg %p76
        %p254 = scmp.lt.s32.totalorder %s28, 2
        %s255 = scalar_select %p254, %s28, 2
        %s256 = smul.addr %s255, 16
        %s257 = smul.addr %s256, 8
        %s258 = scalar_lea.vmem %s3, %s257
        %p259 = pneg %p105
        %p260 = pneg %p102
        %p261 = scmp.lt.s32.totalorder %s28, 2
        %s262 = scalar_select %p261, %s28, 2
        %s263 = smul.addr %s262, 8
        %s264 = scalar_lea.vmem %s4, %s263
        %p265 = pneg %p131
        %p266 = pneg %p128
        %p267 = pneg %p157
        %p268 = pneg %p154
        %s269 = sand.u32 %s144, 1
        %s270 = scalar_lea.sflag [#allocation7], %s269
        %s271 = sand.u32 %s144, 1
        %s272 = smul.addr %s271, 8
        %s273 = scalar_lea.vmem [#allocation8], %s272
        %s274 = sld [smem:[#allocation4 + %s28]]
        %p275 = scmp.lt.s32.totalorder %s274, 2
        %s276 = scalar_select %p275, %s274, 2
        %s277 = smul.addr %s276, 16
        %s278 = smul.addr %s277, 8
        %s279 = scalar_lea.vmem %s1, %s278
        %s280 = sld [smem:[#allocation4 + %s28]]
        %s281 = sld [smem:[#allocation4 + %s28]]
        %p282 = scmp.lt.s32.totalorder %s28, 2
        %s283 = scalar_select %p282, %s28, 2
        %s284 = smul.addr %s283, 16
        %s285 = smul.addr %s284, 8
        %s286 = scalar_lea.vmem %s3, %s285
        %p287 = scmp.lt.s32.totalorder %s28, 2
        %s288 = scalar_select %p287, %s28, 2
        %s289 = smul.addr %s288, 8
        %s290 = scalar_lea.vmem %s4, %s289
        %v291 = vld [vmem:[%s286] sm:$0xff]
        %v292 = vld [vmem:[%s286 + $0x8] sm:$0xff]
        %v293 = vld [vmem:[%s286 + $0x10] sm:$0xff]
        %v294 = vld [vmem:[%s286 + $0x18] sm:$0xff]
        %v295 = vld [vmem:[%s286 + $0x20] sm:$0xff]
        %v296 = vld [vmem:[%s286 + $0x28] sm:$0xff]
        %v297 = vld [vmem:[%s286 + $0x30] sm:$0xff]
        %v298 = vld [vmem:[%s286 + $0x38] sm:$0xff]
        %v299 = vld [vmem:[%s286 + $0x40] sm:$0xff]
        %v300 = vld [vmem:[%s286 + $0x48] sm:$0xff]
        %v301 = vld [vmem:[%s286 + $0x50] sm:$0xff]
        %v302 = vld [vmem:[%s286 + $0x58] sm:$0xff]
        %v303 = vld [vmem:[%s286 + $0x60] sm:$0xff]
        %v304 = vld [vmem:[%s286 + $0x68] sm:$0xff]
        %v305 = vld [vmem:[%s286 + $0x70] sm:$0xff]
        %v306 = vld [vmem:[%s286 + $0x78] sm:$0xff]
        %v307 = vlaneseq
        %v308 = vand.u32 %v307, 127
        %309 = vset.pattern.permute.xlu0 0
        %310 = vperm.xlu0 %309, %v291
        %v311 = vpop.permute.xlu0 %310
        %312 = vset.pattern.permute.xlu0 0
        %313 = vperm.xlu0 %312, %v292
        %v314 = vpop.permute.xlu0 %313
        %315 = vset.pattern.permute.xlu0 0
        %316 = vperm.xlu0 %315, %v293
        %v317 = vpop.permute.xlu0 %316
        %318 = vset.pattern.permute.xlu0 0
        %319 = vperm.xlu0 %318, %v294
        %v320 = vpop.permute.xlu0 %319
        %321 = vset.pattern.permute.xlu0 0
        %322 = vperm.xlu0 %321, %v295
        %v323 = vpop.permute.xlu0 %322
        %324 = vset.pattern.permute.xlu0 0
        %325 = vperm.xlu0 %324, %v296
        %v326 = vpop.permute.xlu0 %325
        %327 = vset.pattern.permute.xlu0 0
        %328 = vperm.xlu0 %327, %v297
        %v329 = vpop.permute.xlu0 %328
        %330 = vset.pattern.permute.xlu0 0
        %331 = vperm.xlu0 %330, %v298
        %v332 = vpop.permute.xlu0 %331
        %333 = vset.pattern.permute.xlu0 0
        %334 = vperm.xlu0 %333, %v299
        %v335 = vpop.permute.xlu0 %334
        %336 = vset.pattern.permute.xlu0 0
        %337 = vperm.xlu0 %336, %v300
        %v338 = vpop.permute.xlu0 %337
        %339 = vset.pattern.permute.xlu0 0
        %340 = vperm.xlu0 %339, %v301
        %v341 = vpop.permute.xlu0 %340
        %342 = vset.pattern.permute.xlu0 0
        %343 = vperm.xlu0 %342, %v302
        %v344 = vpop.permute.xlu0 %343
        %345 = vset.pattern.permute.xlu0 0
        %346 = vperm.xlu0 %345, %v303
        %v347 = vpop.permute.xlu0 %346
        %348 = vset.pattern.permute.xlu0 0
        %349 = vperm.xlu0 %348, %v304
        %v350 = vpop.permute.xlu0 %349
        %351 = vset.pattern.permute.xlu0 0
        %352 = vperm.xlu0 %351, %v305
        %v353 = vpop.permute.xlu0 %352
        %354 = vset.pattern.permute.xlu0 0
        %355 = vperm.xlu0 %354, %v306
        %v356 = vpop.permute.xlu0 %355
        %vm357 = vcmp.eq.s32.totalorder %v308, %v311
        %vm358 = vcmp.eq.s32.totalorder %v308, %v314
        %vm359 = vcmp.eq.s32.totalorder %v308, %v317
        %vm360 = vcmp.eq.s32.totalorder %v308, %v320
        %vm361 = vcmp.eq.s32.totalorder %v308, %v323
        %vm362 = vcmp.eq.s32.totalorder %v308, %v326
        %vm363 = vcmp.eq.s32.totalorder %v308, %v329
        %vm364 = vcmp.eq.s32.totalorder %v308, %v332
        %vm365 = vcmp.eq.s32.totalorder %v308, %v335
        %vm366 = vcmp.eq.s32.totalorder %v308, %v338
        %vm367 = vcmp.eq.s32.totalorder %v308, %v341
        %vm368 = vcmp.eq.s32.totalorder %v308, %v344
        %vm369 = vcmp.eq.s32.totalorder %v308, %v347
        %vm370 = vcmp.eq.s32.totalorder %v308, %v350
        %vm371 = vcmp.eq.s32.totalorder %v308, %v353
        %vm372 = vcmp.eq.s32.totalorder %v308, %v356
        %v373 = vsel %vm357, 1, 0
        %v374 = vsel %vm358, 1, 0
        %v375 = vsel %vm359, 1, 0
        %v376 = vsel %vm360, 1, 0
        %v377 = vsel %vm361, 1, 0
        %v378 = vsel %vm362, 1, 0
        %v379 = vsel %vm363, 1, 0
        %v380 = vsel %vm364, 1, 0
        %v381 = vsel %vm365, 1, 0
        %v382 = vsel %vm366, 1, 0
        %v383 = vsel %vm367, 1, 0
        %v384 = vsel %vm368, 1, 0
        %v385 = vsel %vm369, 1, 0
        %v386 = vsel %vm370, 1, 0
        %v387 = vsel %vm371, 1, 0
        %v388 = vsel %vm372, 1, 0
        %v389 = vcvt.s32.f32 %v373
        %v390 = vcvt.s32.f32 %v374
        %v391 = vcvt.s32.f32 %v375
        %v392 = vcvt.s32.f32 %v376
        %v393 = vcvt.s32.f32 %v377
        %v394 = vcvt.s32.f32 %v378
        %v395 = vcvt.s32.f32 %v379
        %v396 = vcvt.s32.f32 %v380
        %v397 = vcvt.s32.f32 %v381
        %v398 = vcvt.s32.f32 %v382
        %v399 = vcvt.s32.f32 %v383
        %v400 = vcvt.s32.f32 %v384
        %v401 = vcvt.s32.f32 %v385
        %v402 = vcvt.s32.f32 %v386
        %v403 = vcvt.s32.f32 %v387
        %v404 = vcvt.s32.f32 %v388
        %v405 = vld [vmem:[%s279] sm:$0xff]
        %v406 = vld [vmem:[%s279 + $0x8] sm:$0xff]
        %v407 = vld [vmem:[%s279 + $0x10] sm:$0xff]
        %v408 = vld [vmem:[%s279 + $0x18] sm:$0xff]
        %v409 = vld [vmem:[%s279 + $0x20] sm:$0xff]
        %v410 = vld [vmem:[%s279 + $0x28] sm:$0xff]
        %v411 = vld [vmem:[%s279 + $0x30] sm:$0xff]
        %v412 = vld [vmem:[%s279 + $0x38] sm:$0xff]
        %v413 = vld [vmem:[%s279 + $0x40] sm:$0xff]
        %v414 = vld [vmem:[%s279 + $0x48] sm:$0xff]
        %v415 = vld [vmem:[%s279 + $0x50] sm:$0xff]
        %v416 = vld [vmem:[%s279 + $0x58] sm:$0xff]
        %v417 = vld [vmem:[%s279 + $0x60] sm:$0xff]
        %v418 = vld [vmem:[%s279 + $0x68] sm:$0xff]
        %v419 = vld [vmem:[%s279 + $0x70] sm:$0xff]
        %v420 = vld [vmem:[%s279 + $0x78] sm:$0xff]
        %421 = vmatprep.subr.mxu0 0.0
        %422 = vmatpush1.msra.mxu0 %v405
        %423 = vmatprep.subr.mxu0 0.0
        %424 = vmatpush1.msra.mxu0 %v406
        %425 = vmatprep.subr.mxu0 0.0
        %426 = vmatpush1.msra.mxu0 %v407
        %427 = vmatprep.subr.mxu0 0.0
        %428 = vmatpush1.msra.mxu0 %v408
        %429 = vmatprep.subr.mxu0 0.0
        %430 = vmatpush1.msra.mxu0 %v409
        %431 = vmatprep.subr.mxu0 0.0
        %432 = vmatpush1.msra.mxu0 %v410
        %433 = vmatprep.subr.mxu0 0.0
        %434 = vmatpush1.msra.mxu0 %v411
        %435 = vmatprep.subr.mxu0 0.0
        %436 = vmatpush1.msra.mxu0 %v412
        %437 = vmatprep.subr.mxu0 0.0
        %438 = vmatpush1.msra.mxu0 %v413
        %439 = vmatprep.subr.mxu0 0.0
        %440 = vmatpush1.msra.mxu0 %v414
        %441 = vmatprep.subr.mxu0 0.0
        %442 = vmatpush1.msra.mxu0 %v415
        %443 = vmatprep.subr.mxu0 0.0
        %444 = vmatpush1.msra.mxu0 %v416
        %445 = vmatprep.subr.mxu0 0.0
        %446 = vmatpush1.msra.mxu0 %v417
        %447 = vmatprep.subr.mxu0 0.0
        %448 = vmatpush1.msra.mxu0 %v418
        %449 = vmatprep.subr.mxu0 0.0
        %450 = vmatpush1.msra.mxu0 %v419
        %451 = vmatprep.subr.mxu0 0.0
        %452 = vmatpush1.msra.mxu0 %v420
        %453 = vmatprep.subr.mxu0 0.0
        %454 = vmatpush1.msra.mxu0 0.0
        %455 = vmatprep.subr.mxu0 0.0
        %456 = vmatpush1.msra.mxu0 0.0
        %457 = vmatprep.subr.mxu0 0.0
        %458 = vmatpush1.msra.mxu0 0.0
        %459 = vmatprep.subr.mxu0 0.0
        %460 = vmatpush1.msra.mxu0 0.0
        %461 = vmatprep.subr.mxu0 0.0
        %462 = vmatpush1.msra.mxu0 0.0
        %463 = vmatprep.subr.mxu0 0.0
        %464 = vmatpush1.msra.mxu0 0.0
        %465 = vmatprep.subr.mxu0 0.0
        %466 = vmatpush1.msra.mxu0 0.0
        %467 = vmatprep.subr.mxu0 0.0
        %468 = vmatpush1.msra.mxu0 0.0
        %469 = vmatprep.subr.mxu0 0.0
        %470 = vmatpush1.msra.mxu0 0.0
        %471 = vmatprep.subr.mxu0 0.0
        %472 = vmatpush1.msra.mxu0 0.0
        %473 = vmatprep.subr.mxu0 0.0
        %474 = vmatpush1.msra.mxu0 0.0
        %475 = vmatprep.subr.mxu0 0.0
        %476 = vmatpush1.msra.mxu0 0.0
        %477 = vmatprep.subr.mxu0 0.0
        %478 = vmatpush1.msra.mxu0 0.0
        %479 = vmatprep.subr.mxu0 0.0
        %480 = vmatpush1.msra.mxu0 0.0
        %481 = vmatprep.subr.mxu0 0.0
        %482 = vmatpush1.msra.mxu0 0.0
        %483 = vmatprep.subr.mxu0 0.0
        %484 = vmatpush1.msra.mxu0 0.0
        %485 = vmatprep.mubr.f32.mxu0 0.0
        %486 = vmatmul.mubr.f32.gmra.mrb[0].mxu0 %v389
        %v487 = vpop.f32.mrb[0].mxu0
        %v488 = vadd.f32 0.0, %v487
        %v489 = vpop.f32.mrb[0].mxu0
        %490 = vmatprep.mubr.f32.mxu0 0.0
        %491 = vmatmul.mubr.f32.gmra.mrb[0].mxu0 %v390
        %v492 = vpop.f32.mrb[0].mxu0
        %v493 = vadd.f32 0.0, %v492
        %v494 = vpop.f32.mrb[0].mxu0
        %495 = vmatprep.mubr.f32.mxu0 0.0
        %496 = vmatmul.mubr.f32.gmra.mrb[0].mxu0 %v391
        %v497 = vpop.f32.mrb[0].mxu0
        %v498 = vadd.f32 0.0, %v497
        %v499 = vpop.f32.mrb[0].mxu0
        %500 = vmatprep.mubr.f32.mxu0 0.0
        %501 = vmatmul.mubr.f32.gmra.mrb[0].mxu0 %v392
        %v502 = vpop.f32.mrb[0].mxu0
        %v503 = vadd.f32 0.0, %v502
        %v504 = vpop.f32.mrb[0].mxu0
        %505 = vmatprep.mubr.f32.mxu0 0.0
        %506 = vmatmul.mubr.f32.gmra.mrb[0].mxu0 %v393
        %v507 = vpop.f32.mrb[0].mxu0
        %v508 = vadd.f32 0.0, %v507
        %v509 = vpop.f32.mrb[0].mxu0
        %510 = vmatprep.mubr.f32.mxu0 0.0
        %511 = vmatmul.mubr.f32.gmra.mrb[0].mxu0 %v394
        %v512 = vpop.f32.mrb[0].mxu0
        %v513 = vadd.f32 0.0, %v512
        %v514 = vpop.f32.mrb[0].mxu0
        %515 = vmatprep.mubr.f32.mxu0 0.0
        %516 = vmatmul.mubr.f32.gmra.mrb[0].mxu0 %v395
        %v517 = vpop.f32.mrb[0].mxu0
        %v518 = vadd.f32 0.0, %v517
        %v519 = vpop.f32.mrb[0].mxu0
        %520 = vmatprep.mubr.f32.mxu0 0.0
        %521 = vmatmul.mubr.f32.gmra.mrb[0].mxu0 %v396
        %v522 = vpop.f32.mrb[0].mxu0
        %v523 = vadd.f32 0.0, %v522
        %v524 = vpop.f32.mrb[0].mxu0
        %525 = vmatprep.mubr.f32.mxu0 0.0
        %526 = vmatmul.mubr.f32.gmra.mrb[0].mxu0 %v397
        %v527 = vpop.f32.mrb[0].mxu0
        %v528 = vadd.f32 0.0, %v527
        %v529 = vpop.f32.mrb[0].mxu0
        %530 = vmatprep.mubr.f32.mxu0 0.0
        %531 = vmatmul.mubr.f32.gmra.mrb[0].mxu0 %v398
        %v532 = vpop.f32.mrb[0].mxu0
        %v533 = vadd.f32 0.0, %v532
        %v534 = vpop.f32.mrb[0].mxu0
        %535 = vmatprep.mubr.f32.mxu0 0.0
        %536 = vmatmul.mubr.f32.gmra.mrb[0].mxu0 %v399
        %v537 = vpop.f32.mrb[0].mxu0
        %v538 = vadd.f32 0.0, %v537
        %v539 = vpop.f32.mrb[0].mxu0
        %540 = vmatprep.mubr.f32.mxu0 0.0
        %541 = vmatmul.mubr.f32.gmra.mrb[0].mxu0 %v400
        %v542 = vpop.f32.mrb[0].mxu0
        %v543 = vadd.f32 0.0, %v542
        %v544 = vpop.f32.mrb[0].mxu0
        %545 = vmatprep.mubr.f32.mxu0 0.0
        %546 = vmatmul.mubr.f32.gmra.mrb[0].mxu0 %v401
        %v547 = vpop.f32.mrb[0].mxu0
        %v548 = vadd.f32 0.0, %v547
        %v549 = vpop.f32.mrb[0].mxu0
        %550 = vmatprep.mubr.f32.mxu0 0.0
        %551 = vmatmul.mubr.f32.gmra.mrb[0].mxu0 %v402
        %v552 = vpop.f32.mrb[0].mxu0
        %v553 = vadd.f32 0.0, %v552
        %v554 = vpop.f32.mrb[0].mxu0
        %555 = vmatprep.mubr.f32.mxu0 0.0
        %556 = vmatmul.mubr.f32.gmra.mrb[0].mxu0 %v403
        %v557 = vpop.f32.mrb[0].mxu0
        %v558 = vadd.f32 0.0, %v557
        %v559 = vpop.f32.mrb[0].mxu0
        %560 = vmatprep.mubr.f32.mxu0 0.0
        %561 = vmatmul.mubr.f32.gmra.mrb[0].mxu0 %v404
        %v562 = vpop.f32.mrb[0].mxu0
        %v563 = vadd.f32 0.0, %v562
        %v564 = vpop.f32.mrb[0].mxu0
        %565 = vdwg.mxu0
        %566 = vst [vmem:[#allocation2] sm:$0xff] %v488
        %567 = vst [vmem:[#allocation2 + $0x8] sm:$0xff] %v493
        %568 = vst [vmem:[#allocation2 + $0x10] sm:$0xff] %v498
        %569 = vst [vmem:[#allocation2 + $0x18] sm:$0xff] %v503
        %570 = vst [vmem:[#allocation2 + $0x20] sm:$0xff] %v508
        %571 = vst [vmem:[#allocation2 + $0x28] sm:$0xff] %v513
        %572 = vst [vmem:[#allocation2 + $0x30] sm:$0xff] %v518
        %573 = vst [vmem:[#allocation2 + $0x38] sm:$0xff] %v523
        %574 = vst [vmem:[#allocation2 + $0x40] sm:$0xff] %v528
        %575 = vst [vmem:[#allocation2 + $0x48] sm:$0xff] %v533
        %576 = vst [vmem:[#allocation2 + $0x50] sm:$0xff] %v538
        %577 = vst [vmem:[#allocation2 + $0x58] sm:$0xff] %v543
        %578 = vst [vmem:[#allocation2 + $0x60] sm:$0xff] %v548
        %579 = vst [vmem:[#allocation2 + $0x68] sm:$0xff] %v553
        %580 = vst [vmem:[#allocation2 + $0x70] sm:$0xff] %v558
        %581 = vst [vmem:[#allocation2 + $0x78] sm:$0xff] %v563
        %v582 = vld [vmem:[%s234] sm:$0xff]
        %v583 = vld [vmem:[%s234 + $0x8] sm:$0xff]
        %v584 = vld [vmem:[%s234 + $0x10] sm:$0xff]
        %v585 = vld [vmem:[%s234 + $0x18] sm:$0xff]
        %v586 = vld [vmem:[%s290] sm:$0xff]
        %v587 = vld [vmem:[#allocation2] sm:$0xff]
        %vm588 = vcmask 261120
        %v590 = vsel %vm588, 0.0, 0
        %592 = vmatprep.subr.mxu0 0.0
        %593 = vmatpush1.msra.mxu0 %v582
        %594 = vmatprep.subr.mxu0 0.0
        %595 = vmatpush1.msra.mxu0 %v583
        %596 = vmatprep.subr.mxu0 0.0
        %597 = vmatpush1.msra.mxu0 %v584
        %598 = vmatprep.subr.mxu0 0.0
        %599 = vmatpush1.msra.mxu0 %v585
        %600 = vmatprep.subr.mxu0 0.0
        %601 = vmatpush1.msra.mxu0 0.0
        %602 = vmatprep.subr.mxu0 0.0
        %603 = vmatpush1.msra.mxu0 0.0
        %604 = vmatprep.subr.mxu0 0.0
        %605 = vmatpush1.msra.mxu0 0.0
        %606 = vmatprep.subr.mxu0 0.0
        %607 = vmatpush1.msra.mxu0 0.0
        %608 = vmatprep.subr.mxu0 0.0
        %609 = vmatpush1.msra.mxu0 0.0
        %610 = vmatprep.subr.mxu0 0.0
        %611 = vmatpush1.msra.mxu0 0.0
        %612 = vmatprep.subr.mxu0 0.0
        %613 = vmatpush1.msra.mxu0 0.0
        %614 = vmatprep.subr.mxu0 0.0
        %615 = vmatpush1.msra.mxu0 0.0
        %616 = vmatprep.subr.mxu0 0.0
        %617 = vmatpush1.msra.mxu0 0.0
        %618 = vmatprep.subr.mxu0 0.0
        %619 = vmatpush1.msra.mxu0 0.0
        %620 = vmatprep.subr.mxu0 0.0
        %621 = vmatpush1.msra.mxu0 0.0
        %622 = vmatprep.subr.mxu0 0.0
        %623 = vmatpush1.msra.mxu0 0.0
        %624 = vmatprep.subr.mxu0 0.0
        %625 = vmatpush1.msra.mxu0 0.0
        %626 = vmatprep.subr.mxu0 0.0
        %627 = vmatpush1.msra.mxu0 0.0
        %628 = vmatprep.subr.mxu0 0.0
        %629 = vmatpush1.msra.mxu0 0.0
        %630 = vmatprep.subr.mxu0 0.0
        %631 = vmatpush1.msra.mxu0 0.0
        %632 = vmatprep.subr.mxu0 0.0
        %633 = vmatpush1.msra.mxu0 0.0
        %634 = vmatprep.subr.mxu0 0.0
        %635 = vmatpush1.msra.mxu0 0.0
        %636 = vmatprep.subr.mxu0 0.0
        %637 = vmatpush1.msra.mxu0 0.0
        %638 = vmatprep.subr.mxu0 0.0
        %639 = vmatpush1.msra.mxu0 0.0
        %640 = vmatprep.subr.mxu0 0.0
        %641 = vmatpush1.msra.mxu0 0.0
        %642 = vmatprep.subr.mxu0 0.0
        %643 = vmatpush1.msra.mxu0 0.0
        %644 = vmatprep.subr.mxu0 0.0
        %645 = vmatpush1.msra.mxu0 0.0
        %646 = vmatprep.subr.mxu0 0.0
        %647 = vmatpush1.msra.mxu0 0.0
        %648 = vmatprep.subr.mxu0 0.0
        %649 = vmatpush1.msra.mxu0 0.0
        %650 = vmatprep.subr.mxu0 0.0
        %651 = vmatpush1.msra.mxu0 0.0
        %652 = vmatprep.subr.mxu0 0.0
        %653 = vmatpush1.msra.mxu0 0.0
        %654 = vmatprep.subr.mxu0 0.0
        %655 = vmatpush1.msra.mxu0 0.0
        %656 = vmatprep.mubr.f32.mxu0 0.0
        %657 = vmatmul.mubr.f32.gmra.mrb[0].mxu0 %v590
        %v658 = vpop.f32.mrb[0].mxu0
        %v659 = vadd.f32 0.0, %v658
        %v660 = vpop.f32.mrb[0].mxu0
        %661 = vdwg.mxu0
        %v662 = vadd.f32 %v587, %v659
        %v663 = vxor.u32 %v662, 2147483648
        %v664 = vmul.f32 %v663, 1.442695
        %v665 = vpow.pop %v664
        %v666 = vadd.f32 %v665, 1.0
        %v667 = vrcp.pop %v666
        %v668 = vmul.f32 1.0, %v667
        %v669 = vtanh.pop %v662
        %v670 = vmul.f32 %v668, 0.0
        %672 = vrot.lane.b32.xlu0 %v669, 64
        %v673 = vpop.permute.xlu0 %672
        %v675 = vmul.f32 %v668, %v673
        %677 = vrot.lane.b32.xlu0 %v675, 32
        %v678 = vpop.permute.xlu0 %677
        %v680 = vadd.f32 %v670, %v678
        %v681 = vtanh.pop %v680
        %683 = vrot.lane.b32.xlu0 %v681, 64
        %v684 = vpop.permute.xlu0 %683
        %v686 = vmul.f32 %v668, %v684
        %vm687 = vcmp.gt.s32.totalorder %v586, 0
        %v688 = vsel %vm687, 1, 0
        %v689 = vcvt.s32.f32 %v688
        %691 = vset.pattern.permute.xlu0 0
        %692 = vperm.xlu0 %691, %v689
        %v693 = vpop.permute.xlu0 %692
        %v695 = vmul.f32 %v693, %v686
        %v696 = vadd.f32 %v695, 0.0
        %v697 = vmul.f32 %v693, %v680
        %v698 = vadd.f32 %v697, 0.0
        %s699 = scalar_lea.vmem [#allocation2], 8
        %v700 = vld [vmem:[%s699] sm:$0xff]
        %702 = vrot.lane.b32.xlu0 %v696, 32
        %v703 = vpop.permute.xlu0 %702
        %v704 = vsel %vm588, %v703, 0
        %706 = vmatprep.subr.mxu0 0.0
        %707 = vmatpush1.msra.mxu0 %v582
        %708 = vmatprep.subr.mxu0 0.0
        %709 = vmatpush1.msra.mxu0 %v583
        %710 = vmatprep.subr.mxu0 0.0
        %711 = vmatpush1.msra.mxu0 %v584
        %712 = vmatprep.subr.mxu0 0.0
        %713 = vmatpush1.msra.mxu0 %v585
        %714 = vmatprep.subr.mxu0 0.0
        %715 = vmatpush1.msra.mxu0 0.0
        %716 = vmatprep.subr.mxu0 0.0
        %717 = vmatpush1.msra.mxu0 0.0
        %718 = vmatprep.subr.mxu0 0.0
        %719 = vmatpush1.msra.mxu0 0.0
        %720 = vmatprep.subr.mxu0 0.0
        %721 = vmatpush1.msra.mxu0 0.0
        %722 = vmatprep.subr.mxu0 0.0
        %723 = vmatpush1.msra.mxu0 0.0
        %724 = vmatprep.subr.mxu0 0.0
        %725 = vmatpush1.msra.mxu0 0.0
        %726 = vmatprep.subr.mxu0 0.0
        %727 = vmatpush1.msra.mxu0 0.0
        %728 = vmatprep.subr.mxu0 0.0
        %729 = vmatpush1.msra.mxu0 0.0
        %730 = vmatprep.subr.mxu0 0.0
        %731 = vmatpush1.msra.mxu0 0.0
        %732 = vmatprep.subr.mxu0 0.0
        %733 = vmatpush1.msra.mxu0 0.0
        %734 = vmatprep.subr.mxu0 0.0
        %735 = vmatpush1.msra.mxu0 0.0
        %736 = vmatprep.subr.mxu0 0.0
        %737 = vmatpush1.msra.mxu0 0.0
        %738 = vmatprep.subr.mxu0 0.0
        %739 = vmatpush1.msra.mxu0 0.0
        %740 = vmatprep.subr.mxu0 0.0
        %741 = vmatpush1.msra.mxu0 0.0
        %742 = vmatprep.subr.mxu0 0.0
        %743 = vmatpush1.msra.mxu0 0.0
        %744 = vmatprep.subr.mxu0 0.0
        %745 = vmatpush1.msra.mxu0 0.0
        %746 = vmatprep.subr.mxu0 0.0
        %747 = vmatpush1.msra.mxu0 0.0
        %748 = vmatprep.subr.mxu0 0.0
        %749 = vmatpush1.msra.mxu0 0.0
        %750 = vmatprep.subr.mxu0 0.0
        %751 = vmatpush1.msra.mxu0 0.0
        %752 = vmatprep.subr.mxu0 0.0
        %753 = vmatpush1.msra.mxu0 0.0
        %754 = vmatprep.subr.mxu0 0.0
        %755 = vmatpush1.msra.mxu0 0.0
        %756 = vmatprep.subr.mxu0 0.0
        %757 = vmatpush1.msra.mxu0 0.0
        %758 = vmatprep.subr.mxu0 0.0
        %759 = vmatpush1.msra.mxu0 0.0
        %760 = vmatprep.subr.mxu0 0.0
        %761 = vmatpush1.msra.mxu0 0.0
        %762 = vmatprep.subr.mxu0 0.0
        %763 = vmatpush1.msra.mxu0 0.0
        %764 = vmatprep.subr.mxu0 0.0
        %765 = vmatpush1.msra.mxu0 0.0
        %766 = vmatprep.subr.mxu0 0.0
        %767 = vmatpush1.msra.mxu0 0.0
        %768 = vmatprep.subr.mxu0 0.0
        %769 = vmatpush1.msra.mxu0 0.0
        %770 = vmatprep.mubr.f32.mxu0 0.0
        %771 = vmatmul.mubr.f32.gmra.mrb[0].mxu0 %v704
        %v772 = vpop.f32.mrb[0].mxu0
        %v773 = vadd.f32 0.0, %v772
        %v774 = vpop.f32.mrb[0].mxu0
        %775 = vdwg.mxu0
        %v776 = vadd.f32 %v700, %v773
        %v777 = vxor.u32 %v776, 2147483648
        %v778 = vmul.f32 %v777, 1.442695
        %v779 = vpow.pop %v778
        %v780 = vadd.f32 %v779, 1.0
        %v781 = vrcp.pop %v780
        %v782 = vmul.f32 1.0, %v781
        %v783 = vtanh.pop %v776
        %v784 = vmul.f32 %v782, %v698
        %786 = vrot.lane.b32.xlu0 %v783, 64
        %v787 = vpop.permute.xlu0 %786
        %v789 = vmul.f32 %v782, %v787
        %791 = vrot.lane.b32.xlu0 %v789, 32
        %v792 = vpop.permute.xlu0 %791
        %v794 = vadd.f32 %v784, %v792
        %v795 = vtanh.pop %v794
        %797 = vrot.lane.b32.xlu0 %v795, 64
        %v798 = vpop.permute.xlu0 %797
        %v800 = vmul.f32 %v782, %v798
        %vm801 = vcmp.gt.s32.totalorder %v586, 1
        %v802 = vsel %vm801, 1, 0
        %v803 = vcvt.s32.f32 %v802
        %v804 = vsub.f32 %v800, %v696
        %806 = vset.pattern.permute.xlu0 0
        %807 = vperm.xlu0 %806, %v803
        %v808 = vpop.permute.xlu0 %807
        %v810 = vmul.f32 %v808, %v804
        %v811 = vadd.f32 %v696, %v810
        %v812 = vsub.f32 %v794, %v698
        %v813 = vmul.f32 %v808, %v812
        %v814 = vadd.f32 %v698, %v813
        %s815 = scalar_lea.vmem [#allocation2], 16
        %v816 = vld [vmem:[%s815] sm:$0xff]
        %818 = vrot.lane.b32.xlu0 %v811, 32
        %v819 = vpop.permute.xlu0 %818
        %v820 = vsel %vm588, %v819, 0
        %822 = vmatprep.subr.mxu0 0.0
        %823 = vmatpush1.msra.mxu0 %v582
        %824 = vmatprep.subr.mxu0 0.0
        %825 = vmatpush1.msra.mxu0 %v583
        %826 = vmatprep.subr.mxu0 0.0
        %827 = vmatpush1.msra.mxu0 %v584
        %828 = vmatprep.subr.mxu0 0.0
        %829 = vmatpush1.msra.mxu0 %v585
        %830 = vmatprep.subr.mxu0 0.0
        %831 = vmatpush1.msra.mxu0 0.0
        %832 = vmatprep.subr.mxu0 0.0
        %833 = vmatpush1.msra.mxu0 0.0
        %834 = vmatprep.subr.mxu0 0.0
        %835 = vmatpush1.msra.mxu0 0.0
        %836 = vmatprep.subr.mxu0 0.0
        %837 = vmatpush1.msra.mxu0 0.0
        %838 = vmatprep.subr.mxu0 0.0
        %839 = vmatpush1.msra.mxu0 0.0
        %840 = vmatprep.subr.mxu0 0.0
        %841 = vmatpush1.msra.mxu0 0.0
        %842 = vmatprep.subr.mxu0 0.0
        %843 = vmatpush1.msra.mxu0 0.0
        %844 = vmatprep.subr.mxu0 0.0
        %845 = vmatpush1.msra.mxu0 0.0
        %846 = vmatprep.subr.mxu0 0.0
        %847 = vmatpush1.msra.mxu0 0.0
        %848 = vmatprep.subr.mxu0 0.0
        %849 = vmatpush1.msra.mxu0 0.0
        %850 = vmatprep.subr.mxu0 0.0
        %851 = vmatpush1.msra.mxu0 0.0
        %852 = vmatprep.subr.mxu0 0.0
        %853 = vmatpush1.msra.mxu0 0.0
        %854 = vmatprep.subr.mxu0 0.0
        %855 = vmatpush1.msra.mxu0 0.0
        %856 = vmatprep.subr.mxu0 0.0
        %857 = vmatpush1.msra.mxu0 0.0
        %858 = vmatprep.subr.mxu0 0.0
        %859 = vmatpush1.msra.mxu0 0.0
        %860 = vmatprep.subr.mxu0 0.0
        %861 = vmatpush1.msra.mxu0 0.0
        %862 = vmatprep.subr.mxu0 0.0
        %863 = vmatpush1.msra.mxu0 0.0
        %864 = vmatprep.subr.mxu0 0.0
        %865 = vmatpush1.msra.mxu0 0.0
        %866 = vmatprep.subr.mxu0 0.0
        %867 = vmatpush1.msra.mxu0 0.0
        %868 = vmatprep.subr.mxu0 0.0
        %869 = vmatpush1.msra.mxu0 0.0
        %870 = vmatprep.subr.mxu0 0.0
        %871 = vmatpush1.msra.mxu0 0.0
        %872 = vmatprep.subr.mxu0 0.0
        %873 = vmatpush1.msra.mxu0 0.0
        %874 = vmatprep.subr.mxu0 0.0
        %875 = vmatpush1.msra.mxu0 0.0
        %876 = vmatprep.subr.mxu0 0.0
        %877 = vmatpush1.msra.mxu0 0.0
        %878 = vmatprep.subr.mxu0 0.0
        %879 = vmatpush1.msra.mxu0 0.0
        %880 = vmatprep.subr.mxu0 0.0
        %881 = vmatpush1.msra.mxu0 0.0
        %882 = vmatprep.subr.mxu0 0.0
        %883 = vmatpush1.msra.mxu0 0.0
        %884 = vmatprep.subr.mxu0 0.0
        %885 = vmatpush1.msra.mxu0 0.0
        %886 = vmatprep.mubr.f32.mxu0 0.0
        %887 = vmatmul.mubr.f32.gmra.mrb[0].mxu0 %v820
        %v888 = vpop.f32.mrb[0].mxu0
        %v889 = vadd.f32 0.0, %v888
        %v890 = vpop.f32.mrb[0].mxu0
        %891 = vdwg.mxu0
        %v892 = vadd.f32 %v816, %v889
        %v893 = vxor.u32 %v892, 2147483648
        %v894 = vmul.f32 %v893, 1.442695
        %v895 = vpow.pop %v894
        %v896 = vadd.f32 %v895, 1.0
        %v897 = vrcp.pop %v896
        %v898 = vmul.f32 1.0, %v897
        %v899 = vtanh.pop %v892
        %v900 = vmul.f32 %v898, %v814
        %902 = vrot.lane.b32.xlu0 %v899, 64
        %v903 = vpop.permute.xlu0 %902
        %v905 = vmul.f32 %v898, %v903
        %907 = vrot.lane.b32.xlu0 %v905, 32
        %v908 = vpop.permute.xlu0 %907
        %v910 = vadd.f32 %v900, %v908
        %v911 = vtanh.pop %v910
        %913 = vrot.lane.b32.xlu0 %v911, 64
        %v914 = vpop.permute.xlu0 %913
        %v916 = vmul.f32 %v898, %v914
        %vm917 = vcmp.gt.s32.totalorder %v586, 2
        %v918 = vsel %vm917, 1, 0
        %v919 = vcvt.s32.f32 %v918
        %v920 = vsub.f32 %v916, %v811
        %922 = vset.pattern.permute.xlu0 0
        %923 = vperm.xlu0 %922, %v919
        %v924 = vpop.permute.xlu0 %923
        %v926 = vmul.f32 %v924, %v920
        %v927 = vadd.f32 %v811, %v926
        %v928 = vsub.f32 %v910, %v814
        %v929 = vmul.f32 %v924, %v928
        %v930 = vadd.f32 %v814, %v929
        %s931 = scalar_lea.vmem [#allocation2], 24
        %v932 = vld [vmem:[%s931] sm:$0xff]
        %934 = vrot.lane.b32.xlu0 %v927, 32
        %v935 = vpop.permute.xlu0 %934
        %v936 = vsel %vm588, %v935, 0
        %938 = vmatprep.subr.mxu0 0.0
        %939 = vmatpush1.msra.mxu0 %v582
        %940 = vmatprep.subr.mxu0 0.0
        %941 = vmatpush1.msra.mxu0 %v583
        %942 = vmatprep.subr.mxu0 0.0
        %943 = vmatpush1.msra.mxu0 %v584
        %944 = vmatprep.subr.mxu0 0.0
        %945 = vmatpush1.msra.mxu0 %v585
        %946 = vmatprep.subr.mxu0 0.0
        %947 = vmatpush1.msra.mxu0 0.0
        %948 = vmatprep.subr.mxu0 0.0
        %949 = vmatpush1.msra.mxu0 0.0
        %950 = vmatprep.subr.mxu0 0.0
        %951 = vmatpush1.msra.mxu0 0.0
        %952 = vmatprep.subr.mxu0 0.0
        %953 = vmatpush1.msra.mxu0 0.0
        %954 = vmatprep.subr.mxu0 0.0
        %955 = vmatpush1.msra.mxu0 0.0
        %956 = vmatprep.subr.mxu0 0.0
        %957 = vmatpush1.msra.mxu0 0.0
        %958 = vmatprep.subr.mxu0 0.0
        %959 = vmatpush1.msra.mxu0 0.0
        %960 = vmatprep.subr.mxu0 0.0
        %961 = vmatpush1.msra.mxu0 0.0
        %962 = vmatprep.subr.mxu0 0.0
        %963 = vmatpush1.msra.mxu0 0.0
        %964 = vmatprep.subr.mxu0 0.0
        %965 = vmatpush1.msra.mxu0 0.0
        %966 = vmatprep.subr.mxu0 0.0
        %967 = vmatpush1.msra.mxu0 0.0
        %968 = vmatprep.subr.mxu0 0.0
        %969 = vmatpush1.msra.mxu0 0.0
        %970 = vmatprep.subr.mxu0 0.0
        %971 = vmatpush1.msra.mxu0 0.0
        %972 = vmatprep.subr.mxu0 0.0
        %973 = vmatpush1.msra.mxu0 0.0
        %974 = vmatprep.subr.mxu0 0.0
        %975 = vmatpush1.msra.mxu0 0.0
        %976 = vmatprep.subr.mxu0 0.0
        %977 = vmatpush1.msra.mxu0 0.0
        %978 = vmatprep.subr.mxu0 0.0
        %979 = vmatpush1.msra.mxu0 0.0
        %980 = vmatprep.subr.mxu0 0.0
        %981 = vmatpush1.msra.mxu0 0.0
        %982 = vmatprep.subr.mxu0 0.0
        %983 = vmatpush1.msra.mxu0 0.0
        %984 = vmatprep.subr.mxu0 0.0
        %985 = vmatpush1.msra.mxu0 0.0
        %986 = vmatprep.subr.mxu0 0.0
        %987 = vmatpush1.msra.mxu0 0.0
        %988 = vmatprep.subr.mxu0 0.0
        %989 = vmatpush1.msra.mxu0 0.0
        %990 = vmatprep.subr.mxu0 0.0
        %991 = vmatpush1.msra.mxu0 0.0
        %992 = vmatprep.subr.mxu0 0.0
        %993 = vmatpush1.msra.mxu0 0.0
        %994 = vmatprep.subr.mxu0 0.0
        %995 = vmatpush1.msra.mxu0 0.0
        %996 = vmatprep.subr.mxu0 0.0
        %997 = vmatpush1.msra.mxu0 0.0
        %998 = vmatprep.subr.mxu0 0.0
        %999 = vmatpush1.msra.mxu0 0.0
        %1000 = vmatprep.subr.mxu0 0.0
        %1001 = vmatpush1.msra.mxu0 0.0
        %1002 = vmatprep.mubr.f32.mxu0 0.0
        %1003 = vmatmul.mubr.f32.gmra.mrb[0].mxu0 %v936
        %v1004 = vpop.f32.mrb[0].mxu0
        %v1005 = vadd.f32 0.0, %v1004
        %v1006 = vpop.f32.mrb[0].mxu0
        %1007 = vdwg.mxu0
        %v1008 = vadd.f32 %v932, %v1005
        %v1009 = vxor.u32 %v1008, 2147483648
        %v1010 = vmul.f32 %v1009, 1.442695
        %v1011 = vpow.pop %v1010
        %v1012 = vadd.f32 %v1011, 1.0
        %v1013 = vrcp.pop %v1012
        %v1014 = vmul.f32 1.0, %v1013
        %v1015 = vtanh.pop %v1008
        %v1016 = vmul.f32 %v1014, %v930
        %1018 = vrot.lane.b32.xlu0 %v1015, 64
        %v1019 = vpop.permute.xlu0 %1018
        %v1021 = vmul.f32 %v1014, %v1019
        %1023 = vrot.lane.b32.xlu0 %v1021, 32
        %v1024 = vpop.permute.xlu0 %1023
        %v1026 = vadd.f32 %v1016, %v1024
        %v1027 = vtanh.pop %v1026
        %1029 = vrot.lane.b32.xlu0 %v1027, 64
        %v1030 = vpop.permute.xlu0 %1029
        %v1032 = vmul.f32 %v1014, %v1030
        %vm1033 = vcmp.gt.s32.totalorder %v586, 3
        %v1034 = vsel %vm1033, 1, 0
        %v1035 = vcvt.s32.f32 %v1034
        %v1036 = vsub.f32 %v1032, %v927
        %1038 = vset.pattern.permute.xlu0 0
        %1039 = vperm.xlu0 %1038, %v1035
        %v1040 = vpop.permute.xlu0 %1039
        %v1042 = vmul.f32 %v1040, %v1036
        %v1043 = vadd.f32 %v927, %v1042
        %v1044 = vsub.f32 %v1026, %v930
        %v1045 = vmul.f32 %v1040, %v1044
        %v1046 = vadd.f32 %v930, %v1045
        %s1047 = scalar_lea.vmem [#allocation2], 32
        %v1048 = vld [vmem:[%s1047] sm:$0xff]
        %1050 = vrot.lane.b32.xlu0 %v1043, 32
        %v1051 = vpop.permute.xlu0 %1050
        %v1052 = vsel %vm588, %v1051, 0
        %1054 = vmatprep.subr.mxu0 0.0
        %1055 = vmatpush1.msra.mxu0 %v582
        %1056 = vmatprep.subr.mxu0 0.0
        %1057 = vmatpush1.msra.mxu0 %v583
        %1058 = vmatprep.subr.mxu0 0.0
        %1059 = vmatpush1.msra.mxu0 %v584
        %1060 = vmatprep.subr.mxu0 0.0
        %1061 = vmatpush1.msra.mxu0 %v585
        %1062 = vmatprep.subr.mxu0 0.0
        %1063 = vmatpush1.msra.mxu0 0.0
        %1064 = vmatprep.subr.mxu0 0.0
        %1065 = vmatpush1.msra.mxu0 0.0
        %1066 = vmatprep.subr.mxu0 0.0
        %1067 = vmatpush1.msra.mxu0 0.0
        %1068 = vmatprep.subr.mxu0 0.0
        %1069 = vmatpush1.msra.mxu0 0.0
        %1070 = vmatprep.subr.mxu0 0.0
        %1071 = vmatpush1.msra.mxu0 0.0
        %1072 = vmatprep.subr.mxu0 0.0
        %1073 = vmatpush1.msra.mxu0 0.0
        %1074 = vmatprep.subr.mxu0 0.0
        %1075 = vmatpush1.msra.mxu0 0.0
        %1076 = vmatprep.subr.mxu0 0.0
        %1077 = vmatpush1.msra.mxu0 0.0
        %1078 = vmatprep.subr.mxu0 0.0
        %1079 = vmatpush1.msra.mxu0 0.0
        %1080 = vmatprep.subr.mxu0 0.0
        %1081 = vmatpush1.msra.mxu0 0.0
        %1082 = vmatprep.subr.mxu0 0.0
        %1083 = vmatpush1.msra.mxu0 0.0
        %1084 = vmatprep.subr.mxu0 0.0
        %1085 = vmatpush1.msra.mxu0 0.0
        %1086 = vmatprep.subr.mxu0 0.0
        %1087 = vmatpush1.msra.mxu0 0.0
        %1088 = vmatprep.subr.mxu0 0.0
        %1089 = vmatpush1.msra.mxu0 0.0
        %1090 = vmatprep.subr.mxu0 0.0
        %1091 = vmatpush1.msra.mxu0 0.0
        %1092 = vmatprep.subr.mxu0 0.0
        %1093 = vmatpush1.msra.mxu0 0.0
        %1094 = vmatprep.subr.mxu0 0.0
        %1095 = vmatpush1.msra.mxu0 0.0
        %1096 = vmatprep.subr.mxu0 0.0
        %1097 = vmatpush1.msra.mxu0 0.0
        %1098 = vmatprep.subr.mxu0 0.0
        %1099 = vmatpush1.msra.mxu0 0.0
        %1100 = vmatprep.subr.mxu0 0.0
        %1101 = vmatpush1.msra.mxu0 0.0
        %1102 = vmatprep.subr.mxu0 0.0
        %1103 = vmatpush1.msra.mxu0 0.0
        %1104 = vmatprep.subr.mxu0 0.0
        %1105 = vmatpush1.msra.mxu0 0.0
        %1106 = vmatprep.subr.mxu0 0.0
        %1107 = vmatpush1.msra.mxu0 0.0
        %1108 = vmatprep.subr.mxu0 0.0
        %1109 = vmatpush1.msra.mxu0 0.0
        %1110 = vmatprep.subr.mxu0 0.0
        %1111 = vmatpush1.msra.mxu0 0.0
        %1112 = vmatprep.subr.mxu0 0.0
        %1113 = vmatpush1.msra.mxu0 0.0
        %1114 = vmatprep.subr.mxu0 0.0
        %1115 = vmatpush1.msra.mxu0 0.0
        %1116 = vmatprep.subr.mxu0 0.0
        %1117 = vmatpush1.msra.mxu0 0.0
        %1118 = vmatprep.mubr.f32.mxu0 0.0
        %1119 = vmatmul.mubr.f32.gmra.mrb[0].mxu0 %v1052
        %v1120 = vpop.f32.mrb[0].mxu0
        %v1121 = vadd.f32 0.0, %v1120
        %v1122 = vpop.f32.mrb[0].mxu0
        %1123 = vdwg.mxu0
        %v1124 = vadd.f32 %v1048, %v1121
        %v1125 = vxor.u32 %v1124, 2147483648
        %v1126 = vmul.f32 %v1125, 1.442695
        %v1127 = vpow.pop %v1126
        %v1128 = vadd.f32 %v1127, 1.0
        %v1129 = vrcp.pop %v1128
        %v1130 = vmul.f32 1.0, %v1129
        %v1131 = vtanh.pop %v1124
        %v1132 = vmul.f32 %v1130, %v1046
        %1134 = vrot.lane.b32.xlu0 %v1131, 64
        %v1135 = vpop.permute.xlu0 %1134
        %v1137 = vmul.f32 %v1130, %v1135
        %1139 = vrot.lane.b32.xlu0 %v1137, 32
        %v1140 = vpop.permute.xlu0 %1139
        %v1142 = vadd.f32 %v1132, %v1140
        %v1143 = vtanh.pop %v1142
        %1145 = vrot.lane.b32.xlu0 %v1143, 64
        %v1146 = vpop.permute.xlu0 %1145
        %v1148 = vmul.f32 %v1130, %v1146
        %vm1149 = vcmp.gt.s32.totalorder %v586, 4
        %v1150 = vsel %vm1149, 1, 0
        %v1151 = vcvt.s32.f32 %v1150
        %v1152 = vsub.f32 %v1148, %v1043
        %1154 = vset.pattern.permute.xlu0 0
        %1155 = vperm.xlu0 %1154, %v1151
        %v1156 = vpop.permute.xlu0 %1155
        %v1158 = vmul.f32 %v1156, %v1152
        %v1159 = vadd.f32 %v1043, %v1158
        %v1160 = vsub.f32 %v1142, %v1046
        %v1161 = vmul.f32 %v1156, %v1160
        %v1162 = vadd.f32 %v1046, %v1161
        %s1163 = scalar_lea.vmem [#allocation2], 40
        %v1164 = vld [vmem:[%s1163] sm:$0xff]
        %1166 = vrot.lane.b32.xlu0 %v1159, 32
        %v1167 = vpop.permute.xlu0 %1166
        %v1168 = vsel %vm588, %v1167, 0
        %1170 = vmatprep.subr.mxu0 0.0
        %1171 = vmatpush1.msra.mxu0 %v582
        %1172 = vmatprep.subr.mxu0 0.0
        %1173 = vmatpush1.msra.mxu0 %v583
        %1174 = vmatprep.subr.mxu0 0.0
        %1175 = vmatpush1.msra.mxu0 %v584
        %1176 = vmatprep.subr.mxu0 0.0
        %1177 = vmatpush1.msra.mxu0 %v585
        %1178 = vmatprep.subr.mxu0 0.0
        %1179 = vmatpush1.msra.mxu0 0.0
        %1180 = vmatprep.subr.mxu0 0.0
        %1181 = vmatpush1.msra.mxu0 0.0
        %1182 = vmatprep.subr.mxu0 0.0
        %1183 = vmatpush1.msra.mxu0 0.0
        %1184 = vmatprep.subr.mxu0 0.0
        %1185 = vmatpush1.msra.mxu0 0.0
        %1186 = vmatprep.subr.mxu0 0.0
        %1187 = vmatpush1.msra.mxu0 0.0
        %1188 = vmatprep.subr.mxu0 0.0
        %1189 = vmatpush1.msra.mxu0 0.0
        %1190 = vmatprep.subr.mxu0 0.0
        %1191 = vmatpush1.msra.mxu0 0.0
        %1192 = vmatprep.subr.mxu0 0.0
        %1193 = vmatpush1.msra.mxu0 0.0
        %1194 = vmatprep.subr.mxu0 0.0
        %1195 = vmatpush1.msra.mxu0 0.0
        %1196 = vmatprep.subr.mxu0 0.0
        %1197 = vmatpush1.msra.mxu0 0.0
        %1198 = vmatprep.subr.mxu0 0.0
        %1199 = vmatpush1.msra.mxu0 0.0
        %1200 = vmatprep.subr.mxu0 0.0
        %1201 = vmatpush1.msra.mxu0 0.0
        %1202 = vmatprep.subr.mxu0 0.0
        %1203 = vmatpush1.msra.mxu0 0.0
        %1204 = vmatprep.subr.mxu0 0.0
        %1205 = vmatpush1.msra.mxu0 0.0
        %1206 = vmatprep.subr.mxu0 0.0
        %1207 = vmatpush1.msra.mxu0 0.0
        %1208 = vmatprep.subr.mxu0 0.0
        %1209 = vmatpush1.msra.mxu0 0.0
        %1210 = vmatprep.subr.mxu0 0.0
        %1211 = vmatpush1.msra.mxu0 0.0
        %1212 = vmatprep.subr.mxu0 0.0
        %1213 = vmatpush1.msra.mxu0 0.0
        %1214 = vmatprep.subr.mxu0 0.0
        %1215 = vmatpush1.msra.mxu0 0.0
        %1216 = vmatprep.subr.mxu0 0.0
        %1217 = vmatpush1.msra.mxu0 0.0
        %1218 = vmatprep.subr.mxu0 0.0
        %1219 = vmatpush1.msra.mxu0 0.0
        %1220 = vmatprep.subr.mxu0 0.0
        %1221 = vmatpush1.msra.mxu0 0.0
        %1222 = vmatprep.subr.mxu0 0.0
        %1223 = vmatpush1.msra.mxu0 0.0
        %1224 = vmatprep.subr.mxu0 0.0
        %1225 = vmatpush1.msra.mxu0 0.0
        %1226 = vmatprep.subr.mxu0 0.0
        %1227 = vmatpush1.msra.mxu0 0.0
        %1228 = vmatprep.subr.mxu0 0.0
        %1229 = vmatpush1.msra.mxu0 0.0
        %1230 = vmatprep.subr.mxu0 0.0
        %1231 = vmatpush1.msra.mxu0 0.0
        %1232 = vmatprep.subr.mxu0 0.0
        %1233 = vmatpush1.msra.mxu0 0.0
        %1234 = vmatprep.mubr.f32.mxu0 0.0
        %1235 = vmatmul.mubr.f32.gmra.mrb[0].mxu0 %v1168
        %v1236 = vpop.f32.mrb[0].mxu0
        %v1237 = vadd.f32 0.0, %v1236
        %v1238 = vpop.f32.mrb[0].mxu0
        %1239 = vdwg.mxu0
        %v1240 = vadd.f32 %v1164, %v1237
        %v1241 = vxor.u32 %v1240, 2147483648
        %v1242 = vmul.f32 %v1241, 1.442695
        %v1243 = vpow.pop %v1242
        %v1244 = vadd.f32 %v1243, 1.0
        %v1245 = vrcp.pop %v1244
        %v1246 = vmul.f32 1.0, %v1245
        %v1247 = vtanh.pop %v1240
        %v1248 = vmul.f32 %v1246, %v1162
        %1250 = vrot.lane.b32.xlu0 %v1247, 64
        %v1251 = vpop.permute.xlu0 %1250
        %v1253 = vmul.f32 %v1246, %v1251
        %1255 = vrot.lane.b32.xlu0 %v1253, 32
        %v1256 = vpop.permute.xlu0 %1255
        %v1258 = vadd.f32 %v1248, %v1256
        %v1259 = vtanh.pop %v1258
        %1261 = vrot.lane.b32.xlu0 %v1259, 64
        %v1262 = vpop.permute.xlu0 %1261
        %v1264 = vmul.f32 %v1246, %v1262
        %vm1265 = vcmp.gt.s32.totalorder %v586, 5
        %v1266 = vsel %vm1265, 1, 0
        %v1267 = vcvt.s32.f32 %v1266
        %v1268 = vsub.f32 %v1264, %v1159
        %1270 = vset.pattern.permute.xlu0 0
        %1271 = vperm.xlu0 %1270, %v1267
        %v1272 = vpop.permute.xlu0 %1271
        %v1274 = vmul.f32 %v1272, %v1268
        %v1275 = vadd.f32 %v1159, %v1274
        %v1276 = vsub.f32 %v1258, %v1162
        %v1277 = vmul.f32 %v1272, %v1276
        %v1278 = vadd.f32 %v1162, %v1277
        %s1279 = scalar_lea.vmem [#allocation2], 48
        %v1280 = vld [vmem:[%s1279] sm:$0xff]
        %1282 = vrot.lane.b32.xlu0 %v1275, 32
        %v1283 = vpop.permute.xlu0 %1282
        %v1284 = vsel %vm588, %v1283, 0
        %1286 = vmatprep.subr.mxu0 0.0
        %1287 = vmatpush1.msra.mxu0 %v582
        %1288 = vmatprep.subr.mxu0 0.0
        %1289 = vmatpush1.msra.mxu0 %v583
        %1290 = vmatprep.subr.mxu0 0.0
        %1291 = vmatpush1.msra.mxu0 %v584
        %1292 = vmatprep.subr.mxu0 0.0
        %1293 = vmatpush1.msra.mxu0 %v585
        %1294 = vmatprep.subr.mxu0 0.0
        %1295 = vmatpush1.msra.mxu0 0.0
        %1296 = vmatprep.subr.mxu0 0.0
        %1297 = vmatpush1.msra.mxu0 0.0
        %1298 = vmatprep.subr.mxu0 0.0
        %1299 = vmatpush1.msra.mxu0 0.0
        %1300 = vmatprep.subr.mxu0 0.0
        %1301 = vmatpush1.msra.mxu0 0.0
        %1302 = vmatprep.subr.mxu0 0.0
        %1303 = vmatpush1.msra.mxu0 0.0
        %1304 = vmatprep.subr.mxu0 0.0
        %1305 = vmatpush1.msra.mxu0 0.0
        %1306 = vmatprep.subr.mxu0 0.0
        %1307 = vmatpush1.msra.mxu0 0.0
        %1308 = vmatprep.subr.mxu0 0.0
        %1309 = vmatpush1.msra.mxu0 0.0
        %1310 = vmatprep.subr.mxu0 0.0
        %1311 = vmatpush1.msra.mxu0 0.0
        %1312 = vmatprep.subr.mxu0 0.0
        %1313 = vmatpush1.msra.mxu0 0.0
        %1314 = vmatprep.subr.mxu0 0.0
        %1315 = vmatpush1.msra.mxu0 0.0
        %1316 = vmatprep.subr.mxu0 0.0
        %1317 = vmatpush1.msra.mxu0 0.0
        %1318 = vmatprep.subr.mxu0 0.0
        %1319 = vmatpush1.msra.mxu0 0.0
        %1320 = vmatprep.subr.mxu0 0.0
        %1321 = vmatpush1.msra.mxu0 0.0
        %1322 = vmatprep.subr.mxu0 0.0
        %1323 = vmatpush1.msra.mxu0 0.0
        %1324 = vmatprep.subr.mxu0 0.0
        %1325 = vmatpush1.msra.mxu0 0.0
        %1326 = vmatprep.subr.mxu0 0.0
        %1327 = vmatpush1.msra.mxu0 0.0
        %1328 = vmatprep.subr.mxu0 0.0
        %1329 = vmatpush1.msra.mxu0 0.0
        %1330 = vmatprep.subr.mxu0 0.0
        %1331 = vmatpush1.msra.mxu0 0.0
        %1332 = vmatprep.subr.mxu0 0.0
        %1333 = vmatpush1.msra.mxu0 0.0
        %1334 = vmatprep.subr.mxu0 0.0
        %1335 = vmatpush1.msra.mxu0 0.0
        %1336 = vmatprep.subr.mxu0 0.0
        %1337 = vmatpush1.msra.mxu0 0.0
        %1338 = vmatprep.subr.mxu0 0.0
        %1339 = vmatpush1.msra.mxu0 0.0
        %1340 = vmatprep.subr.mxu0 0.0
        %1341 = vmatpush1.msra.mxu0 0.0
        %1342 = vmatprep.subr.mxu0 0.0
        %1343 = vmatpush1.msra.mxu0 0.0
        %1344 = vmatprep.subr.mxu0 0.0
        %1345 = vmatpush1.msra.mxu0 0.0
        %1346 = vmatprep.subr.mxu0 0.0
        %1347 = vmatpush1.msra.mxu0 0.0
        %1348 = vmatprep.subr.mxu0 0.0
        %1349 = vmatpush1.msra.mxu0 0.0
        %1350 = vmatprep.mubr.f32.mxu0 0.0
        %1351 = vmatmul.mubr.f32.gmra.mrb[0].mxu0 %v1284
        %v1352 = vpop.f32.mrb[0].mxu0
        %v1353 = vadd.f32 0.0, %v1352
        %v1354 = vpop.f32.mrb[0].mxu0
        %1355 = vdwg.mxu0
        %v1356 = vadd.f32 %v1280, %v1353
        %v1357 = vxor.u32 %v1356, 2147483648
        %v1358 = vmul.f32 %v1357, 1.442695
        %v1359 = vpow.pop %v1358
        %v1360 = vadd.f32 %v1359, 1.0
        %v1361 = vrcp.pop %v1360
        %v1362 = vmul.f32 1.0, %v1361
        %v1363 = vtanh.pop %v1356
        %v1364 = vmul.f32 %v1362, %v1278
        %1366 = vrot.lane.b32.xlu0 %v1363, 64
        %v1367 = vpop.permute.xlu0 %1366
        %v1369 = vmul.f32 %v1362, %v1367
        %1371 = vrot.lane.b32.xlu0 %v1369, 32
        %v1372 = vpop.permute.xlu0 %1371
        %v1374 = vadd.f32 %v1364, %v1372
        %v1375 = vtanh.pop %v1374
        %1377 = vrot.lane.b32.xlu0 %v1375, 64
        %v1378 = vpop.permute.xlu0 %1377
        %v1380 = vmul.f32 %v1362, %v1378
        %vm1381 = vcmp.gt.s32.totalorder %v586, 6
        %v1382 = vsel %vm1381, 1, 0
        %v1383 = vcvt.s32.f32 %v1382
        %v1384 = vsub.f32 %v1380, %v1275
        %1386 = vset.pattern.permute.xlu0 0
        %1387 = vperm.xlu0 %1386, %v1383
        %v1388 = vpop.permute.xlu0 %1387
        %v1390 = vmul.f32 %v1388, %v1384
        %v1391 = vadd.f32 %v1275, %v1390
        %v1392 = vsub.f32 %v1374, %v1278
        %v1393 = vmul.f32 %v1388, %v1392
        %v1394 = vadd.f32 %v1278, %v1393
        %s1395 = scalar_lea.vmem [#allocation2], 56
        %v1396 = vld [vmem:[%s1395] sm:$0xff]
        %1398 = vrot.lane.b32.xlu0 %v1391, 32
        %v1399 = vpop.permute.xlu0 %1398
        %v1400 = vsel %vm588, %v1399, 0
        %1402 = vmatprep.subr.mxu0 0.0
        %1403 = vmatpush1.msra.mxu0 %v582
        %1404 = vmatprep.subr.mxu0 0.0
        %1405 = vmatpush1.msra.mxu0 %v583
        %1406 = vmatprep.subr.mxu0 0.0
        %1407 = vmatpush1.msra.mxu0 %v584
        %1408 = vmatprep.subr.mxu0 0.0
        %1409 = vmatpush1.msra.mxu0 %v585
        %1410 = vmatprep.subr.mxu0 0.0
        %1411 = vmatpush1.msra.mxu0 0.0
        %1412 = vmatprep.subr.mxu0 0.0
        %1413 = vmatpush1.msra.mxu0 0.0
        %1414 = vmatprep.subr.mxu0 0.0
        %1415 = vmatpush1.msra.mxu0 0.0
        %1416 = vmatprep.subr.mxu0 0.0
        %1417 = vmatpush1.msra.mxu0 0.0
        %1418 = vmatprep.subr.mxu0 0.0
        %1419 = vmatpush1.msra.mxu0 0.0
        %1420 = vmatprep.subr.mxu0 0.0
        %1421 = vmatpush1.msra.mxu0 0.0
        %1422 = vmatprep.subr.mxu0 0.0
        %1423 = vmatpush1.msra.mxu0 0.0
        %1424 = vmatprep.subr.mxu0 0.0
        %1425 = vmatpush1.msra.mxu0 0.0
        %1426 = vmatprep.subr.mxu0 0.0
        %1427 = vmatpush1.msra.mxu0 0.0
        %1428 = vmatprep.subr.mxu0 0.0
        %1429 = vmatpush1.msra.mxu0 0.0
        %1430 = vmatprep.subr.mxu0 0.0
        %1431 = vmatpush1.msra.mxu0 0.0
        %1432 = vmatprep.subr.mxu0 0.0
        %1433 = vmatpush1.msra.mxu0 0.0
        %1434 = vmatprep.subr.mxu0 0.0
        %1435 = vmatpush1.msra.mxu0 0.0
        %1436 = vmatprep.subr.mxu0 0.0
        %1437 = vmatpush1.msra.mxu0 0.0
        %1438 = vmatprep.subr.mxu0 0.0
        %1439 = vmatpush1.msra.mxu0 0.0
        %1440 = vmatprep.subr.mxu0 0.0
        %1441 = vmatpush1.msra.mxu0 0.0
        %1442 = vmatprep.subr.mxu0 0.0
        %1443 = vmatpush1.msra.mxu0 0.0
        %1444 = vmatprep.subr.mxu0 0.0
        %1445 = vmatpush1.msra.mxu0 0.0
        %1446 = vmatprep.subr.mxu0 0.0
        %1447 = vmatpush1.msra.mxu0 0.0
        %1448 = vmatprep.subr.mxu0 0.0
        %1449 = vmatpush1.msra.mxu0 0.0
        %1450 = vmatprep.subr.mxu0 0.0
        %1451 = vmatpush1.msra.mxu0 0.0
        %1452 = vmatprep.subr.mxu0 0.0
        %1453 = vmatpush1.msra.mxu0 0.0
        %1454 = vmatprep.subr.mxu0 0.0
        %1455 = vmatpush1.msra.mxu0 0.0
        %1456 = vmatprep.subr.mxu0 0.0
        %1457 = vmatpush1.msra.mxu0 0.0
        %1458 = vmatprep.subr.mxu0 0.0
        %1459 = vmatpush1.msra.mxu0 0.0
        %1460 = vmatprep.subr.mxu0 0.0
        %1461 = vmatpush1.msra.mxu0 0.0
        %1462 = vmatprep.subr.mxu0 0.0
        %1463 = vmatpush1.msra.mxu0 0.0
        %1464 = vmatprep.subr.mxu0 0.0
        %1465 = vmatpush1.msra.mxu0 0.0
        %1466 = vmatprep.mubr.f32.mxu0 0.0
        %1467 = vmatmul.mubr.f32.gmra.mrb[0].mxu0 %v1400
        %v1468 = vpop.f32.mrb[0].mxu0
        %v1469 = vadd.f32 0.0, %v1468
        %v1470 = vpop.f32.mrb[0].mxu0
        %1471 = vdwg.mxu0
        %v1472 = vadd.f32 %v1396, %v1469
        %v1473 = vxor.u32 %v1472, 2147483648
        %v1474 = vmul.f32 %v1473, 1.442695
        %v1475 = vpow.pop %v1474
        %v1476 = vadd.f32 %v1475, 1.0
        %v1477 = vrcp.pop %v1476
        %v1478 = vmul.f32 1.0, %v1477
        %v1479 = vtanh.pop %v1472
        %v1480 = vmul.f32 %v1478, %v1394
        %1482 = vrot.lane.b32.xlu0 %v1479, 64
        %v1483 = vpop.permute.xlu0 %1482
        %v1485 = vmul.f32 %v1478, %v1483
        %1487 = vrot.lane.b32.xlu0 %v1485, 32
        %v1488 = vpop.permute.xlu0 %1487
        %v1490 = vadd.f32 %v1480, %v1488
        %v1491 = vtanh.pop %v1490
        %1493 = vrot.lane.b32.xlu0 %v1491, 64
        %v1494 = vpop.permute.xlu0 %1493
        %v1496 = vmul.f32 %v1478, %v1494
        %vm1497 = vcmp.gt.s32.totalorder %v586, 7
        %v1498 = vsel %vm1497, 1, 0
        %v1499 = vcvt.s32.f32 %v1498
        %v1500 = vsub.f32 %v1496, %v1391
        %1502 = vset.pattern.permute.xlu0 0
        %1503 = vperm.xlu0 %1502, %v1499
        %v1504 = vpop.permute.xlu0 %1503
        %v1506 = vmul.f32 %v1504, %v1500
        %v1507 = vadd.f32 %v1391, %v1506
        %v1508 = vsub.f32 %v1490, %v1394
        %v1509 = vmul.f32 %v1504, %v1508
        %v1510 = vadd.f32 %v1394, %v1509
        %s1511 = scalar_lea.vmem [#allocation2], 64
        %v1512 = vld [vmem:[%s1511] sm:$0xff]
        %1514 = vrot.lane.b32.xlu0 %v1507, 32
        %v1515 = vpop.permute.xlu0 %1514
        %v1516 = vsel %vm588, %v1515, 0
        %1518 = vmatprep.subr.mxu0 0.0
        %1519 = vmatpush1.msra.mxu0 %v582
        %1520 = vmatprep.subr.mxu0 0.0
        %1521 = vmatpush1.msra.mxu0 %v583
        %1522 = vmatprep.subr.mxu0 0.0
        %1523 = vmatpush1.msra.mxu0 %v584
        %1524 = vmatprep.subr.mxu0 0.0
        %1525 = vmatpush1.msra.mxu0 %v585
        %1526 = vmatprep.subr.mxu0 0.0
        %1527 = vmatpush1.msra.mxu0 0.0
        %1528 = vmatprep.subr.mxu0 0.0
        %1529 = vmatpush1.msra.mxu0 0.0
        %1530 = vmatprep.subr.mxu0 0.0
        %1531 = vmatpush1.msra.mxu0 0.0
        %1532 = vmatprep.subr.mxu0 0.0
        %1533 = vmatpush1.msra.mxu0 0.0
        %1534 = vmatprep.subr.mxu0 0.0
        %1535 = vmatpush1.msra.mxu0 0.0
        %1536 = vmatprep.subr.mxu0 0.0
        %1537 = vmatpush1.msra.mxu0 0.0
        %1538 = vmatprep.subr.mxu0 0.0
        %1539 = vmatpush1.msra.mxu0 0.0
        %1540 = vmatprep.subr.mxu0 0.0
        %1541 = vmatpush1.msra.mxu0 0.0
        %1542 = vmatprep.subr.mxu0 0.0
        %1543 = vmatpush1.msra.mxu0 0.0
        %1544 = vmatprep.subr.mxu0 0.0
        %1545 = vmatpush1.msra.mxu0 0.0
        %1546 = vmatprep.subr.mxu0 0.0
        %1547 = vmatpush1.msra.mxu0 0.0
        %1548 = vmatprep.subr.mxu0 0.0
        %1549 = vmatpush1.msra.mxu0 0.0
        %1550 = vmatprep.subr.mxu0 0.0
        %1551 = vmatpush1.msra.mxu0 0.0
        %1552 = vmatprep.subr.mxu0 0.0
        %1553 = vmatpush1.msra.mxu0 0.0
        %1554 = vmatprep.subr.mxu0 0.0
        %1555 = vmatpush1.msra.mxu0 0.0
        %1556 = vmatprep.subr.mxu0 0.0
        %1557 = vmatpush1.msra.mxu0 0.0
        %1558 = vmatprep.subr.mxu0 0.0
        %1559 = vmatpush1.msra.mxu0 0.0
        %1560 = vmatprep.subr.mxu0 0.0
        %1561 = vmatpush1.msra.mxu0 0.0
        %1562 = vmatprep.subr.mxu0 0.0
        %1563 = vmatpush1.msra.mxu0 0.0
        %1564 = vmatprep.subr.mxu0 0.0
        %1565 = vmatpush1.msra.mxu0 0.0
        %1566 = vmatprep.subr.mxu0 0.0
        %1567 = vmatpush1.msra.mxu0 0.0
        %1568 = vmatprep.subr.mxu0 0.0
        %1569 = vmatpush1.msra.mxu0 0.0
        %1570 = vmatprep.subr.mxu0 0.0
        %1571 = vmatpush1.msra.mxu0 0.0
        %1572 = vmatprep.subr.mxu0 0.0
        %1573 = vmatpush1.msra.mxu0 0.0
        %1574 = vmatprep.subr.mxu0 0.0
        %1575 = vmatpush1.msra.mxu0 0.0
        %1576 = vmatprep.subr.mxu0 0.0
        %1577 = vmatpush1.msra.mxu0 0.0
        %1578 = vmatprep.subr.mxu0 0.0
        %1579 = vmatpush1.msra.mxu0 0.0
        %1580 = vmatprep.subr.mxu0 0.0
        %1581 = vmatpush1.msra.mxu0 0.0
        %1582 = vmatprep.mubr.f32.mxu0 0.0
        %1583 = vmatmul.mubr.f32.gmra.mrb[0].mxu0 %v1516
        %v1584 = vpop.f32.mrb[0].mxu0
        %v1585 = vadd.f32 0.0, %v1584
        %v1586 = vpop.f32.mrb[0].mxu0
        %1587 = vdwg.mxu0
        %v1588 = vadd.f32 %v1512, %v1585
        %v1589 = vxor.u32 %v1588, 2147483648
        %v1590 = vmul.f32 %v1589, 1.442695
        %v1591 = vpow.pop %v1590
        %v1592 = vadd.f32 %v1591, 1.0
        %v1593 = vrcp.pop %v1592
        %v1594 = vmul.f32 1.0, %v1593
        %v1595 = vtanh.pop %v1588
        %v1596 = vmul.f32 %v1594, %v1510
        %1598 = vrot.lane.b32.xlu0 %v1595, 64
        %v1599 = vpop.permute.xlu0 %1598
        %v1601 = vmul.f32 %v1594, %v1599
        %1603 = vrot.lane.b32.xlu0 %v1601, 32
        %v1604 = vpop.permute.xlu0 %1603
        %v1606 = vadd.f32 %v1596, %v1604
        %v1607 = vtanh.pop %v1606
        %1609 = vrot.lane.b32.xlu0 %v1607, 64
        %v1610 = vpop.permute.xlu0 %1609
        %v1612 = vmul.f32 %v1594, %v1610
        %vm1613 = vcmp.gt.s32.totalorder %v586, 8
        %v1614 = vsel %vm1613, 1, 0
        %v1615 = vcvt.s32.f32 %v1614
        %v1616 = vsub.f32 %v1612, %v1507
        %1618 = vset.pattern.permute.xlu0 0
        %1619 = vperm.xlu0 %1618, %v1615
        %v1620 = vpop.permute.xlu0 %1619
        %v1622 = vmul.f32 %v1620, %v1616
        %v1623 = vadd.f32 %v1507, %v1622
        %v1624 = vsub.f32 %v1606, %v1510
        %v1625 = vmul.f32 %v1620, %v1624
        %v1626 = vadd.f32 %v1510, %v1625
        %s1627 = scalar_lea.vmem [#allocation2], 72
        %v1628 = vld [vmem:[%s1627] sm:$0xff]
        %1630 = vrot.lane.b32.xlu0 %v1623, 32
        %v1631 = vpop.permute.xlu0 %1630
        %v1632 = vsel %vm588, %v1631, 0
        %1634 = vmatprep.subr.mxu0 0.0
        %1635 = vmatpush1.msra.mxu0 %v582
        %1636 = vmatprep.subr.mxu0 0.0
        %1637 = vmatpush1.msra.mxu0 %v583
        %1638 = vmatprep.subr.mxu0 0.0
        %1639 = vmatpush1.msra.mxu0 %v584
        %1640 = vmatprep.subr.mxu0 0.0
        %1641 = vmatpush1.msra.mxu0 %v585
        %1642 = vmatprep.subr.mxu0 0.0
        %1643 = vmatpush1.msra.mxu0 0.0
        %1644 = vmatprep.subr.mxu0 0.0
        %1645 = vmatpush1.msra.mxu0 0.0
        %1646 = vmatprep.subr.mxu0 0.0
        %1647 = vmatpush1.msra.mxu0 0.0
        %1648 = vmatprep.subr.mxu0 0.0
        %1649 = vmatpush1.msra.mxu0 0.0
        %1650 = vmatprep.subr.mxu0 0.0
        %1651 = vmatpush1.msra.mxu0 0.0
        %1652 = vmatprep.subr.mxu0 0.0
        %1653 = vmatpush1.msra.mxu0 0.0
        %1654 = vmatprep.subr.mxu0 0.0
        %1655 = vmatpush1.msra.mxu0 0.0
        %1656 = vmatprep.subr.mxu0 0.0
        %1657 = vmatpush1.msra.mxu0 0.0
        %1658 = vmatprep.subr.mxu0 0.0
        %1659 = vmatpush1.msra.mxu0 0.0
        %1660 = vmatprep.subr.mxu0 0.0
        %1661 = vmatpush1.msra.mxu0 0.0
        %1662 = vmatprep.subr.mxu0 0.0
        %1663 = vmatpush1.msra.mxu0 0.0
        %1664 = vmatprep.subr.mxu0 0.0
        %1665 = vmatpush1.msra.mxu0 0.0
        %1666 = vmatprep.subr.mxu0 0.0
        %1667 = vmatpush1.msra.mxu0 0.0
        %1668 = vmatprep.subr.mxu0 0.0
        %1669 = vmatpush1.msra.mxu0 0.0
        %1670 = vmatprep.subr.mxu0 0.0
        %1671 = vmatpush1.msra.mxu0 0.0
        %1672 = vmatprep.subr.mxu0 0.0
        %1673 = vmatpush1.msra.mxu0 0.0
        %1674 = vmatprep.subr.mxu0 0.0
        %1675 = vmatpush1.msra.mxu0 0.0
        %1676 = vmatprep.subr.mxu0 0.0
        %1677 = vmatpush1.msra.mxu0 0.0
        %1678 = vmatprep.subr.mxu0 0.0
        %1679 = vmatpush1.msra.mxu0 0.0
        %1680 = vmatprep.subr.mxu0 0.0
        %1681 = vmatpush1.msra.mxu0 0.0
        %1682 = vmatprep.subr.mxu0 0.0
        %1683 = vmatpush1.msra.mxu0 0.0
        %1684 = vmatprep.subr.mxu0 0.0
        %1685 = vmatpush1.msra.mxu0 0.0
        %1686 = vmatprep.subr.mxu0 0.0
        %1687 = vmatpush1.msra.mxu0 0.0
        %1688 = vmatprep.subr.mxu0 0.0
        %1689 = vmatpush1.msra.mxu0 0.0
        %1690 = vmatprep.subr.mxu0 0.0
        %1691 = vmatpush1.msra.mxu0 0.0
        %1692 = vmatprep.subr.mxu0 0.0
        %1693 = vmatpush1.msra.mxu0 0.0
        %1694 = vmatprep.subr.mxu0 0.0
        %1695 = vmatpush1.msra.mxu0 0.0
        %1696 = vmatprep.subr.mxu0 0.0
        %1697 = vmatpush1.msra.mxu0 0.0
        %1698 = vmatprep.mubr.f32.mxu0 0.0
        %1699 = vmatmul.mubr.f32.gmra.mrb[0].mxu0 %v1632
        %v1700 = vpop.f32.mrb[0].mxu0
        %v1701 = vadd.f32 0.0, %v1700
        %v1702 = vpop.f32.mrb[0].mxu0
        %1703 = vdwg.mxu0
        %v1704 = vadd.f32 %v1628, %v1701
        %v1705 = vxor.u32 %v1704, 2147483648
        %v1706 = vmul.f32 %v1705, 1.442695
        %v1707 = vpow.pop %v1706
        %v1708 = vadd.f32 %v1707, 1.0
        %v1709 = vrcp.pop %v1708
        %v1710 = vmul.f32 1.0, %v1709
        %v1711 = vtanh.pop %v1704
        %v1712 = vmul.f32 %v1710, %v1626
        %1714 = vrot.lane.b32.xlu0 %v1711, 64
        %v1715 = vpop.permute.xlu0 %1714
        %v1717 = vmul.f32 %v1710, %v1715
        %1719 = vrot.lane.b32.xlu0 %v1717, 32
        %v1720 = vpop.permute.xlu0 %1719
        %v1722 = vadd.f32 %v1712, %v1720
        %v1723 = vtanh.pop %v1722
        %1725 = vrot.lane.b32.xlu0 %v1723, 64
        %v1726 = vpop.permute.xlu0 %1725
        %v1728 = vmul.f32 %v1710, %v1726
        %vm1729 = vcmp.gt.s32.totalorder %v586, 9
        %v1730 = vsel %vm1729, 1, 0
        %v1731 = vcvt.s32.f32 %v1730
        %v1732 = vsub.f32 %v1728, %v1623
        %1734 = vset.pattern.permute.xlu0 0
        %1735 = vperm.xlu0 %1734, %v1731
        %v1736 = vpop.permute.xlu0 %1735
        %v1738 = vmul.f32 %v1736, %v1732
        %v1739 = vadd.f32 %v1623, %v1738
        %v1740 = vsub.f32 %v1722, %v1626
        %v1741 = vmul.f32 %v1736, %v1740
        %v1742 = vadd.f32 %v1626, %v1741
        %s1743 = scalar_lea.vmem [#allocation2], 80
        %v1744 = vld [vmem:[%s1743] sm:$0xff]
        %1746 = vrot.lane.b32.xlu0 %v1739, 32
        %v1747 = vpop.permute.xlu0 %1746
        %v1748 = vsel %vm588, %v1747, 0
        %1750 = vmatprep.subr.mxu0 0.0
        %1751 = vmatpush1.msra.mxu0 %v582
        %1752 = vmatprep.subr.mxu0 0.0
        %1753 = vmatpush1.msra.mxu0 %v583
        %1754 = vmatprep.subr.mxu0 0.0
        %1755 = vmatpush1.msra.mxu0 %v584
        %1756 = vmatprep.subr.mxu0 0.0
        %1757 = vmatpush1.msra.mxu0 %v585
        %1758 = vmatprep.subr.mxu0 0.0
        %1759 = vmatpush1.msra.mxu0 0.0
        %1760 = vmatprep.subr.mxu0 0.0
        %1761 = vmatpush1.msra.mxu0 0.0
        %1762 = vmatprep.subr.mxu0 0.0
        %1763 = vmatpush1.msra.mxu0 0.0
        %1764 = vmatprep.subr.mxu0 0.0
        %1765 = vmatpush1.msra.mxu0 0.0
        %1766 = vmatprep.subr.mxu0 0.0
        %1767 = vmatpush1.msra.mxu0 0.0
        %1768 = vmatprep.subr.mxu0 0.0
        %1769 = vmatpush1.msra.mxu0 0.0
        %1770 = vmatprep.subr.mxu0 0.0
        %1771 = vmatpush1.msra.mxu0 0.0
        %1772 = vmatprep.subr.mxu0 0.0
        %1773 = vmatpush1.msra.mxu0 0.0
        %1774 = vmatprep.subr.mxu0 0.0
        %1775 = vmatpush1.msra.mxu0 0.0
        %1776 = vmatprep.subr.mxu0 0.0
        %1777 = vmatpush1.msra.mxu0 0.0
        %1778 = vmatprep.subr.mxu0 0.0
        %1779 = vmatpush1.msra.mxu0 0.0
        %1780 = vmatprep.subr.mxu0 0.0
        %1781 = vmatpush1.msra.mxu0 0.0
        %1782 = vmatprep.subr.mxu0 0.0
        %1783 = vmatpush1.msra.mxu0 0.0
        %1784 = vmatprep.subr.mxu0 0.0
        %1785 = vmatpush1.msra.mxu0 0.0
        %1786 = vmatprep.subr.mxu0 0.0
        %1787 = vmatpush1.msra.mxu0 0.0
        %1788 = vmatprep.subr.mxu0 0.0
        %1789 = vmatpush1.msra.mxu0 0.0
        %1790 = vmatprep.subr.mxu0 0.0
        %1791 = vmatpush1.msra.mxu0 0.0
        %1792 = vmatprep.subr.mxu0 0.0
        %1793 = vmatpush1.msra.mxu0 0.0
        %1794 = vmatprep.subr.mxu0 0.0
        %1795 = vmatpush1.msra.mxu0 0.0
        %1796 = vmatprep.subr.mxu0 0.0
        %1797 = vmatpush1.msra.mxu0 0.0
        %1798 = vmatprep.subr.mxu0 0.0
        %1799 = vmatpush1.msra.mxu0 0.0
        %1800 = vmatprep.subr.mxu0 0.0
        %1801 = vmatpush1.msra.mxu0 0.0
        %1802 = vmatprep.subr.mxu0 0.0
        %1803 = vmatpush1.msra.mxu0 0.0
        %1804 = vmatprep.subr.mxu0 0.0
        %1805 = vmatpush1.msra.mxu0 0.0
        %1806 = vmatprep.subr.mxu0 0.0
        %1807 = vmatpush1.msra.mxu0 0.0
        %1808 = vmatprep.subr.mxu0 0.0
        %1809 = vmatpush1.msra.mxu0 0.0
        %1810 = vmatprep.subr.mxu0 0.0
        %1811 = vmatpush1.msra.mxu0 0.0
        %1812 = vmatprep.subr.mxu0 0.0
        %1813 = vmatpush1.msra.mxu0 0.0
        %1814 = vmatprep.mubr.f32.mxu0 0.0
        %1815 = vmatmul.mubr.f32.gmra.mrb[0].mxu0 %v1748
        %v1816 = vpop.f32.mrb[0].mxu0
        %v1817 = vadd.f32 0.0, %v1816
        %v1818 = vpop.f32.mrb[0].mxu0
        %1819 = vdwg.mxu0
        %v1820 = vadd.f32 %v1744, %v1817
        %v1821 = vxor.u32 %v1820, 2147483648
        %v1822 = vmul.f32 %v1821, 1.442695
        %v1823 = vpow.pop %v1822
        %v1824 = vadd.f32 %v1823, 1.0
        %v1825 = vrcp.pop %v1824
        %v1826 = vmul.f32 1.0, %v1825
        %v1827 = vtanh.pop %v1820
        %v1828 = vmul.f32 %v1826, %v1742
        %1830 = vrot.lane.b32.xlu0 %v1827, 64
        %v1831 = vpop.permute.xlu0 %1830
        %v1833 = vmul.f32 %v1826, %v1831
        %1835 = vrot.lane.b32.xlu0 %v1833, 32
        %v1836 = vpop.permute.xlu0 %1835
        %v1838 = vadd.f32 %v1828, %v1836
        %v1839 = vtanh.pop %v1838
        %1841 = vrot.lane.b32.xlu0 %v1839, 64
        %v1842 = vpop.permute.xlu0 %1841
        %v1844 = vmul.f32 %v1826, %v1842
        %vm1845 = vcmp.gt.s32.totalorder %v586, 10
        %v1846 = vsel %vm1845, 1, 0
        %v1847 = vcvt.s32.f32 %v1846
        %v1848 = vsub.f32 %v1844, %v1739
        %1850 = vset.pattern.permute.xlu0 0
        %1851 = vperm.xlu0 %1850, %v1847
        %v1852 = vpop.permute.xlu0 %1851
        %v1854 = vmul.f32 %v1852, %v1848
        %v1855 = vadd.f32 %v1739, %v1854
        %v1856 = vsub.f32 %v1838, %v1742
        %v1857 = vmul.f32 %v1852, %v1856
        %v1858 = vadd.f32 %v1742, %v1857
        %s1859 = scalar_lea.vmem [#allocation2], 88
        %v1860 = vld [vmem:[%s1859] sm:$0xff]
        %1862 = vrot.lane.b32.xlu0 %v1855, 32
        %v1863 = vpop.permute.xlu0 %1862
        %v1864 = vsel %vm588, %v1863, 0
        %1866 = vmatprep.subr.mxu0 0.0
        %1867 = vmatpush1.msra.mxu0 %v582
        %1868 = vmatprep.subr.mxu0 0.0
        %1869 = vmatpush1.msra.mxu0 %v583
        %1870 = vmatprep.subr.mxu0 0.0
        %1871 = vmatpush1.msra.mxu0 %v584
        %1872 = vmatprep.subr.mxu0 0.0
        %1873 = vmatpush1.msra.mxu0 %v585
        %1874 = vmatprep.subr.mxu0 0.0
        %1875 = vmatpush1.msra.mxu0 0.0
        %1876 = vmatprep.subr.mxu0 0.0
        %1877 = vmatpush1.msra.mxu0 0.0
        %1878 = vmatprep.subr.mxu0 0.0
        %1879 = vmatpush1.msra.mxu0 0.0
        %1880 = vmatprep.subr.mxu0 0.0
        %1881 = vmatpush1.msra.mxu0 0.0
        %1882 = vmatprep.subr.mxu0 0.0
        %1883 = vmatpush1.msra.mxu0 0.0
        %1884 = vmatprep.subr.mxu0 0.0
        %1885 = vmatpush1.msra.mxu0 0.0
        %1886 = vmatprep.subr.mxu0 0.0
        %1887 = vmatpush1.msra.mxu0 0.0
        %1888 = vmatprep.subr.mxu0 0.0
        %1889 = vmatpush1.msra.mxu0 0.0
        %1890 = vmatprep.subr.mxu0 0.0
        %1891 = vmatpush1.msra.mxu0 0.0
        %1892 = vmatprep.subr.mxu0 0.0
        %1893 = vmatpush1.msra.mxu0 0.0
        %1894 = vmatprep.subr.mxu0 0.0
        %1895 = vmatpush1.msra.mxu0 0.0
        %1896 = vmatprep.subr.mxu0 0.0
        %1897 = vmatpush1.msra.mxu0 0.0
        %1898 = vmatprep.subr.mxu0 0.0
        %1899 = vmatpush1.msra.mxu0 0.0
        %1900 = vmatprep.subr.mxu0 0.0
        %1901 = vmatpush1.msra.mxu0 0.0
        %1902 = vmatprep.subr.mxu0 0.0
        %1903 = vmatpush1.msra.mxu0 0.0
        %1904 = vmatprep.subr.mxu0 0.0
        %1905 = vmatpush1.msra.mxu0 0.0
        %1906 = vmatprep.subr.mxu0 0.0
        %1907 = vmatpush1.msra.mxu0 0.0
        %1908 = vmatprep.subr.mxu0 0.0
        %1909 = vmatpush1.msra.mxu0 0.0
        %1910 = vmatprep.subr.mxu0 0.0
        %1911 = vmatpush1.msra.mxu0 0.0
        %1912 = vmatprep.subr.mxu0 0.0
        %1913 = vmatpush1.msra.mxu0 0.0
        %1914 = vmatprep.subr.mxu0 0.0
        %1915 = vmatpush1.msra.mxu0 0.0
        %1916 = vmatprep.subr.mxu0 0.0
        %1917 = vmatpush1.msra.mxu0 0.0
        %1918 = vmatprep.subr.mxu0 0.0
        %1919 = vmatpush1.msra.mxu0 0.0
        %1920 = vmatprep.subr.mxu0 0.0
        %1921 = vmatpush1.msra.mxu0 0.0
        %1922 = vmatprep.subr.mxu0 0.0
        %1923 = vmatpush1.msra.mxu0 0.0
        %1924 = vmatprep.subr.mxu0 0.0
        %1925 = vmatpush1.msra.mxu0 0.0
        %1926 = vmatprep.subr.mxu0 0.0
        %1927 = vmatpush1.msra.mxu0 0.0
        %1928 = vmatprep.subr.mxu0 0.0
        %1929 = vmatpush1.msra.mxu0 0.0
        %1930 = vmatprep.mubr.f32.mxu0 0.0
        %1931 = vmatmul.mubr.f32.gmra.mrb[0].mxu0 %v1864
        %v1932 = vpop.f32.mrb[0].mxu0
        %v1933 = vadd.f32 0.0, %v1932
        %v1934 = vpop.f32.mrb[0].mxu0
        %1935 = vdwg.mxu0
        %v1936 = vadd.f32 %v1860, %v1933
        %v1937 = vxor.u32 %v1936, 2147483648
        %v1938 = vmul.f32 %v1937, 1.442695
        %v1939 = vpow.pop %v1938
        %v1940 = vadd.f32 %v1939, 1.0
        %v1941 = vrcp.pop %v1940
        %v1942 = vmul.f32 1.0, %v1941
        %v1943 = vtanh.pop %v1936
        %v1944 = vmul.f32 %v1942, %v1858
        %1946 = vrot.lane.b32.xlu0 %v1943, 64
        %v1947 = vpop.permute.xlu0 %1946
        %v1949 = vmul.f32 %v1942, %v1947
        %1951 = vrot.lane.b32.xlu0 %v1949, 32
        %v1952 = vpop.permute.xlu0 %1951
        %v1954 = vadd.f32 %v1944, %v1952
        %v1955 = vtanh.pop %v1954
        %1957 = vrot.lane.b32.xlu0 %v1955, 64
        %v1958 = vpop.permute.xlu0 %1957
        %v1960 = vmul.f32 %v1942, %v1958
        %vm1961 = vcmp.gt.s32.totalorder %v586, 11
        %v1962 = vsel %vm1961, 1, 0
        %v1963 = vcvt.s32.f32 %v1962
        %v1964 = vsub.f32 %v1960, %v1855
        %1966 = vset.pattern.permute.xlu0 0
        %1967 = vperm.xlu0 %1966, %v1963
        %v1968 = vpop.permute.xlu0 %1967
        %v1970 = vmul.f32 %v1968, %v1964
        %v1971 = vadd.f32 %v1855, %v1970
        %v1972 = vsub.f32 %v1954, %v1858
        %v1973 = vmul.f32 %v1968, %v1972
        %v1974 = vadd.f32 %v1858, %v1973
        %s1975 = scalar_lea.vmem [#allocation2], 96
        %v1976 = vld [vmem:[%s1975] sm:$0xff]
        %1978 = vrot.lane.b32.xlu0 %v1971, 32
        %v1979 = vpop.permute.xlu0 %1978
        %v1980 = vsel %vm588, %v1979, 0
        %1982 = vmatprep.subr.mxu0 0.0
        %1983 = vmatpush1.msra.mxu0 %v582
        %1984 = vmatprep.subr.mxu0 0.0
        %1985 = vmatpush1.msra.mxu0 %v583
        %1986 = vmatprep.subr.mxu0 0.0
        %1987 = vmatpush1.msra.mxu0 %v584
        %1988 = vmatprep.subr.mxu0 0.0
        %1989 = vmatpush1.msra.mxu0 %v585
        %1990 = vmatprep.subr.mxu0 0.0
        %1991 = vmatpush1.msra.mxu0 0.0
        %1992 = vmatprep.subr.mxu0 0.0
        %1993 = vmatpush1.msra.mxu0 0.0
        %1994 = vmatprep.subr.mxu0 0.0
        %1995 = vmatpush1.msra.mxu0 0.0
        %1996 = vmatprep.subr.mxu0 0.0
        %1997 = vmatpush1.msra.mxu0 0.0
        %1998 = vmatprep.subr.mxu0 0.0
        %1999 = vmatpush1.msra.mxu0 0.0
        %2000 = vmatprep.subr.mxu0 0.0
        %2001 = vmatpush1.msra.mxu0 0.0
        %2002 = vmatprep.subr.mxu0 0.0
        %2003 = vmatpush1.msra.mxu0 0.0
        %2004 = vmatprep.subr.mxu0 0.0
        %2005 = vmatpush1.msra.mxu0 0.0
        %2006 = vmatprep.subr.mxu0 0.0
        %2007 = vmatpush1.msra.mxu0 0.0
        %2008 = vmatprep.subr.mxu0 0.0
        %2009 = vmatpush1.msra.mxu0 0.0
        %2010 = vmatprep.subr.mxu0 0.0
        %2011 = vmatpush1.msra.mxu0 0.0
        %2012 = vmatprep.subr.mxu0 0.0
        %2013 = vmatpush1.msra.mxu0 0.0
        %2014 = vmatprep.subr.mxu0 0.0
        %2015 = vmatpush1.msra.mxu0 0.0
        %2016 = vmatprep.subr.mxu0 0.0
        %2017 = vmatpush1.msra.mxu0 0.0
        %2018 = vmatprep.subr.mxu0 0.0
        %2019 = vmatpush1.msra.mxu0 0.0
        %2020 = vmatprep.subr.mxu0 0.0
        %2021 = vmatpush1.msra.mxu0 0.0
        %2022 = vmatprep.subr.mxu0 0.0
        %2023 = vmatpush1.msra.mxu0 0.0
        %2024 = vmatprep.subr.mxu0 0.0
        %2025 = vmatpush1.msra.mxu0 0.0
        %2026 = vmatprep.subr.mxu0 0.0
        %2027 = vmatpush1.msra.mxu0 0.0
        %2028 = vmatprep.subr.mxu0 0.0
        %2029 = vmatpush1.msra.mxu0 0.0
        %2030 = vmatprep.subr.mxu0 0.0
        %2031 = vmatpush1.msra.mxu0 0.0
        %2032 = vmatprep.subr.mxu0 0.0
        %2033 = vmatpush1.msra.mxu0 0.0
        %2034 = vmatprep.subr.mxu0 0.0
        %2035 = vmatpush1.msra.mxu0 0.0
        %2036 = vmatprep.subr.mxu0 0.0
        %2037 = vmatpush1.msra.mxu0 0.0
        %2038 = vmatprep.subr.mxu0 0.0
        %2039 = vmatpush1.msra.mxu0 0.0
        %2040 = vmatprep.subr.mxu0 0.0
        %2041 = vmatpush1.msra.mxu0 0.0
        %2042 = vmatprep.subr.mxu0 0.0
        %2043 = vmatpush1.msra.mxu0 0.0
        %2044 = vmatprep.subr.mxu0 0.0
        %2045 = vmatpush1.msra.mxu0 0.0
        %2046 = vmatprep.mubr.f32.mxu0 0.0
        %2047 = vmatmul.mubr.f32.gmra.mrb[0].mxu0 %v1980
        %v2048 = vpop.f32.mrb[0].mxu0
        %v2049 = vadd.f32 0.0, %v2048
        %v2050 = vpop.f32.mrb[0].mxu0
        %2051 = vdwg.mxu0
        %v2052 = vadd.f32 %v1976, %v2049
        %v2053 = vxor.u32 %v2052, 2147483648
        %v2054 = vmul.f32 %v2053, 1.442695
        %v2055 = vpow.pop %v2054
        %v2056 = vadd.f32 %v2055, 1.0
        %v2057 = vrcp.pop %v2056
        %v2058 = vmul.f32 1.0, %v2057
        %v2059 = vtanh.pop %v2052
        %v2060 = vmul.f32 %v2058, %v1974
        %2062 = vrot.lane.b32.xlu0 %v2059, 64
        %v2063 = vpop.permute.xlu0 %2062
        %v2065 = vmul.f32 %v2058, %v2063
        %2067 = vrot.lane.b32.xlu0 %v2065, 32
        %v2068 = vpop.permute.xlu0 %2067
        %v2070 = vadd.f32 %v2060, %v2068
        %v2071 = vtanh.pop %v2070
        %2073 = vrot.lane.b32.xlu0 %v2071, 64
        %v2074 = vpop.permute.xlu0 %2073
        %v2076 = vmul.f32 %v2058, %v2074
        %vm2077 = vcmp.gt.s32.totalorder %v586, 12
        %v2078 = vsel %vm2077, 1, 0
        %v2079 = vcvt.s32.f32 %v2078
        %v2080 = vsub.f32 %v2076, %v1971
        %2082 = vset.pattern.permute.xlu0 0
        %2083 = vperm.xlu0 %2082, %v2079
        %v2084 = vpop.permute.xlu0 %2083
        %v2086 = vmul.f32 %v2084, %v2080
        %v2087 = vadd.f32 %v1971, %v2086
        %v2088 = vsub.f32 %v2070, %v1974
        %v2089 = vmul.f32 %v2084, %v2088
        %v2090 = vadd.f32 %v1974, %v2089
        %s2091 = scalar_lea.vmem [#allocation2], 104
        %v2092 = vld [vmem:[%s2091] sm:$0xff]
        %2094 = vrot.lane.b32.xlu0 %v2087, 32
        %v2095 = vpop.permute.xlu0 %2094
        %v2096 = vsel %vm588, %v2095, 0
        %2098 = vmatprep.subr.mxu0 0.0
        %2099 = vmatpush1.msra.mxu0 %v582
        %2100 = vmatprep.subr.mxu0 0.0
        %2101 = vmatpush1.msra.mxu0 %v583
        %2102 = vmatprep.subr.mxu0 0.0
        %2103 = vmatpush1.msra.mxu0 %v584
        %2104 = vmatprep.subr.mxu0 0.0
        %2105 = vmatpush1.msra.mxu0 %v585
        %2106 = vmatprep.subr.mxu0 0.0
        %2107 = vmatpush1.msra.mxu0 0.0
        %2108 = vmatprep.subr.mxu0 0.0
        %2109 = vmatpush1.msra.mxu0 0.0
        %2110 = vmatprep.subr.mxu0 0.0
        %2111 = vmatpush1.msra.mxu0 0.0
        %2112 = vmatprep.subr.mxu0 0.0
        %2113 = vmatpush1.msra.mxu0 0.0
        %2114 = vmatprep.subr.mxu0 0.0
        %2115 = vmatpush1.msra.mxu0 0.0
        %2116 = vmatprep.subr.mxu0 0.0
        %2117 = vmatpush1.msra.mxu0 0.0
        %2118 = vmatprep.subr.mxu0 0.0
        %2119 = vmatpush1.msra.mxu0 0.0
        %2120 = vmatprep.subr.mxu0 0.0
        %2121 = vmatpush1.msra.mxu0 0.0
        %2122 = vmatprep.subr.mxu0 0.0
        %2123 = vmatpush1.msra.mxu0 0.0
        %2124 = vmatprep.subr.mxu0 0.0
        %2125 = vmatpush1.msra.mxu0 0.0
        %2126 = vmatprep.subr.mxu0 0.0
        %2127 = vmatpush1.msra.mxu0 0.0
        %2128 = vmatprep.subr.mxu0 0.0
        %2129 = vmatpush1.msra.mxu0 0.0
        %2130 = vmatprep.subr.mxu0 0.0
        %2131 = vmatpush1.msra.mxu0 0.0
        %2132 = vmatprep.subr.mxu0 0.0
        %2133 = vmatpush1.msra.mxu0 0.0
        %2134 = vmatprep.subr.mxu0 0.0
        %2135 = vmatpush1.msra.mxu0 0.0
        %2136 = vmatprep.subr.mxu0 0.0
        %2137 = vmatpush1.msra.mxu0 0.0
        %2138 = vmatprep.subr.mxu0 0.0
        %2139 = vmatpush1.msra.mxu0 0.0
        %2140 = vmatprep.subr.mxu0 0.0
        %2141 = vmatpush1.msra.mxu0 0.0
        %2142 = vmatprep.subr.mxu0 0.0
        %2143 = vmatpush1.msra.mxu0 0.0
        %2144 = vmatprep.subr.mxu0 0.0
        %2145 = vmatpush1.msra.mxu0 0.0
        %2146 = vmatprep.subr.mxu0 0.0
        %2147 = vmatpush1.msra.mxu0 0.0
        %2148 = vmatprep.subr.mxu0 0.0
        %2149 = vmatpush1.msra.mxu0 0.0
        %2150 = vmatprep.subr.mxu0 0.0
        %2151 = vmatpush1.msra.mxu0 0.0
        %2152 = vmatprep.subr.mxu0 0.0
        %2153 = vmatpush1.msra.mxu0 0.0
        %2154 = vmatprep.subr.mxu0 0.0
        %2155 = vmatpush1.msra.mxu0 0.0
        %2156 = vmatprep.subr.mxu0 0.0
        %2157 = vmatpush1.msra.mxu0 0.0
        %2158 = vmatprep.subr.mxu0 0.0
        %2159 = vmatpush1.msra.mxu0 0.0
        %2160 = vmatprep.subr.mxu0 0.0
        %2161 = vmatpush1.msra.mxu0 0.0
        %2162 = vmatprep.mubr.f32.mxu0 0.0
        %2163 = vmatmul.mubr.f32.gmra.mrb[0].mxu0 %v2096
        %v2164 = vpop.f32.mrb[0].mxu0
        %v2165 = vadd.f32 0.0, %v2164
        %v2166 = vpop.f32.mrb[0].mxu0
        %2167 = vdwg.mxu0
        %v2168 = vadd.f32 %v2092, %v2165
        %v2169 = vxor.u32 %v2168, 2147483648
        %v2170 = vmul.f32 %v2169, 1.442695
        %v2171 = vpow.pop %v2170
        %v2172 = vadd.f32 %v2171, 1.0
        %v2173 = vrcp.pop %v2172
        %v2174 = vmul.f32 1.0, %v2173
        %v2175 = vtanh.pop %v2168
        %v2176 = vmul.f32 %v2174, %v2090
        %2178 = vrot.lane.b32.xlu0 %v2175, 64
        %v2179 = vpop.permute.xlu0 %2178
        %v2181 = vmul.f32 %v2174, %v2179
        %2183 = vrot.lane.b32.xlu0 %v2181, 32
        %v2184 = vpop.permute.xlu0 %2183
        %v2186 = vadd.f32 %v2176, %v2184
        %v2187 = vtanh.pop %v2186
        %2189 = vrot.lane.b32.xlu0 %v2187, 64
        %v2190 = vpop.permute.xlu0 %2189
        %v2192 = vmul.f32 %v2174, %v2190
        %vm2193 = vcmp.gt.s32.totalorder %v586, 13
        %v2194 = vsel %vm2193, 1, 0
        %v2195 = vcvt.s32.f32 %v2194
        %v2196 = vsub.f32 %v2192, %v2087
        %2198 = vset.pattern.permute.xlu0 0
        %2199 = vperm.xlu0 %2198, %v2195
        %v2200 = vpop.permute.xlu0 %2199
        %v2202 = vmul.f32 %v2200, %v2196
        %v2203 = vadd.f32 %v2087, %v2202
        %v2204 = vsub.f32 %v2186, %v2090
        %v2205 = vmul.f32 %v2200, %v2204
        %v2206 = vadd.f32 %v2090, %v2205
        %s2207 = scalar_lea.vmem [#allocation2], 112
        %v2208 = vld [vmem:[%s2207] sm:$0xff]
        %2210 = vrot.lane.b32.xlu0 %v2203, 32
        %v2211 = vpop.permute.xlu0 %2210
        %v2212 = vsel %vm588, %v2211, 0
        %2214 = vmatprep.subr.mxu0 0.0
        %2215 = vmatpush1.msra.mxu0 %v582
        %2216 = vmatprep.subr.mxu0 0.0
        %2217 = vmatpush1.msra.mxu0 %v583
        %2218 = vmatprep.subr.mxu0 0.0
        %2219 = vmatpush1.msra.mxu0 %v584
        %2220 = vmatprep.subr.mxu0 0.0
        %2221 = vmatpush1.msra.mxu0 %v585
        %2222 = vmatprep.subr.mxu0 0.0
        %2223 = vmatpush1.msra.mxu0 0.0
        %2224 = vmatprep.subr.mxu0 0.0
        %2225 = vmatpush1.msra.mxu0 0.0
        %2226 = vmatprep.subr.mxu0 0.0
        %2227 = vmatpush1.msra.mxu0 0.0
        %2228 = vmatprep.subr.mxu0 0.0
        %2229 = vmatpush1.msra.mxu0 0.0
        %2230 = vmatprep.subr.mxu0 0.0
        %2231 = vmatpush1.msra.mxu0 0.0
        %2232 = vmatprep.subr.mxu0 0.0
        %2233 = vmatpush1.msra.mxu0 0.0
        %2234 = vmatprep.subr.mxu0 0.0
        %2235 = vmatpush1.msra.mxu0 0.0
        %2236 = vmatprep.subr.mxu0 0.0
        %2237 = vmatpush1.msra.mxu0 0.0
        %2238 = vmatprep.subr.mxu0 0.0
        %2239 = vmatpush1.msra.mxu0 0.0
        %2240 = vmatprep.subr.mxu0 0.0
        %2241 = vmatpush1.msra.mxu0 0.0
        %2242 = vmatprep.subr.mxu0 0.0
        %2243 = vmatpush1.msra.mxu0 0.0
        %2244 = vmatprep.subr.mxu0 0.0
        %2245 = vmatpush1.msra.mxu0 0.0
        %2246 = vmatprep.subr.mxu0 0.0
        %2247 = vmatpush1.msra.mxu0 0.0
        %2248 = vmatprep.subr.mxu0 0.0
        %2249 = vmatpush1.msra.mxu0 0.0
        %2250 = vmatprep.subr.mxu0 0.0
        %2251 = vmatpush1.msra.mxu0 0.0
        %2252 = vmatprep.subr.mxu0 0.0
        %2253 = vmatpush1.msra.mxu0 0.0
        %2254 = vmatprep.subr.mxu0 0.0
        %2255 = vmatpush1.msra.mxu0 0.0
        %2256 = vmatprep.subr.mxu0 0.0
        %2257 = vmatpush1.msra.mxu0 0.0
        %2258 = vmatprep.subr.mxu0 0.0
        %2259 = vmatpush1.msra.mxu0 0.0
        %2260 = vmatprep.subr.mxu0 0.0
        %2261 = vmatpush1.msra.mxu0 0.0
        %2262 = vmatprep.subr.mxu0 0.0
        %2263 = vmatpush1.msra.mxu0 0.0
        %2264 = vmatprep.subr.mxu0 0.0
        %2265 = vmatpush1.msra.mxu0 0.0
        %2266 = vmatprep.subr.mxu0 0.0
        %2267 = vmatpush1.msra.mxu0 0.0
        %2268 = vmatprep.subr.mxu0 0.0
        %2269 = vmatpush1.msra.mxu0 0.0
        %2270 = vmatprep.subr.mxu0 0.0
        %2271 = vmatpush1.msra.mxu0 0.0
        %2272 = vmatprep.subr.mxu0 0.0
        %2273 = vmatpush1.msra.mxu0 0.0
        %2274 = vmatprep.subr.mxu0 0.0
        %2275 = vmatpush1.msra.mxu0 0.0
        %2276 = vmatprep.subr.mxu0 0.0
        %2277 = vmatpush1.msra.mxu0 0.0
        %2278 = vmatprep.mubr.f32.mxu0 0.0
        %2279 = vmatmul.mubr.f32.gmra.mrb[0].mxu0 %v2212
        %v2280 = vpop.f32.mrb[0].mxu0
        %v2281 = vadd.f32 0.0, %v2280
        %v2282 = vpop.f32.mrb[0].mxu0
        %2283 = vdwg.mxu0
        %v2284 = vadd.f32 %v2208, %v2281
        %v2285 = vxor.u32 %v2284, 2147483648
        %v2286 = vmul.f32 %v2285, 1.442695
        %v2287 = vpow.pop %v2286
        %v2288 = vadd.f32 %v2287, 1.0
        %v2289 = vrcp.pop %v2288
        %v2290 = vmul.f32 1.0, %v2289
        %v2291 = vtanh.pop %v2284
        %v2292 = vmul.f32 %v2290, %v2206
        %2294 = vrot.lane.b32.xlu0 %v2291, 64
        %v2295 = vpop.permute.xlu0 %2294
        %v2297 = vmul.f32 %v2290, %v2295
        %2299 = vrot.lane.b32.xlu0 %v2297, 32
        %v2300 = vpop.permute.xlu0 %2299
        %v2302 = vadd.f32 %v2292, %v2300
        %v2303 = vtanh.pop %v2302
        %2305 = vrot.lane.b32.xlu0 %v2303, 64
        %v2306 = vpop.permute.xlu0 %2305
        %v2308 = vmul.f32 %v2290, %v2306
        %vm2309 = vcmp.gt.s32.totalorder %v586, 14
        %v2310 = vsel %vm2309, 1, 0
        %v2311 = vcvt.s32.f32 %v2310
        %v2312 = vsub.f32 %v2308, %v2203
        %2314 = vset.pattern.permute.xlu0 0
        %2315 = vperm.xlu0 %2314, %v2311
        %v2316 = vpop.permute.xlu0 %2315
        %v2318 = vmul.f32 %v2316, %v2312
        %v2319 = vadd.f32 %v2203, %v2318
        %v2320 = vsub.f32 %v2302, %v2206
        %v2321 = vmul.f32 %v2316, %v2320
        %v2322 = vadd.f32 %v2206, %v2321
        %s2323 = scalar_lea.vmem [#allocation2], 120
        %v2324 = vld [vmem:[%s2323] sm:$0xff]
        %2326 = vrot.lane.b32.xlu0 %v2319, 32
        %v2327 = vpop.permute.xlu0 %2326
        %v2328 = vsel %vm588, %v2327, 0
        %2330 = vmatprep.subr.mxu0 0.0
        %2331 = vmatpush1.msra.mxu0 %v582
        %2332 = vmatprep.subr.mxu0 0.0
        %2333 = vmatpush1.msra.mxu0 %v583
        %2334 = vmatprep.subr.mxu0 0.0
        %2335 = vmatpush1.msra.mxu0 %v584
        %2336 = vmatprep.subr.mxu0 0.0
        %2337 = vmatpush1.msra.mxu0 %v585
        %2338 = vmatprep.subr.mxu0 0.0
        %2339 = vmatpush1.msra.mxu0 0.0
        %2340 = vmatprep.subr.mxu0 0.0
        %2341 = vmatpush1.msra.mxu0 0.0
        %2342 = vmatprep.subr.mxu0 0.0
        %2343 = vmatpush1.msra.mxu0 0.0
        %2344 = vmatprep.subr.mxu0 0.0
        %2345 = vmatpush1.msra.mxu0 0.0
        %2346 = vmatprep.subr.mxu0 0.0
        %2347 = vmatpush1.msra.mxu0 0.0
        %2348 = vmatprep.subr.mxu0 0.0
        %2349 = vmatpush1.msra.mxu0 0.0
        %2350 = vmatprep.subr.mxu0 0.0
        %2351 = vmatpush1.msra.mxu0 0.0
        %2352 = vmatprep.subr.mxu0 0.0
        %2353 = vmatpush1.msra.mxu0 0.0
        %2354 = vmatprep.subr.mxu0 0.0
        %2355 = vmatpush1.msra.mxu0 0.0
        %2356 = vmatprep.subr.mxu0 0.0
        %2357 = vmatpush1.msra.mxu0 0.0
        %2358 = vmatprep.subr.mxu0 0.0
        %2359 = vmatpush1.msra.mxu0 0.0
        %2360 = vmatprep.subr.mxu0 0.0
        %2361 = vmatpush1.msra.mxu0 0.0
        %2362 = vmatprep.subr.mxu0 0.0
        %2363 = vmatpush1.msra.mxu0 0.0
        %2364 = vmatprep.subr.mxu0 0.0
        %2365 = vmatpush1.msra.mxu0 0.0
        %2366 = vmatprep.subr.mxu0 0.0
        %2367 = vmatpush1.msra.mxu0 0.0
        %2368 = vmatprep.subr.mxu0 0.0
        %2369 = vmatpush1.msra.mxu0 0.0
        %2370 = vmatprep.subr.mxu0 0.0
        %2371 = vmatpush1.msra.mxu0 0.0
        %2372 = vmatprep.subr.mxu0 0.0
        %2373 = vmatpush1.msra.mxu0 0.0
        %2374 = vmatprep.subr.mxu0 0.0
        %2375 = vmatpush1.msra.mxu0 0.0
        %2376 = vmatprep.subr.mxu0 0.0
        %2377 = vmatpush1.msra.mxu0 0.0
        %2378 = vmatprep.subr.mxu0 0.0
        %2379 = vmatpush1.msra.mxu0 0.0
        %2380 = vmatprep.subr.mxu0 0.0
        %2381 = vmatpush1.msra.mxu0 0.0
        %2382 = vmatprep.subr.mxu0 0.0
        %2383 = vmatpush1.msra.mxu0 0.0
        %2384 = vmatprep.subr.mxu0 0.0
        %2385 = vmatpush1.msra.mxu0 0.0
        %2386 = vmatprep.subr.mxu0 0.0
        %2387 = vmatpush1.msra.mxu0 0.0
        %2388 = vmatprep.subr.mxu0 0.0
        %2389 = vmatpush1.msra.mxu0 0.0
        %2390 = vmatprep.subr.mxu0 0.0
        %2391 = vmatpush1.msra.mxu0 0.0
        %2392 = vmatprep.subr.mxu0 0.0
        %2393 = vmatpush1.msra.mxu0 0.0
        %2394 = vmatprep.mubr.f32.mxu0 0.0
        %2395 = vmatmul.mubr.f32.gmra.mrb[0].mxu0 %v2328
        %v2396 = vpop.f32.mrb[0].mxu0
        %v2397 = vadd.f32 0.0, %v2396
        %v2398 = vpop.f32.mrb[0].mxu0
        %2399 = vdwg.mxu0
        %v2400 = vadd.f32 %v2324, %v2397
        %v2401 = vxor.u32 %v2400, 2147483648
        %v2402 = vmul.f32 %v2401, 1.442695
        %v2403 = vpow.pop %v2402
        %v2404 = vadd.f32 %v2403, 1.0
        %v2405 = vrcp.pop %v2404
        %v2406 = vmul.f32 1.0, %v2405
        %v2407 = vtanh.pop %v2400
        %v2408 = vmul.f32 %v2406, %v2322
        %2410 = vrot.lane.b32.xlu0 %v2407, 64
        %v2411 = vpop.permute.xlu0 %2410
        %v2413 = vmul.f32 %v2406, %v2411
        %2415 = vrot.lane.b32.xlu0 %v2413, 32
        %v2416 = vpop.permute.xlu0 %2415
        %v2418 = vadd.f32 %v2408, %v2416
        %v2419 = vtanh.pop %v2418
        %2421 = vrot.lane.b32.xlu0 %v2419, 64
        %v2422 = vpop.permute.xlu0 %2421
        %v2424 = vmul.f32 %v2406, %v2422
        %vm2425 = vcmp.gt.s32.totalorder %v586, 15
        %v2426 = vsel %vm2425, 1, 0
        %v2427 = vcvt.s32.f32 %v2426
        %v2428 = vsub.f32 %v2424, %v2319
        %2430 = vset.pattern.permute.xlu0 0
        %2431 = vperm.xlu0 %2430, %v2427
        %v2432 = vpop.permute.xlu0 %2431
        %v2434 = vmul.f32 %v2432, %v2428
        %v2435 = vadd.f32 %v2319, %v2434
        %2437 = vrot.lane.b32.xlu0 %v2435, 32
        %v2438 = vpop.permute.xlu0 %2437
        %2440 = vst.msk [vmem:[%s273] sm:$0xff] %vm588, %v2438
        %s2441 = sand.u32 %s144, 1
        %s2442 = scalar_lea.sflag [#allocation7], %s2441
        %s2443 = sand.u32 %s144, 1
        %s2444 = smul.addr %s2443, 8
        %s2445 = scalar_lea.vmem [#allocation8], %s2444
        // Predicated region
        $region41: #{tpu_custom_call.1} parent=35 // pred_check
          %p2446 = pneg %p154
        $region42: #{tpu_custom_call.1} parent=35 // pred_check_branch
          %2448 = sbr.rel (%p2446) target = $region44
        $region43: #{tpu_custom_call.1} parent=35 // pred_region
          %s2450 = ssub.s32 128, 128
          %2451 = vsyncadd %s2442, %s2450
          %s2452 = smul.addr %s28, 128
          %s2453 = scalar_lea.hbm %s5, %s2452
          %s2455 = sshll.u32 %s2445, 4
          %s2456 = int_to_ptr.vmem [resolvable:$true] %s2455
          %2458 = dma.vmem_to_hbm [thread:$0]  %s2456, 128, %s2453, %s2442
        $region44: #{tpu_custom_call.1} parent=35 // pred_fallthru
          _
      $region36: #{tpu_custom_call.1} parent=5 // pred_fallthru
        _
      %p2459 = scmp.le.s32.totalorder 2, %s23
      // Predicated region
      $region45: #{tpu_custom_call.1} parent=5 // pred_check
        %p2460 = pneg %p2459
      $region46: #{tpu_custom_call.1} parent=5 // pred_check_branch
        %2462 = sbr.rel (%p2460) target = $region48
      $region47: #{tpu_custom_call.1} parent=5 // pred_region
        %s2463 = ssub.s32 %s23, 2
        // Predicated region
        $region49: #{tpu_custom_call.1} parent=47 // pred_check
          %p2464 = pneg %p160
        $region50: #{tpu_custom_call.1} parent=47 // pred_check_branch
          %2466 = sbr.rel (%p2464) target = $region52
        $region51: #{tpu_custom_call.1} parent=47 // pred_region
          %s2467 = sand.u32 %s145, 1
          %s2468 = scalar_lea.sflag [#allocation7], %s2467
          %s2469 = sand.u32 %s145, 1
          %s2470 = smul.addr %s2469, 8
          %s2471 = scalar_lea.vmem [#allocation8], %s2470
          %2472 = dma.done %s2468, 128
        $region52: #{tpu_custom_call.1} parent=47 // pred_fallthru
          _
      $region48: #{tpu_custom_call.1} parent=5 // pred_fallthru
        _
    $region6: #{tpu_custom_call.1} parent=1 // loop_footer
      %s27 = sadd.s32 1, %s23
    $region7: #{tpu_custom_call.1} parent=1 // loop_footer_branch
      %22 = sbr.rel target = $region3
    $region8: #{tpu_custom_call.1} parent=1 // loop_exit
      _
    %2473 = vsyncpa [#allocation6], 1
    %s2474 = scalar_lea.sflag [#allocation6], 1
    %2475 = vsyncpa %s2474, 1
    %2476 = vsyncpa [#allocation7], 1
    %s2477 = scalar_lea.sflag [#allocation7], 1
    %2478 = vsyncpa %s2477, 1

</llo_original>
